<compile_context>
chip_gen: v5e
topology: v5e:2x2
jax: 0.10.0
libtpu: 0.0.40
codegen_flags: <defaults>
</compile_context>

<pallas_src>
import functools
import math

import jax
import jax.numpy as jnp
from jax.experimental import pallas as pl
from jax.experimental.pallas import tpu as pltpu

EPS = 1e-5  # PyTorch nn.LayerNorm default eps


def _ln_relu(z, p, out_dtype):
    """LayerNorm (elementwise affine) + ReLU.

    z: (M, dout) f32 pre-norm activations (bias already added).
    p: (3, dout) f32 pack -- row 0 bias (unused here), row 1 gamma, row 2 beta.
    Statistics in one pass: mean and E[z^2] are independent lane reductions,
    var = E[z^2] - mu^2 (guarded against tiny negative cancellation).
    The affine + ReLU run in `out_dtype` so the result feeds the next MXU
    matmul without an extra cast pass.
    """
    mu = jnp.mean(z, axis=-1, keepdims=True)
    ms = jnp.mean(z * z, axis=-1, keepdims=True)
    var = jnp.maximum(ms - mu * mu, 0.0)
    zn = (z - mu) * jax.lax.rsqrt(var + EPS)
    g = p[1:2, :]
    b = p[2:3, :]
    if out_dtype != jnp.float32:
        zn = zn.astype(out_dtype)
        g = g.astype(out_dtype)
        b = b.astype(out_dtype)
    return jnp.maximum(zn * g + b, 0.0)


def _lin_ln_relu(h, w, p, out_dtype):
    """Linear (MXU, f32 accumulate) + LayerNorm + ReLU."""
    z = jnp.dot(h.astype(w.dtype), w, preferred_element_type=jnp.float32)
    return _ln_relu(z + p[0:1, :], p, out_dtype)


def _pc_encoder_kernel(x_ref,
                       w1_ref, p1_ref,
                       w2_ref, p2_ref,
                       w3_ref, p3_ref,
                       w4_ref, p4_ref,
                       o_ref, acc_ref, *,
                       n_valid, need_mask, act_dtype):
    # x_ref block: (TB, TN, C)   o_ref block: (TB, D)   acc_ref: (TB, D) f32
    pi = pl.program_id(1)
    n_pt = pl.num_programs(1)
    TB, TN, C = x_ref.shape
    D = o_ref.shape[-1]
    M = TB * TN

    # Merge (TB, TN) -> M rows.  Layout-preserving: TN is a multiple of 8.
    x = x_ref[...].reshape(M, C)                 # f32 (M, C)
    w1 = w1_ref[...]                             # (C, 64) f32
    p1 = p1_ref[...]                             # (3, 64) f32

    # ---- Layer 1: K = C = 3 -> broadcasted VPU FMAs (a (M,3)@(3,64) matmul is
    # >97% K-padding on the MXU; FMA path is cheap and proven). ----
    if C <= 8:
        h = x[:, 0:1] * w1[0:1, :]
        for c in range(1, C):
            h = h + x[:, c:c + 1] * w1[c:c + 1, :]
    else:
        h = jnp.dot(x, w1, preferred_element_type=jnp.float32)
    h = _ln_relu(h + p1[0:1, :], p1, act_dtype)                 # (M, 64)

    # ---- Layers 2-4: MXU matmuls (bf16 in / f32 accumulate when use_bf16). ----
    h = _lin_ln_relu(h, w2_ref[...], p2_ref[...], act_dtype)    # (M, 128)
    h = _lin_ln_relu(h, w3_ref[...], p3_ref[...], act_dtype)    # (M, 256)
    h = _lin_ln_relu(h, w4_ref[...], p4_ref[...], jnp.float32)  # (M, D) f32

    h = h.reshape(TB, TN, D)
    if need_mask:
        # Zero padded point rows; safe for the max because ReLU output >= 0.
        pt = jax.lax.broadcasted_iota(jnp.int32, (TB, TN, D), 1)
        h = jnp.where(pi * TN + pt < n_valid, h, 0.0)
    tile_max = jnp.max(h, axis=1)                               # (TB, D)

    # Running max over point tiles (the "arbitrary" reduction grid axis).
    @pl.when(pi == 0)
    def _():
        acc_ref[...] = tile_max

    @pl.when(pi > 0)
    def _():
        acc_ref[...] = jnp.maximum(acc_ref[...], tile_max)

    @pl.when(pi == n_pt - 1)
    def _():
        o_ref[...] = acc_ref[...]


def _const_spec(arr):
    nd = arr.ndim
    return pl.BlockSpec(arr.shape, lambda bi, pi, _nd=nd: (0,) * _nd)


def init_params(key, channels=3, output_dim=256):
    """Init mirroring layer_init (orthogonal, std=sqrt(2)).  Torch defaults are
    bias=0, gamma=1, beta=0; small random values are used so the test also
    exercises the bias / affine broadcast paths (forward semantics unchanged)."""
    dims = [channels, 64, 128, 256, output_dim]
    ortho = jax.nn.initializers.orthogonal(scale=math.sqrt(2.0))
    keys = jax.random.split(key, 16)
    params = {}
    for i in range(4):
        din, dout = dims[i], dims[i + 1]
        kw, kb, kg, ke = keys[4 * i:4 * i + 4]
        params[f"w{i + 1}"] = ortho(kw, (din, dout), jnp.float32)  # (in,out) = torch weight.T
        params[f"b{i + 1}"] = 0.1 * jax.random.normal(kb, (1, dout), jnp.float32)
        params[f"g{i + 1}"] = 1.0 + 0.1 * jax.random.normal(kg, (1, dout), jnp.float32)
        params[f"be{i + 1}"] = 0.1 * jax.random.normal(ke, (1, dout), jnp.float32)
    return params


def pc_encoder_forward(x, params, *, use_bf16=True, point_tile=1024,
                       row_target=1024):
    B, N, C = x.shape
    D = params["w4"].shape[1]

    # ---- Tile heuristic -----------------------------------------------------
    # Point tile bounds resident activations and keeps the sublane axis a
    # multiple of 8 (layout-preserving in-kernel reshapes).  Batch tile fills
    # the MXU M dimension (target ~row_target rows/step; ideally a multiple of
    # 256 on v6e/v7x).  Small problems run in a single grid step -- no forced
    # split across steps/TensorCores for us-scale work.
    point_tile = max(8, (point_tile // 8) * 8)
    tn_full = ((N + 7) // 8) * 8
    tn = min(tn_full, point_tile)
    if B * tn <= 2 * row_target or B <= 8:
        tb = B                                    # whole batch in one tile
    else:
        tb = min(B, max(8, ((row_target // tn) // 8) * 8))
    if tb * tn > 2 * row_target and tb >= 8:      # keep VMEM bounded
        tn = max(8, ((row_target // tb) // 8) * 8)
    Npp = ((N + tn - 1) // tn) * tn
    Bp = ((B + tb - 1) // tb) * tb

    if Bp != B or Npp != N:
        x = jnp.pad(x, ((0, Bp - B), (0, Npp - N), (0, 0)))
    grid = (Bp // tb, Npp // tn)

    w_dtype = jnp.bfloat16 if use_bf16 else jnp.float32
    act_dtype = jnp.bfloat16 if use_bf16 else jnp.float32
    w1 = params["w1"].astype(jnp.float32)         # layer 1 stays f32 (VPU FMA path)
    w2 = params["w2"].astype(w_dtype)
    w3 = params["w3"].astype(w_dtype)
    w4 = params["w4"].astype(w_dtype)
    packs = [
        jnp.concatenate([params[f"b{i}"], params[f"g{i}"], params[f"be{i}"]],
                        axis=0).astype(jnp.float32)
        for i in (1, 2, 3, 4)
    ]
    weights = [w1, packs[0], w2, packs[1], w3, packs[2], w4, packs[3]]

    # ---- Explicit VMEM budget + scheduler cost hint -------------------------
    m_rows = tb * tn
    act_bpr = (64 + 128 + 256 + D) * 4 + ((64 + 128 + 256) * 2 if use_bf16 else 0)
    weight_bytes = sum(int(w.size) * w.dtype.itemsize for w in weights)
    vmem_est = (2 * tb * tn * 128 * 4          # x block (C padded to 128 lanes), 2 buffers
                + 2 * weight_bytes             # weight operands (conservative x2)
                + 3 * tb * D * 4               # output block (x2) + running-max scratch
                + 2 * m_rows * act_bpr)        # activation chain (+slack for temporaries)
    vmem_limit = int(min(max(vmem_est, 32 * 1024 * 1024), 96 * 1024 * 1024))

    flops = 2 * Bp * Npp * (C * 64 + 64 * 128 + 128 * 256 + 256 * D)
    bytes_accessed = int(x.size) * x.dtype.itemsize + weight_bytes + Bp * D * 4
    cost = pl.CostEstimate(flops=int(flops), transcendentals=4 * Bp * Npp,
                           bytes_accessed=int(bytes_accessed))

    kernel = functools.partial(_pc_encoder_kernel, n_valid=N,
                               need_mask=(Npp != N), act_dtype=act_dtype)

    out = pl.pallas_call(
        kernel,
        out_shape=jax.ShapeDtypeStruct((Bp, D), jnp.float32),
        grid=grid,
        in_specs=[pl.BlockSpec((tb, tn, C), lambda bi, pi: (bi, pi, 0))]
                 + [_const_spec(w) for w in weights],
        out_specs=pl.BlockSpec((tb, D), lambda bi, pi: (bi, 0)),
        scratch_shapes=[pltpu.VMEM((tb, D), jnp.float32)],
        compiler_params=pltpu.CompilerParams(
            dimension_semantics=("parallel", "arbitrary"),
            vmem_limit_bytes=vmem_limit),
        cost_estimate=cost,
    )(x, *weights)
    return out[:B]                                # (B, D)


def ref_forward(x, params):
    """Pure-JAX (f32) reference identical to the PyTorch forward."""
    h = x
    for i in (1, 2, 3, 4):
        h = h @ params[f"w{i}"] + params[f"b{i}"]
        mu = h.mean(-1, keepdims=True)
        var = ((h - mu) ** 2).mean(-1, keepdims=True)
        h = (h - mu) / jnp.sqrt(var + EPS) * params[f"g{i}"] + params[f"be{i}"]
        h = jnp.maximum(h, 0.0)
    return h.max(axis=1)


if __name__ == "__main__":
    key = jax.random.PRNGKey(0)
    k_param, k_x = jax.random.split(key)

    # Small shapes consistent with the module (C=3 point clouds).
    B, N, C, D = 16, 8, 3, 256
    params = init_params(k_param, channels=C, output_dim=D)
    x = jax.random.normal(k_x, (B, N, C), dtype=jnp.float32)

    # Run 1: default bf16 path, whole problem in a single grid step (M=128).
    out = jax.block_until_ready(pc_encoder_forward(x, params))
    ref = ref_forward(x, params)
    assert out.shape == (B, D)
    err = float(jnp.max(jnp.abs(out - ref)))
    # bf16 MXU inputs + bf16 LN affine/ReLU (layers 1-3) -> loose tolerance.
    assert jnp.allclose(out, ref, atol=1e-1, rtol=1e-1), f"bf16 mismatch: {err}"

    # Run 2: f32 path exercising the point-tile reduction axis, the running-max
    # accumulator, and padded-point masking (N=20 -> 3 tiles of 8, 4 pad rows).
    B2, N2 = 4, 20
    x2 = jax.random.normal(jax.random.PRNGKey(1), (B2, N2, C), dtype=jnp.float32)
    out2 = jax.block_until_ready(
        pc_encoder_forward(x2, params, use_bf16=False, point_tile=8))
    ref2 = ref_forward(x2, params)
    err2 = float(jnp.max(jnp.abs(out2 - ref2)))
    assert jnp.allclose(out2, ref2, atol=1e-3, rtol=1e-3), f"f32 mismatch: {err2}"

    print("KERNEL_OK")
</pallas_src>

<mosaic_0001>
module attributes {stable_mosaic.version = 11 : i64} {
  func.func @_pc_encoder_kernel(%arg0: i32, %arg1: i32, %arg2: memref<16x8x3xf32, #tpu.memory_space<vmem>>, %arg3: memref<3x64xf32, #tpu.memory_space<vmem>>, %arg4: memref<3x64xf32, #tpu.memory_space<vmem>>, %arg5: memref<64x128xbf16, #tpu.memory_space<vmem>>, %arg6: memref<3x128xf32, #tpu.memory_space<vmem>>, %arg7: memref<128x256xbf16, #tpu.memory_space<vmem>>, %arg8: memref<3x256xf32, #tpu.memory_space<vmem>>, %arg9: memref<256x256xbf16, #tpu.memory_space<vmem>>, %arg10: memref<3x256xf32, #tpu.memory_space<vmem>>, %arg11: memref<16x256xf32, #tpu.memory_space<vmem>>, %arg12: memref<16x256xf32, #tpu.memory_space<vmem>>) attributes {dimension_semantics = [#tpu.dimension_semantics<parallel>, #tpu.dimension_semantics<arbitrary>], iteration_bounds = array<i64: 1, 1>, scalar_prefetch = 0 : i64, scratch_operands = 1 : i64, tpu.core_type = #tpu.core_type<tc>, window_params = [{transform_indices = @transform_0, window_bounds = array<i64: 16, 8, 3>}, {pipeline_mode = #tpu.pipeline_mode<synchronous>, transform_indices = @transform_1, window_bounds = array<i64: 3, 64>}, {pipeline_mode = #tpu.pipeline_mode<synchronous>, transform_indices = @transform_2, window_bounds = array<i64: 3, 64>}, {pipeline_mode = #tpu.pipeline_mode<synchronous>, transform_indices = @transform_3, window_bounds = array<i64: 64, 128>}, {pipeline_mode = #tpu.pipeline_mode<synchronous>, transform_indices = @transform_4, window_bounds = array<i64: 3, 128>}, {pipeline_mode = #tpu.pipeline_mode<synchronous>, transform_indices = @transform_5, window_bounds = array<i64: 128, 256>}, {pipeline_mode = #tpu.pipeline_mode<synchronous>, transform_indices = @transform_6, window_bounds = array<i64: 3, 256>}, {pipeline_mode = #tpu.pipeline_mode<synchronous>, transform_indices = @transform_7, window_bounds = array<i64: 256, 256>}, {pipeline_mode = #tpu.pipeline_mode<synchronous>, transform_indices = @transform_8, window_bounds = array<i64: 3, 256>}, {transform_indices = @transform_9, window_bounds = array<i64: 16, 256>}]} {
    %c0 = arith.constant 0 : index
    %c0_0 = arith.constant 0 : index
    %c0_1 = arith.constant 0 : index
    %0 = vector.load %arg2[%c0, %c0_0, %c0_1] : memref<16x8x3xf32, #tpu.memory_space<vmem>>, vector<16x8x3xf32>
    %1 = vector.shape_cast %0 : vector<16x8x3xf32> to vector<128x3xf32>
    %c0_2 = arith.constant 0 : index
    %c0_3 = arith.constant 0 : index
    %2 = vector.load %arg3[%c0_2, %c0_3] : memref<3x64xf32, #tpu.memory_space<vmem>>, vector<3x64xf32>
    %c0_4 = arith.constant 0 : index
    %c0_5 = arith.constant 0 : index
    %3 = vector.load %arg4[%c0_4, %c0_5] : memref<3x64xf32, #tpu.memory_space<vmem>>, vector<3x64xf32>
    %4 = vector.extract_strided_slice %1 {offsets = [0, 0], sizes = [128, 1], strides = [1, 1]} : vector<128x3xf32> to vector<128x1xf32>
    %5 = vector.extract_strided_slice %2 {offsets = [0, 0], sizes = [1, 64], strides = [1, 1]} : vector<3x64xf32> to vector<1x64xf32>
    %6 = vector.broadcast %4 : vector<128x1xf32> to vector<128x64xf32>
    %7 = vector.broadcast %5 : vector<1x64xf32> to vector<128x64xf32>
    %8 = arith.mulf %6, %7 : vector<128x64xf32>
    %9 = vector.extract_strided_slice %1 {offsets = [0, 1], sizes = [128, 1], strides = [1, 1]} : vector<128x3xf32> to vector<128x1xf32>
    %10 = vector.extract_strided_slice %2 {offsets = [1, 0], sizes = [1, 64], strides = [1, 1]} : vector<3x64xf32> to vector<1x64xf32>
    %11 = vector.broadcast %9 : vector<128x1xf32> to vector<128x64xf32>
    %12 = vector.broadcast %10 : vector<1x64xf32> to vector<128x64xf32>
    %13 = arith.mulf %11, %12 : vector<128x64xf32>
    %14 = arith.addf %8, %13 : vector<128x64xf32>
    %15 = vector.extract_strided_slice %1 {offsets = [0, 2], sizes = [128, 1], strides = [1, 1]} : vector<128x3xf32> to vector<128x1xf32>
    %16 = vector.extract_strided_slice %2 {offsets = [2, 0], sizes = [1, 64], strides = [1, 1]} : vector<3x64xf32> to vector<1x64xf32>
    %17 = vector.broadcast %15 : vector<128x1xf32> to vector<128x64xf32>
    %18 = vector.broadcast %16 : vector<1x64xf32> to vector<128x64xf32>
    %19 = arith.mulf %17, %18 : vector<128x64xf32>
    %20 = arith.addf %14, %19 : vector<128x64xf32>
    %21 = vector.extract_strided_slice %3 {offsets = [0, 0], sizes = [1, 64], strides = [1, 1]} : vector<3x64xf32> to vector<1x64xf32>
    %22 = vector.broadcast %21 : vector<1x64xf32> to vector<128x64xf32>
    %23 = arith.addf %20, %22 : vector<128x64xf32>
    %cst = arith.constant dense<0.000000e+00> : vector<128xf32>
    %24 = vector.multi_reduction <add>, %23, %cst [1] : vector<128x64xf32> to vector<128xf32>
    %25 = vector.shape_cast %24 : vector<128xf32> to vector<128x1xf32>
    %cst_6 = arith.constant 6.400000e+01 : f32
    %26 = vector.broadcast %cst_6 : f32 to vector<128x1xf32>
    %27 = arith.divf %25, %26 : vector<128x1xf32>
    %28 = arith.mulf %23, %23 : vector<128x64xf32>
    %cst_7 = arith.constant dense<0.000000e+00> : vector<128xf32>
    %29 = vector.multi_reduction <add>, %28, %cst_7 [1] : vector<128x64xf32> to vector<128xf32>
    %30 = vector.shape_cast %29 : vector<128xf32> to vector<128x1xf32>
    %cst_8 = arith.constant 6.400000e+01 : f32
    %31 = vector.broadcast %cst_8 : f32 to vector<128x1xf32>
    %32 = arith.divf %30, %31 : vector<128x1xf32>
    %33 = arith.mulf %27, %27 : vector<128x1xf32>
    %34 = arith.subf %32, %33 : vector<128x1xf32>
    %cst_9 = arith.constant 0.000000e+00 : f32
    %35 = vector.broadcast %cst_9 : f32 to vector<128x1xf32>
    %36 = arith.maximumf %34, %35 : vector<128x1xf32>
    %37 = vector.broadcast %27 : vector<128x1xf32> to vector<128x64xf32>
    %38 = arith.subf %23, %37 : vector<128x64xf32>
    %cst_10 = arith.constant 9.99999974E-6 : f32
    %39 = vector.broadcast %cst_10 : f32 to vector<128x1xf32>
    %40 = arith.addf %36, %39 : vector<128x1xf32>
    %41 = math.rsqrt %40 : vector<128x1xf32>
    %42 = vector.broadcast %41 : vector<128x1xf32> to vector<128x64xf32>
    %43 = arith.mulf %38, %42 : vector<128x64xf32>
    %44 = vector.extract_strided_slice %3 {offsets = [1, 0], sizes = [1, 64], strides = [1, 1]} : vector<3x64xf32> to vector<1x64xf32>
    %45 = vector.extract_strided_slice %3 {offsets = [2, 0], sizes = [1, 64], strides = [1, 1]} : vector<3x64xf32> to vector<1x64xf32>
    %46 = arith.truncf %43 : vector<128x64xf32> to vector<128x64xbf16>
    %47 = arith.truncf %44 : vector<1x64xf32> to vector<1x64xbf16>
    %48 = arith.truncf %45 : vector<1x64xf32> to vector<1x64xbf16>
    %49 = vector.broadcast %47 : vector<1x64xbf16> to vector<128x64xbf16>
    %50 = arith.mulf %46, %49 : vector<128x64xbf16>
    %51 = vector.broadcast %48 : vector<1x64xbf16> to vector<128x64xbf16>
    %52 = arith.addf %50, %51 : vector<128x64xbf16>
    %cst_11 = arith.constant 0.000000e+00 : bf16
    %53 = vector.broadcast %cst_11 : bf16 to vector<128x64xbf16>
    %54 = arith.maximumf %52, %53 : vector<128x64xbf16>
    %c0_12 = arith.constant 0 : index
    %c0_13 = arith.constant 0 : index
    %55 = vector.load %arg5[%c0_12, %c0_13] : memref<64x128xbf16, #tpu.memory_space<vmem>>, vector<64x128xbf16>
    %c0_14 = arith.constant 0 : index
    %c0_15 = arith.constant 0 : index
    %56 = vector.load %arg6[%c0_14, %c0_15] : memref<3x128xf32, #tpu.memory_space<vmem>>, vector<3x128xf32>
    %cst_16 = arith.constant dense<0.000000e+00> : vector<128x128xf32>
    %57 = tpu.matmul %54, %55, %cst_16 {dimension_numbers = #tpu.dot_dimension_numbers<[1], [0], [0], [1], [0, 0, 1, 1], [], []>} : vector<128x64xbf16>, vector<64x128xbf16>, vector<128x128xf32> -> vector<128x128xf32>
    %58 = vector.extract_strided_slice %56 {offsets = [0, 0], sizes = [1, 128], strides = [1, 1]} : vector<3x128xf32> to vector<1x128xf32>
    %59 = vector.broadcast %58 : vector<1x128xf32> to vector<128x128xf32>
    %60 = arith.addf %57, %59 : vector<128x128xf32>
    %cst_17 = arith.constant dense<0.000000e+00> : vector<128xf32>
    %61 = vector.multi_reduction <add>, %60, %cst_17 [1] : vector<128x128xf32> to vector<128xf32>
    %62 = vector.shape_cast %61 : vector<128xf32> to vector<128x1xf32>
    %cst_18 = arith.constant 1.280000e+02 : f32
    %63 = vector.broadcast %cst_18 : f32 to vector<128x1xf32>
    %64 = arith.divf %62, %63 : vector<128x1xf32>
    %65 = arith.mulf %60, %60 : vector<128x128xf32>
    %cst_19 = arith.constant dense<0.000000e+00> : vector<128xf32>
    %66 = vector.multi_reduction <add>, %65, %cst_19 [1] : vector<128x128xf32> to vector<128xf32>
    %67 = vector.shape_cast %66 : vector<128xf32> to vector<128x1xf32>
    %cst_20 = arith.constant 1.280000e+02 : f32
    %68 = vector.broadcast %cst_20 : f32 to vector<128x1xf32>
    %69 = arith.divf %67, %68 : vector<128x1xf32>
    %70 = arith.mulf %64, %64 : vector<128x1xf32>
    %71 = arith.subf %69, %70 : vector<128x1xf32>
    %cst_21 = arith.constant 0.000000e+00 : f32
    %72 = vector.broadcast %cst_21 : f32 to vector<128x1xf32>
    %73 = arith.maximumf %71, %72 : vector<128x1xf32>
    %74 = vector.broadcast %64 : vector<128x1xf32> to vector<128x128xf32>
    %75 = arith.subf %60, %74 : vector<128x128xf32>
    %cst_22 = arith.constant 9.99999974E-6 : f32
    %76 = vector.broadcast %cst_22 : f32 to vector<128x1xf32>
    %77 = arith.addf %73, %76 : vector<128x1xf32>
    %78 = math.rsqrt %77 : vector<128x1xf32>
    %79 = vector.broadcast %78 : vector<128x1xf32> to vector<128x128xf32>
    %80 = arith.mulf %75, %79 : vector<128x128xf32>
    %81 = vector.extract_strided_slice %56 {offsets = [1, 0], sizes = [1, 128], strides = [1, 1]} : vector<3x128xf32> to vector<1x128xf32>
    %82 = vector.extract_strided_slice %56 {offsets = [2, 0], sizes = [1, 128], strides = [1, 1]} : vector<3x128xf32> to vector<1x128xf32>
    %83 = arith.truncf %80 : vector<128x128xf32> to vector<128x128xbf16>
    %84 = arith.truncf %81 : vector<1x128xf32> to vector<1x128xbf16>
    %85 = arith.truncf %82 : vector<1x128xf32> to vector<1x128xbf16>
    %86 = vector.broadcast %84 : vector<1x128xbf16> to vector<128x128xbf16>
    %87 = arith.mulf %83, %86 : vector<128x128xbf16>
    %88 = vector.broadcast %85 : vector<1x128xbf16> to vector<128x128xbf16>
    %89 = arith.addf %87, %88 : vector<128x128xbf16>
    %cst_23 = arith.constant 0.000000e+00 : bf16
    %90 = vector.broadcast %cst_23 : bf16 to vector<128x128xbf16>
    %91 = arith.maximumf %89, %90 : vector<128x128xbf16>
    %c0_24 = arith.constant 0 : index
    %c0_25 = arith.constant 0 : index
    %92 = vector.load %arg7[%c0_24, %c0_25] : memref<128x256xbf16, #tpu.memory_space<vmem>>, vector<128x256xbf16>
    %c0_26 = arith.constant 0 : index
    %c0_27 = arith.constant 0 : index
    %93 = vector.load %arg8[%c0_26, %c0_27] : memref<3x256xf32, #tpu.memory_space<vmem>>, vector<3x256xf32>
    %cst_28 = arith.constant dense<0.000000e+00> : vector<128x256xf32>
    %94 = tpu.matmul %91, %92, %cst_28 {dimension_numbers = #tpu.dot_dimension_numbers<[1], [0], [0], [1], [0, 0, 1, 1], [], []>} : vector<128x128xbf16>, vector<128x256xbf16>, vector<128x256xf32> -> vector<128x256xf32>
    %95 = vector.extract_strided_slice %93 {offsets = [0, 0], sizes = [1, 256], strides = [1, 1]} : vector<3x256xf32> to vector<1x256xf32>
    %96 = vector.broadcast %95 : vector<1x256xf32> to vector<128x256xf32>
    %97 = arith.addf %94, %96 : vector<128x256xf32>
    %cst_29 = arith.constant dense<0.000000e+00> : vector<128xf32>
    %98 = vector.multi_reduction <add>, %97, %cst_29 [1] : vector<128x256xf32> to vector<128xf32>
    %99 = vector.shape_cast %98 : vector<128xf32> to vector<128x1xf32>
    %cst_30 = arith.constant 2.560000e+02 : f32
    %100 = vector.broadcast %cst_30 : f32 to vector<128x1xf32>
    %101 = arith.divf %99, %100 : vector<128x1xf32>
    %102 = arith.mulf %97, %97 : vector<128x256xf32>
    %cst_31 = arith.constant dense<0.000000e+00> : vector<128xf32>
    %103 = vector.multi_reduction <add>, %102, %cst_31 [1] : vector<128x256xf32> to vector<128xf32>
    %104 = vector.shape_cast %103 : vector<128xf32> to vector<128x1xf32>
    %cst_32 = arith.constant 2.560000e+02 : f32
    %105 = vector.broadcast %cst_32 : f32 to vector<128x1xf32>
    %106 = arith.divf %104, %105 : vector<128x1xf32>
    %107 = arith.mulf %101, %101 : vector<128x1xf32>
    %108 = arith.subf %106, %107 : vector<128x1xf32>
    %cst_33 = arith.constant 0.000000e+00 : f32
    %109 = vector.broadcast %cst_33 : f32 to vector<128x1xf32>
    %110 = arith.maximumf %108, %109 : vector<128x1xf32>
    %111 = vector.broadcast %101 : vector<128x1xf32> to vector<128x256xf32>
    %112 = arith.subf %97, %111 : vector<128x256xf32>
    %cst_34 = arith.constant 9.99999974E-6 : f32
    %113 = vector.broadcast %cst_34 : f32 to vector<128x1xf32>
    %114 = arith.addf %110, %113 : vector<128x1xf32>
    %115 = math.rsqrt %114 : vector<128x1xf32>
    %116 = vector.broadcast %115 : vector<128x1xf32> to vector<128x256xf32>
    %117 = arith.mulf %112, %116 : vector<128x256xf32>
    %118 = vector.extract_strided_slice %93 {offsets = [1, 0], sizes = [1, 256], strides = [1, 1]} : vector<3x256xf32> to vector<1x256xf32>
    %119 = vector.extract_strided_slice %93 {offsets = [2, 0], sizes = [1, 256], strides = [1, 1]} : vector<3x256xf32> to vector<1x256xf32>
    %120 = arith.truncf %117 : vector<128x256xf32> to vector<128x256xbf16>
    %121 = arith.truncf %118 : vector<1x256xf32> to vector<1x256xbf16>
    %122 = arith.truncf %119 : vector<1x256xf32> to vector<1x256xbf16>
    %123 = vector.broadcast %121 : vector<1x256xbf16> to vector<128x256xbf16>
    %124 = arith.mulf %120, %123 : vector<128x256xbf16>
    %125 = vector.broadcast %122 : vector<1x256xbf16> to vector<128x256xbf16>
    %126 = arith.addf %124, %125 : vector<128x256xbf16>
    %cst_35 = arith.constant 0.000000e+00 : bf16
    %127 = vector.broadcast %cst_35 : bf16 to vector<128x256xbf16>
    %128 = arith.maximumf %126, %127 : vector<128x256xbf16>
    %c0_36 = arith.constant 0 : index
    %c0_37 = arith.constant 0 : index
    %129 = vector.load %arg9[%c0_36, %c0_37] : memref<256x256xbf16, #tpu.memory_space<vmem>>, vector<256x256xbf16>
    %c0_38 = arith.constant 0 : index
    %c0_39 = arith.constant 0 : index
    %130 = vector.load %arg10[%c0_38, %c0_39] : memref<3x256xf32, #tpu.memory_space<vmem>>, vector<3x256xf32>
    %cst_40 = arith.constant dense<0.000000e+00> : vector<128x256xf32>
    %131 = tpu.matmul %128, %129, %cst_40 {dimension_numbers = #tpu.dot_dimension_numbers<[1], [0], [0], [1], [0, 0, 1, 1], [], []>} : vector<128x256xbf16>, vector<256x256xbf16>, vector<128x256xf32> -> vector<128x256xf32>
    %132 = vector.extract_strided_slice %130 {offsets = [0, 0], sizes = [1, 256], strides = [1, 1]} : vector<3x256xf32> to vector<1x256xf32>
    %133 = vector.broadcast %132 : vector<1x256xf32> to vector<128x256xf32>
    %134 = arith.addf %131, %133 : vector<128x256xf32>
    %cst_41 = arith.constant dense<0.000000e+00> : vector<128xf32>
    %135 = vector.multi_reduction <add>, %134, %cst_41 [1] : vector<128x256xf32> to vector<128xf32>
    %136 = vector.shape_cast %135 : vector<128xf32> to vector<128x1xf32>
    %cst_42 = arith.constant 2.560000e+02 : f32
    %137 = vector.broadcast %cst_42 : f32 to vector<128x1xf32>
    %138 = arith.divf %136, %137 : vector<128x1xf32>
    %139 = arith.mulf %134, %134 : vector<128x256xf32>
    %cst_43 = arith.constant dense<0.000000e+00> : vector<128xf32>
    %140 = vector.multi_reduction <add>, %139, %cst_43 [1] : vector<128x256xf32> to vector<128xf32>
    %141 = vector.shape_cast %140 : vector<128xf32> to vector<128x1xf32>
    %cst_44 = arith.constant 2.560000e+02 : f32
    %142 = vector.broadcast %cst_44 : f32 to vector<128x1xf32>
    %143 = arith.divf %141, %142 : vector<128x1xf32>
    %144 = arith.mulf %138, %138 : vector<128x1xf32>
    %145 = arith.subf %143, %144 : vector<128x1xf32>
    %cst_45 = arith.constant 0.000000e+00 : f32
    %146 = vector.broadcast %cst_45 : f32 to vector<128x1xf32>
    %147 = arith.maximumf %145, %146 : vector<128x1xf32>
    %148 = vector.broadcast %138 : vector<128x1xf32> to vector<128x256xf32>
    %149 = arith.subf %134, %148 : vector<128x256xf32>
    %cst_46 = arith.constant 9.99999974E-6 : f32
    %150 = vector.broadcast %cst_46 : f32 to vector<128x1xf32>
    %151 = arith.addf %147, %150 : vector<128x1xf32>
    %152 = math.rsqrt %151 : vector<128x1xf32>
    %153 = vector.broadcast %152 : vector<128x1xf32> to vector<128x256xf32>
    %154 = arith.mulf %149, %153 : vector<128x256xf32>
    %155 = vector.extract_strided_slice %130 {offsets = [1, 0], sizes = [1, 256], strides = [1, 1]} : vector<3x256xf32> to vector<1x256xf32>
    %156 = vector.extract_strided_slice %130 {offsets = [2, 0], sizes = [1, 256], strides = [1, 1]} : vector<3x256xf32> to vector<1x256xf32>
    %157 = vector.broadcast %155 : vector<1x256xf32> to vector<128x256xf32>
    %158 = arith.mulf %154, %157 : vector<128x256xf32>
    %159 = vector.broadcast %156 : vector<1x256xf32> to vector<128x256xf32>
    %160 = arith.addf %158, %159 : vector<128x256xf32>
    %cst_47 = arith.constant 0.000000e+00 : f32
    %161 = vector.broadcast %cst_47 : f32 to vector<128x256xf32>
    %162 = arith.maximumf %160, %161 : vector<128x256xf32>
    %163 = vector.shape_cast %162 : vector<128x256xf32> to vector<16x8x256xf32>
    %cst_48 = arith.constant dense<0xFF800000> : vector<16x256xf32>
    %164 = vector.multi_reduction <maximumf>, %163, %cst_48 [1] : vector<16x8x256xf32> to vector<16x256xf32>
    %c0_i32 = arith.constant 0 : i32
    %165 = arith.cmpi eq, %arg1, %c0_i32 : i32
    %166 = arith.extui %165 : i1 to i32
    %c0_i32_49 = arith.constant 0 : i32
    %167 = arith.cmpi ne, %166, %c0_i32_49 : i32
    scf.if %167 {
      %c0_54 = arith.constant 0 : index
      %c0_55 = arith.constant 0 : index
      %174 = vector.load %arg12[%c0_54, %c0_55] : memref<16x256xf32, #tpu.memory_space<vmem>>, vector<16x256xf32>
      tpu.vector_store %arg12[%c0_54, %c0_55], %164 {strides = array<i32>} : memref<16x256xf32, #tpu.memory_space<vmem>>, vector<16x256xf32>,
    } else {
    }
    %c0_i32_50 = arith.constant 0 : i32
    %168 = arith.cmpi sgt, %arg1, %c0_i32_50 : i32
    %169 = arith.extui %168 : i1 to i32
    %c0_i32_51 = arith.constant 0 : i32
    %170 = arith.cmpi ne, %169, %c0_i32_51 : i32
    scf.if %170 {
      %c0_54 = arith.constant 0 : index
      %c0_55 = arith.constant 0 : index
      %174 = vector.load %arg12[%c0_54, %c0_55] : memref<16x256xf32, #tpu.memory_space<vmem>>, vector<16x256xf32>
      %175 = arith.maximumf %174, %164 : vector<16x256xf32>
      %c0_56 = arith.constant 0 : index
      %c0_57 = arith.constant 0 : index
      %176 = vector.load %arg12[%c0_56, %c0_57] : memref<16x256xf32, #tpu.memory_space<vmem>>, vector<16x256xf32>
      tpu.vector_store %arg12[%c0_56, %c0_57], %175 {strides = array<i32>} : memref<16x256xf32, #tpu.memory_space<vmem>>, vector<16x256xf32>,
    } else {
    }
    %c0_i32_52 = arith.constant 0 : i32
    %171 = arith.cmpi eq, %arg1, %c0_i32_52 : i32
    %172 = arith.extui %171 : i1 to i32
    %c0_i32_53 = arith.constant 0 : i32
    %173 = arith.cmpi ne, %172, %c0_i32_53 : i32
    scf.if %173 {
      %c0_54 = arith.constant 0 : index
      %c0_55 = arith.constant 0 : index
      %174 = vector.load %arg12[%c0_54, %c0_55] : memref<16x256xf32, #tpu.memory_space<vmem>>, vector<16x256xf32>
      %c0_56 = arith.constant 0 : index
      %c0_57 = arith.constant 0 : index
      %175 = vector.load %arg11[%c0_56, %c0_57] : memref<16x256xf32, #tpu.memory_space<vmem>>, vector<16x256xf32>
      tpu.vector_store %arg11[%c0_56, %c0_57], %174 {strides = array<i32>} : memref<16x256xf32, #tpu.memory_space<vmem>>, vector<16x256xf32>,
    } else {
    }
    return
  }
  func.func @transform_0(%arg0: i32, %arg1: i32) -> (i32, i32, i32) {
    %c0_i32 = arith.constant 0 : i32
    %c0_i32_0 = arith.constant 0 : i32
    return %arg0, %arg1, %c0_i32 : i32, i32, i32
  }
  func.func @transform_1(%arg0: i32, %arg1: i32) -> (i32, i32) {
    %c0_i32 = arith.constant 0 : i32
    %c0_i32_0 = arith.constant 0 : i32
    %c0_i32_1 = arith.constant 0 : i32
    return %c0_i32, %c0_i32_0 : i32, i32
  }
  func.func @transform_2(%arg0: i32, %arg1: i32) -> (i32, i32) {
    %c0_i32 = arith.constant 0 : i32
    %c0_i32_0 = arith.constant 0 : i32
    %c0_i32_1 = arith.constant 0 : i32
    return %c0_i32, %c0_i32_0 : i32, i32
  }
  func.func @transform_3(%arg0: i32, %arg1: i32) -> (i32, i32) {
    %c0_i32 = arith.constant 0 : i32
    %c0_i32_0 = arith.constant 0 : i32
    %c0_i32_1 = arith.constant 0 : i32
    return %c0_i32, %c0_i32_0 : i32, i32
  }
  func.func @transform_4(%arg0: i32, %arg1: i32) -> (i32, i32) {
    %c0_i32 = arith.constant 0 : i32
    %c0_i32_0 = arith.constant 0 : i32
    %c0_i32_1 = arith.constant 0 : i32
    return %c0_i32, %c0_i32_0 : i32, i32
  }
  func.func @transform_5(%arg0: i32, %arg1: i32) -> (i32, i32) {
    %c0_i32 = arith.constant 0 : i32
    %c0_i32_0 = arith.constant 0 : i32
    %c0_i32_1 = arith.constant 0 : i32
    return %c0_i32, %c0_i32_0 : i32, i32
  }
  func.func @transform_6(%arg0: i32, %arg1: i32) -> (i32, i32) {
    %c0_i32 = arith.constant 0 : i32
    %c0_i32_0 = arith.constant 0 : i32
    %c0_i32_1 = arith.constant 0 : i32
    return %c0_i32, %c0_i32_0 : i32, i32
  }
  func.func @transform_7(%arg0: i32, %arg1: i32) -> (i32, i32) {
    %c0_i32 = arith.constant 0 : i32
    %c0_i32_0 = arith.constant 0 : i32
    %c0_i32_1 = arith.constant 0 : i32
    return %c0_i32, %c0_i32_0 : i32, i32
  }
  func.func @transform_8(%arg0: i32, %arg1: i32) -> (i32, i32) {
    %c0_i32 = arith.constant 0 : i32
    %c0_i32_0 = arith.constant 0 : i32
    %c0_i32_1 = arith.constant 0 : i32
    return %c0_i32, %c0_i32_0 : i32, i32
  }
  func.func @transform_9(%arg0: i32, %arg1: i32) -> (i32, i32) {
    %c0_i32 = arith.constant 0 : i32
    %c0_i32_0 = arith.constant 0 : i32
    return %arg0, %c0_i32 : i32, i32
  }
}

</mosaic_0001>

<llo_original>
// kernel: tpu_custom_call.1
$region0: #{tpu_custom_call.1}
  #allocation0 [shape = 'u32[]', space=smem, size = 0x4, offset = 0x4, fixed_abs, tag = 'smem constant byte address 0x4 - core index']
  #allocation1 [shape = 'u32[72,128]{1,0:T(1,128)}', space=vmem, size = 0x9000, scoped, tag = 'internal scratch']
  #allocation2 [shape = 'f32[16,256]{1,0:T(8,128)}', space=vmem, size = 0x4000, scoped, tag = 'scratch operand']
  %s0 = inlined_call_operand.vmem [shape: f32[16,8,3], index: 0, kind: input, shape index: {}]
  %s1 = inlined_call_operand.vmem [shape: f32[3,64], index: 1, kind: input, shape index: {}]
  %s2 = inlined_call_operand.vmem [shape: f32[3,64], index: 2, kind: input, shape index: {}]
  %s3 = inlined_call_operand.hbm [shape: bf16[64,128], index: 3, kind: input, shape index: {}]
  %s4 = inlined_call_operand.vmem [shape: f32[3,128], index: 4, kind: input, shape index: {}]
  %s5 = inlined_call_operand.vmem [shape: bf16[128,256], index: 5, kind: input, shape index: {}]
  %s6 = inlined_call_operand.vmem [shape: f32[3,256], index: 6, kind: input, shape index: {}]
  %s7 = inlined_call_operand.hbm [shape: bf16[256,256], index: 7, kind: input, shape index: {}]
  %s8 = inlined_call_operand.vmem [shape: f32[3,256], index: 8, kind: input, shape index: {}]
  %s9 = inlined_call_operand.hbm [shape: f32[16,256], index: 9, kind: output, shape index: {}]
  %s10 = sld [smem:[#allocation0]]
  $region66: #{tpu_custom_call.1} parent=0
    _
  %s12 = ssub.s32 1, %s10
  %s13 = scalar_select 0, %s12, %s10
  $region1: #{tpu_custom_call.1} parent=0
    #allocation3 [shape = 'u8[16384]{0}', space=vmem, size = 0x4000, scoped, tag = 'input window, operand 3, single buffered']
    #allocation4 [shape = 's32[1]{0}', space=sflag, size = 0x4, scoped, tag = 'scoped memory for tpu_custom_call.1']
    #allocation5 [shape = 's32[1]{0}', space=sflag, size = 0x4, scoped, tag = 'scoped memory for tpu_custom_call.1']
    #allocation6 [shape = 'u8[131072]{0}', space=vmem, size = 0x20000, scoped, tag = 'input window, operand 7, single buffered']
    #allocation7 [shape = 's32[1]{0}', space=sflag, size = 0x4, scoped, tag = 'scoped memory for tpu_custom_call.1']
    #allocation8 [shape = 'u8[16384]{0}', space=vmem, size = 0x4000, scoped, tag = 'output window, operand 0, single buffered']
    %14 = vsyncpa [#allocation4], 0
    %15 = vsyncpa [#allocation7], 0
    %16 = vsyncpa [#allocation5], 0
    // Predicated region
    $region2: #{tpu_custom_call.1} parent=1 // pred_check
      _
    $region3: #{tpu_custom_call.1} parent=1 // pred_check_branch
      %18 = sbr.rel (0) target = $region5
    $region4: #{tpu_custom_call.1} parent=1 // pred_region
      _
    $region5: #{tpu_custom_call.1} parent=1 // pred_fallthru
      _
    // Predicated region
    $region6: #{tpu_custom_call.1} parent=1 // pred_check
      _
    $region7: #{tpu_custom_call.1} parent=1 // pred_check_branch
      %20 = sbr.rel (0) target = $region9
    $region8: #{tpu_custom_call.1} parent=1 // pred_region
      _
    $region9: #{tpu_custom_call.1} parent=1 // pred_fallthru
      _
    // Predicated region
    $region10: #{tpu_custom_call.1} parent=1 // pred_check
      _
    $region11: #{tpu_custom_call.1} parent=1 // pred_check_branch
      %22 = sbr.rel (0) target = $region13
    $region12: #{tpu_custom_call.1} parent=1 // pred_region
      _
    $region13: #{tpu_custom_call.1} parent=1 // pred_fallthru
      _
    // Predicated region
    $region14: #{tpu_custom_call.1} parent=1 // pred_check
      _
    $region15: #{tpu_custom_call.1} parent=1 // pred_check_branch
      %24 = sbr.rel (0) target = $region17
    $region16: #{tpu_custom_call.1} parent=1 // pred_region
      %26 = vsyncadd [#allocation4], 0
      %s27 = sshll.u32 %s3, 4
      %s28 = int_to_ptr.hbm [resolvable:$true] %s27
      %s29 = sshll.u32 [#allocation3], 4
      %s30 = int_to_ptr.vmem [resolvable:$true] %s29
      %35 = dma.hbm_to_vmem [thread:$0]  %s28, 512, %s30, [#allocation4], 64, 64, 4
    $region17: #{tpu_custom_call.1} parent=1 // pred_fallthru
      _
    // Predicated region
    $region18: #{tpu_custom_call.1} parent=1 // pred_check
      _
    $region19: #{tpu_custom_call.1} parent=1 // pred_check_branch
      %37 = sbr.rel (0) target = $region21
    $region20: #{tpu_custom_call.1} parent=1 // pred_region
      _
    $region21: #{tpu_custom_call.1} parent=1 // pred_fallthru
      _
    // Predicated region
    $region22: #{tpu_custom_call.1} parent=1 // pred_check
      _
    $region23: #{tpu_custom_call.1} parent=1 // pred_check_branch
      %39 = sbr.rel (0) target = $region25
    $region24: #{tpu_custom_call.1} parent=1 // pred_region
      _
    $region25: #{tpu_custom_call.1} parent=1 // pred_fallthru
      _
    // Predicated region
    $region26: #{tpu_custom_call.1} parent=1 // pred_check
      _
    $region27: #{tpu_custom_call.1} parent=1 // pred_check_branch
      %41 = sbr.rel (0) target = $region29
    $region28: #{tpu_custom_call.1} parent=1 // pred_region
      _
    $region29: #{tpu_custom_call.1} parent=1 // pred_fallthru
      _
    // Predicated region
    $region30: #{tpu_custom_call.1} parent=1 // pred_check
      _
    $region31: #{tpu_custom_call.1} parent=1 // pred_check_branch
      %43 = sbr.rel (0) target = $region33
    $region32: #{tpu_custom_call.1} parent=1 // pred_region
      %45 = vsyncadd [#allocation7], 0
      %s46 = sshll.u32 %s7, 4
      %s47 = int_to_ptr.hbm [resolvable:$true] %s46
      %s48 = sshll.u32 [#allocation6], 4
      %s49 = int_to_ptr.vmem [resolvable:$true] %s48
      %54 = dma.hbm_to_vmem [thread:$0]  %s47, 4096, %s49, [#allocation7], 128, 128, 8
    $region33: #{tpu_custom_call.1} parent=1 // pred_fallthru
      _
    // Predicated region
    $region34: #{tpu_custom_call.1} parent=1 // pred_check
      _
    $region35: #{tpu_custom_call.1} parent=1 // pred_check_branch
      %56 = sbr.rel (0) target = $region37
    $region36: #{tpu_custom_call.1} parent=1 // pred_region
      _
    $region37: #{tpu_custom_call.1} parent=1 // pred_fallthru
      _
    // Predicated region
    $region38: #{tpu_custom_call.1} parent=1 // pred_check
      _
    $region39: #{tpu_custom_call.1} parent=1 // pred_check_branch
      %58 = sbr.rel (0) target = $region41
    $region40: #{tpu_custom_call.1} parent=1 // pred_region
      %60 = dma.done [#allocation4], 512
    $region41: #{tpu_custom_call.1} parent=1 // pred_fallthru
      _
    // Predicated region
    $region42: #{tpu_custom_call.1} parent=1 // pred_check
      _
    $region43: #{tpu_custom_call.1} parent=1 // pred_check_branch
      %62 = sbr.rel (0) target = $region45
    $region44: #{tpu_custom_call.1} parent=1 // pred_region
      %64 = dma.done [#allocation7], 4096
    $region45: #{tpu_custom_call.1} parent=1 // pred_fallthru
      _
    %v66 = vld [vmem:[%s0] sm:$0xff]
    %v67 = vld [vmem:[%s0 + $0x8] sm:$0xff]
    %v68 = vld [vmem:[%s0 + $0x10] sm:$0xff]
    %v69 = vld [vmem:[%s0 + $0x18] sm:$0xff]
    %v70 = vld [vmem:[%s0 + $0x20] sm:$0xff]
    %v71 = vld [vmem:[%s0 + $0x28] sm:$0xff]
    %v72 = vld [vmem:[%s0 + $0x30] sm:$0xff]
    %v73 = vld [vmem:[%s0 + $0x38] sm:$0xff]
    %v74 = vld [vmem:[%s0 + $0x40] sm:$0xff]
    %v75 = vld [vmem:[%s0 + $0x48] sm:$0xff]
    %v76 = vld [vmem:[%s0 + $0x50] sm:$0xff]
    %v77 = vld [vmem:[%s0 + $0x58] sm:$0xff]
    %v78 = vld [vmem:[%s0 + $0x60] sm:$0xff]
    %v79 = vld [vmem:[%s0 + $0x68] sm:$0xff]
    %v80 = vld [vmem:[%s0 + $0x70] sm:$0xff]
    %v81 = vld [vmem:[%s0 + $0x78] sm:$0xff]
    %v82 = vld [vmem:[%s1] sm:$0x7]
    %v83 = vld [vmem:[%s2] sm:$0x7]
    %85 = vset.pattern.permute.xlu0 0
    %86 = vperm.xlu0 %85, %v66
    %v87 = vpop.permute.xlu0 %86
    %90 = vset.pattern.permute.xlu0 0
    %91 = vperm.xlu0 %90, %v67
    %v92 = vpop.permute.xlu0 %91
    %95 = vset.pattern.permute.xlu0 0
    %96 = vperm.xlu0 %95, %v68
    %v97 = vpop.permute.xlu0 %96
    %100 = vset.pattern.permute.xlu0 0
    %101 = vperm.xlu0 %100, %v69
    %v102 = vpop.permute.xlu0 %101
    %105 = vset.pattern.permute.xlu0 0
    %106 = vperm.xlu0 %105, %v70
    %v107 = vpop.permute.xlu0 %106
    %110 = vset.pattern.permute.xlu0 0
    %111 = vperm.xlu0 %110, %v71
    %v112 = vpop.permute.xlu0 %111
    %115 = vset.pattern.permute.xlu0 0
    %116 = vperm.xlu0 %115, %v72
    %v117 = vpop.permute.xlu0 %116
    %120 = vset.pattern.permute.xlu0 0
    %121 = vperm.xlu0 %120, %v73
    %v122 = vpop.permute.xlu0 %121
    %125 = vset.pattern.permute.xlu0 0
    %126 = vperm.xlu0 %125, %v74
    %v127 = vpop.permute.xlu0 %126
    %130 = vset.pattern.permute.xlu0 0
    %131 = vperm.xlu0 %130, %v75
    %v132 = vpop.permute.xlu0 %131
    %135 = vset.pattern.permute.xlu0 0
    %136 = vperm.xlu0 %135, %v76
    %v137 = vpop.permute.xlu0 %136
    %140 = vset.pattern.permute.xlu0 0
    %141 = vperm.xlu0 %140, %v77
    %v142 = vpop.permute.xlu0 %141
    %145 = vset.pattern.permute.xlu0 0
    %146 = vperm.xlu0 %145, %v78
    %v147 = vpop.permute.xlu0 %146
    %150 = vset.pattern.permute.xlu0 0
    %151 = vperm.xlu0 %150, %v79
    %v152 = vpop.permute.xlu0 %151
    %155 = vset.pattern.permute.xlu0 0
    %156 = vperm.xlu0 %155, %v80
    %v157 = vpop.permute.xlu0 %156
    %160 = vset.pattern.permute.xlu0 0
    %161 = vperm.xlu0 %160, %v81
    %v162 = vpop.permute.xlu0 %161
    %v164 = vperm.slane %v82, 0
    %v165 = vmul.f32 %v87, %v164
    %v166 = vmul.f32 %v92, %v164
    %v167 = vmul.f32 %v97, %v164
    %v168 = vmul.f32 %v102, %v164
    %v169 = vmul.f32 %v107, %v164
    %v170 = vmul.f32 %v112, %v164
    %v171 = vmul.f32 %v117, %v164
    %v172 = vmul.f32 %v122, %v164
    %v173 = vmul.f32 %v127, %v164
    %v174 = vmul.f32 %v132, %v164
    %v175 = vmul.f32 %v137, %v164
    %v176 = vmul.f32 %v142, %v164
    %v177 = vmul.f32 %v147, %v164
    %v178 = vmul.f32 %v152, %v164
    %v179 = vmul.f32 %v157, %v164
    %v180 = vmul.f32 %v162, %v164
    %181 = vset.pattern.permute.xlu0 1
    %182 = vperm.xlu0 %181, %v66
    %v183 = vpop.permute.xlu0 %182
    %185 = vset.pattern.permute.xlu0 1
    %186 = vperm.xlu0 %185, %v67
    %v187 = vpop.permute.xlu0 %186
    %189 = vset.pattern.permute.xlu0 1
    %190 = vperm.xlu0 %189, %v68
    %v191 = vpop.permute.xlu0 %190
    %193 = vset.pattern.permute.xlu0 1
    %194 = vperm.xlu0 %193, %v69
    %v195 = vpop.permute.xlu0 %194
    %197 = vset.pattern.permute.xlu0 1
    %198 = vperm.xlu0 %197, %v70
    %v199 = vpop.permute.xlu0 %198
    %201 = vset.pattern.permute.xlu0 1
    %202 = vperm.xlu0 %201, %v71
    %v203 = vpop.permute.xlu0 %202
    %205 = vset.pattern.permute.xlu0 1
    %206 = vperm.xlu0 %205, %v72
    %v207 = vpop.permute.xlu0 %206
    %209 = vset.pattern.permute.xlu0 1
    %210 = vperm.xlu0 %209, %v73
    %v211 = vpop.permute.xlu0 %210
    %213 = vset.pattern.permute.xlu0 1
    %214 = vperm.xlu0 %213, %v74
    %v215 = vpop.permute.xlu0 %214
    %217 = vset.pattern.permute.xlu0 1
    %218 = vperm.xlu0 %217, %v75
    %v219 = vpop.permute.xlu0 %218
    %221 = vset.pattern.permute.xlu0 1
    %222 = vperm.xlu0 %221, %v76
    %v223 = vpop.permute.xlu0 %222
    %225 = vset.pattern.permute.xlu0 1
    %226 = vperm.xlu0 %225, %v77
    %v227 = vpop.permute.xlu0 %226
    %229 = vset.pattern.permute.xlu0 1
    %230 = vperm.xlu0 %229, %v78
    %v231 = vpop.permute.xlu0 %230
    %233 = vset.pattern.permute.xlu0 1
    %234 = vperm.xlu0 %233, %v79
    %v235 = vpop.permute.xlu0 %234
    %237 = vset.pattern.permute.xlu0 1
    %238 = vperm.xlu0 %237, %v80
    %v239 = vpop.permute.xlu0 %238
    %241 = vset.pattern.permute.xlu0 1
    %242 = vperm.xlu0 %241, %v81
    %v243 = vpop.permute.xlu0 %242
    %v245 = vperm.slane %v82, 1
    %v246 = vmul.f32 %v183, %v245
    %v247 = vmul.f32 %v187, %v245
    %v248 = vmul.f32 %v191, %v245
    %v249 = vmul.f32 %v195, %v245
    %v250 = vmul.f32 %v199, %v245
    %v251 = vmul.f32 %v203, %v245
    %v252 = vmul.f32 %v207, %v245
    %v253 = vmul.f32 %v211, %v245
    %v254 = vmul.f32 %v215, %v245
    %v255 = vmul.f32 %v219, %v245
    %v256 = vmul.f32 %v223, %v245
    %v257 = vmul.f32 %v227, %v245
    %v258 = vmul.f32 %v231, %v245
    %v259 = vmul.f32 %v235, %v245
    %v260 = vmul.f32 %v239, %v245
    %v261 = vmul.f32 %v243, %v245
    %v262 = vadd.f32 %v165, %v246
    %v263 = vadd.f32 %v166, %v247
    %v264 = vadd.f32 %v167, %v248
    %v265 = vadd.f32 %v168, %v249
    %v266 = vadd.f32 %v169, %v250
    %v267 = vadd.f32 %v170, %v251
    %v268 = vadd.f32 %v171, %v252
    %v269 = vadd.f32 %v172, %v253
    %v270 = vadd.f32 %v173, %v254
    %v271 = vadd.f32 %v174, %v255
    %v272 = vadd.f32 %v175, %v256
    %v273 = vadd.f32 %v176, %v257
    %v274 = vadd.f32 %v177, %v258
    %v275 = vadd.f32 %v178, %v259
    %v276 = vadd.f32 %v179, %v260
    %v277 = vadd.f32 %v180, %v261
    %278 = vset.pattern.permute.xlu0 2
    %279 = vperm.xlu0 %278, %v66
    %v280 = vpop.permute.xlu0 %279
    %282 = vset.pattern.permute.xlu0 2
    %283 = vperm.xlu0 %282, %v67
    %v284 = vpop.permute.xlu0 %283
    %286 = vset.pattern.permute.xlu0 2
    %287 = vperm.xlu0 %286, %v68
    %v288 = vpop.permute.xlu0 %287
    %290 = vset.pattern.permute.xlu0 2
    %291 = vperm.xlu0 %290, %v69
    %v292 = vpop.permute.xlu0 %291
    %294 = vset.pattern.permute.xlu0 2
    %295 = vperm.xlu0 %294, %v70
    %v296 = vpop.permute.xlu0 %295
    %298 = vset.pattern.permute.xlu0 2
    %299 = vperm.xlu0 %298, %v71
    %v300 = vpop.permute.xlu0 %299
    %302 = vset.pattern.permute.xlu0 2
    %303 = vperm.xlu0 %302, %v72
    %v304 = vpop.permute.xlu0 %303
    %306 = vset.pattern.permute.xlu0 2
    %307 = vperm.xlu0 %306, %v73
    %v308 = vpop.permute.xlu0 %307
    %310 = vset.pattern.permute.xlu0 2
    %311 = vperm.xlu0 %310, %v74
    %v312 = vpop.permute.xlu0 %311
    %314 = vset.pattern.permute.xlu0 2
    %315 = vperm.xlu0 %314, %v75
    %v316 = vpop.permute.xlu0 %315
    %318 = vset.pattern.permute.xlu0 2
    %319 = vperm.xlu0 %318, %v76
    %v320 = vpop.permute.xlu0 %319
    %322 = vset.pattern.permute.xlu0 2
    %323 = vperm.xlu0 %322, %v77
    %v324 = vpop.permute.xlu0 %323
    %326 = vset.pattern.permute.xlu0 2
    %327 = vperm.xlu0 %326, %v78
    %v328 = vpop.permute.xlu0 %327
    %330 = vset.pattern.permute.xlu0 2
    %331 = vperm.xlu0 %330, %v79
    %v332 = vpop.permute.xlu0 %331
    %334 = vset.pattern.permute.xlu0 2
    %335 = vperm.xlu0 %334, %v80
    %v336 = vpop.permute.xlu0 %335
    %338 = vset.pattern.permute.xlu0 2
    %339 = vperm.xlu0 %338, %v81
    %v340 = vpop.permute.xlu0 %339
    %v342 = vperm.slane %v82, 2
    %v343 = vmul.f32 %v280, %v342
    %v344 = vmul.f32 %v284, %v342
    %v345 = vmul.f32 %v288, %v342
    %v346 = vmul.f32 %v292, %v342
    %v347 = vmul.f32 %v296, %v342
    %v348 = vmul.f32 %v300, %v342
    %v349 = vmul.f32 %v304, %v342
    %v350 = vmul.f32 %v308, %v342
    %v351 = vmul.f32 %v312, %v342
    %v352 = vmul.f32 %v316, %v342
    %v353 = vmul.f32 %v320, %v342
    %v354 = vmul.f32 %v324, %v342
    %v355 = vmul.f32 %v328, %v342
    %v356 = vmul.f32 %v332, %v342
    %v357 = vmul.f32 %v336, %v342
    %v358 = vmul.f32 %v340, %v342
    %v359 = vadd.f32 %v262, %v343
    %v360 = vadd.f32 %v263, %v344
    %v361 = vadd.f32 %v264, %v345
    %v362 = vadd.f32 %v265, %v346
    %v363 = vadd.f32 %v266, %v347
    %v364 = vadd.f32 %v267, %v348
    %v365 = vadd.f32 %v268, %v349
    %v366 = vadd.f32 %v269, %v350
    %v367 = vadd.f32 %v270, %v351
    %v368 = vadd.f32 %v271, %v352
    %v369 = vadd.f32 %v272, %v353
    %v370 = vadd.f32 %v273, %v354
    %v371 = vadd.f32 %v274, %v355
    %v372 = vadd.f32 %v275, %v356
    %v373 = vadd.f32 %v276, %v357
    %v374 = vadd.f32 %v277, %v358
    %v375 = vperm.slane %v83, 0
    %v376 = vadd.f32 %v359, %v375
    %v377 = vadd.f32 %v360, %v375
    %v378 = vadd.f32 %v361, %v375
    %v379 = vadd.f32 %v362, %v375
    %v380 = vadd.f32 %v363, %v375
    %v381 = vadd.f32 %v364, %v375
    %v382 = vadd.f32 %v365, %v375
    %v383 = vadd.f32 %v366, %v375
    %v384 = vadd.f32 %v367, %v375
    %v385 = vadd.f32 %v368, %v375
    %v386 = vadd.f32 %v369, %v375
    %v387 = vadd.f32 %v370, %v375
    %v388 = vadd.f32 %v371, %v375
    %v389 = vadd.f32 %v372, %v375
    %v390 = vadd.f32 %v373, %v375
    %v391 = vadd.f32 %v374, %v375
    %vm392 = vcmask 523264
    %v393 = vsel %vm392, %v376, 0.0
    %394 = vadd.xlane.f32.xlu0 %v393
    %v395 = vpop.xlane.xlu0 %394
    %v396 = vsel %vm392, %v377, 0.0
    %397 = vadd.xlane.f32.xlu0 %v396
    %v398 = vpop.xlane.xlu0 %397
    %v399 = vsel %vm392, %v378, 0.0
    %400 = vadd.xlane.f32.xlu0 %v399
    %v401 = vpop.xlane.xlu0 %400
    %v402 = vsel %vm392, %v379, 0.0
    %403 = vadd.xlane.f32.xlu0 %v402
    %v404 = vpop.xlane.xlu0 %403
    %v405 = vsel %vm392, %v380, 0.0
    %406 = vadd.xlane.f32.xlu0 %v405
    %v407 = vpop.xlane.xlu0 %406
    %v408 = vsel %vm392, %v381, 0.0
    %409 = vadd.xlane.f32.xlu0 %v408
    %v410 = vpop.xlane.xlu0 %409
    %v411 = vsel %vm392, %v382, 0.0
    %412 = vadd.xlane.f32.xlu0 %v411
    %v413 = vpop.xlane.xlu0 %412
    %v414 = vsel %vm392, %v383, 0.0
    %415 = vadd.xlane.f32.xlu0 %v414
    %v416 = vpop.xlane.xlu0 %415
    %v417 = vsel %vm392, %v384, 0.0
    %418 = vadd.xlane.f32.xlu0 %v417
    %v419 = vpop.xlane.xlu0 %418
    %v420 = vsel %vm392, %v385, 0.0
    %421 = vadd.xlane.f32.xlu0 %v420
    %v422 = vpop.xlane.xlu0 %421
    %v423 = vsel %vm392, %v386, 0.0
    %424 = vadd.xlane.f32.xlu0 %v423
    %v425 = vpop.xlane.xlu0 %424
    %v426 = vsel %vm392, %v387, 0.0
    %427 = vadd.xlane.f32.xlu0 %v426
    %v428 = vpop.xlane.xlu0 %427
    %v429 = vsel %vm392, %v388, 0.0
    %430 = vadd.xlane.f32.xlu0 %v429
    %v431 = vpop.xlane.xlu0 %430
    %v432 = vsel %vm392, %v389, 0.0
    %433 = vadd.xlane.f32.xlu0 %v432
    %v434 = vpop.xlane.xlu0 %433
    %v435 = vsel %vm392, %v390, 0.0
    %436 = vadd.xlane.f32.xlu0 %v435
    %v437 = vpop.xlane.xlu0 %436
    %v438 = vsel %vm392, %v391, 0.0
    %439 = vadd.xlane.f32.xlu0 %v438
    %v440 = vpop.xlane.xlu0 %439
    %v441 = vrcp.pop 64.0
    %v442 = vmul.f32 64.0, %v441
    %v443 = vsub.f32 1.0, %v442
    %v444 = vmul.f32 %v441, %v443
    %v445 = vadd.f32 %v441, %v444
    %vm446 = vweird.f32 %v441
    %v447 = vsel %vm446, %v441, %v445
    %v448 = vmul.f32 %v395, %v447
    %v449 = vmul.f32 %v398, %v447
    %v450 = vmul.f32 %v401, %v447
    %v451 = vmul.f32 %v404, %v447
    %v452 = vmul.f32 %v407, %v447
    %v453 = vmul.f32 %v410, %v447
    %v454 = vmul.f32 %v413, %v447
    %v455 = vmul.f32 %v416, %v447
    %v456 = vmul.f32 %v419, %v447
    %v457 = vmul.f32 %v422, %v447
    %v458 = vmul.f32 %v425, %v447
    %v459 = vmul.f32 %v428, %v447
    %v460 = vmul.f32 %v431, %v447
    %v461 = vmul.f32 %v434, %v447
    %v462 = vmul.f32 %v437, %v447
    %v463 = vmul.f32 %v440, %v447
    %v464 = vmul.f32 %v376, %v376
    %v465 = vmul.f32 %v377, %v377
    %v466 = vmul.f32 %v378, %v378
    %v467 = vmul.f32 %v379, %v379
    %v468 = vmul.f32 %v380, %v380
    %v469 = vmul.f32 %v381, %v381
    %v470 = vmul.f32 %v382, %v382
    %v471 = vmul.f32 %v383, %v383
    %v472 = vmul.f32 %v384, %v384
    %v473 = vmul.f32 %v385, %v385
    %v474 = vmul.f32 %v386, %v386
    %v475 = vmul.f32 %v387, %v387
    %v476 = vmul.f32 %v388, %v388
    %v477 = vmul.f32 %v389, %v389
    %v478 = vmul.f32 %v390, %v390
    %v479 = vmul.f32 %v391, %v391
    %v480 = vsel %vm392, %v464, 0.0
    %481 = vadd.xlane.f32.xlu0 %v480
    %v482 = vpop.xlane.xlu0 %481
    %v483 = vsel %vm392, %v465, 0.0
    %484 = vadd.xlane.f32.xlu0 %v483
    %v485 = vpop.xlane.xlu0 %484
    %v486 = vsel %vm392, %v466, 0.0
    %487 = vadd.xlane.f32.xlu0 %v486
    %v488 = vpop.xlane.xlu0 %487
    %v489 = vsel %vm392, %v467, 0.0
    %490 = vadd.xlane.f32.xlu0 %v489
    %v491 = vpop.xlane.xlu0 %490
    %v492 = vsel %vm392, %v468, 0.0
    %493 = vadd.xlane.f32.xlu0 %v492
    %v494 = vpop.xlane.xlu0 %493
    %v495 = vsel %vm392, %v469, 0.0
    %496 = vadd.xlane.f32.xlu0 %v495
    %v497 = vpop.xlane.xlu0 %496
    %v498 = vsel %vm392, %v470, 0.0
    %499 = vadd.xlane.f32.xlu0 %v498
    %v500 = vpop.xlane.xlu0 %499
    %v501 = vsel %vm392, %v471, 0.0
    %502 = vadd.xlane.f32.xlu0 %v501
    %v503 = vpop.xlane.xlu0 %502
    %v504 = vsel %vm392, %v472, 0.0
    %505 = vadd.xlane.f32.xlu0 %v504
    %v506 = vpop.xlane.xlu0 %505
    %v507 = vsel %vm392, %v473, 0.0
    %508 = vadd.xlane.f32.xlu0 %v507
    %v509 = vpop.xlane.xlu0 %508
    %v510 = vsel %vm392, %v474, 0.0
    %511 = vadd.xlane.f32.xlu0 %v510
    %v512 = vpop.xlane.xlu0 %511
    %v513 = vsel %vm392, %v475, 0.0
    %514 = vadd.xlane.f32.xlu0 %v513
    %v515 = vpop.xlane.xlu0 %514
    %v516 = vsel %vm392, %v476, 0.0
    %517 = vadd.xlane.f32.xlu0 %v516
    %v518 = vpop.xlane.xlu0 %517
    %v519 = vsel %vm392, %v477, 0.0
    %520 = vadd.xlane.f32.xlu0 %v519
    %v521 = vpop.xlane.xlu0 %520
    %v522 = vsel %vm392, %v478, 0.0
    %523 = vadd.xlane.f32.xlu0 %v522
    %v524 = vpop.xlane.xlu0 %523
    %v525 = vsel %vm392, %v479, 0.0
    %526 = vadd.xlane.f32.xlu0 %v525
    %v527 = vpop.xlane.xlu0 %526
    %v528 = vmul.f32 %v482, %v447
    %v529 = vmul.f32 %v485, %v447
    %v530 = vmul.f32 %v488, %v447
    %v531 = vmul.f32 %v491, %v447
    %v532 = vmul.f32 %v494, %v447
    %v533 = vmul.f32 %v497, %v447
    %v534 = vmul.f32 %v500, %v447
    %v535 = vmul.f32 %v503, %v447
    %v536 = vmul.f32 %v506, %v447
    %v537 = vmul.f32 %v509, %v447
    %v538 = vmul.f32 %v512, %v447
    %v539 = vmul.f32 %v515, %v447
    %v540 = vmul.f32 %v518, %v447
    %v541 = vmul.f32 %v521, %v447
    %v542 = vmul.f32 %v524, %v447
    %v543 = vmul.f32 %v527, %v447
    %v544 = vmul.f32 %v448, %v448
    %v545 = vmul.f32 %v449, %v449
    %v546 = vmul.f32 %v450, %v450
    %v547 = vmul.f32 %v451, %v451
    %v548 = vmul.f32 %v452, %v452
    %v549 = vmul.f32 %v453, %v453
    %v550 = vmul.f32 %v454, %v454
    %v551 = vmul.f32 %v455, %v455
    %v552 = vmul.f32 %v456, %v456
    %v553 = vmul.f32 %v457, %v457
    %v554 = vmul.f32 %v458, %v458
    %v555 = vmul.f32 %v459, %v459
    %v556 = vmul.f32 %v460, %v460
    %v557 = vmul.f32 %v461, %v461
    %v558 = vmul.f32 %v462, %v462
    %v559 = vmul.f32 %v463, %v463
    %v560 = vsub.f32 %v528, %v544
    %v561 = vsub.f32 %v529, %v545
    %v562 = vsub.f32 %v530, %v546
    %v563 = vsub.f32 %v531, %v547
    %v564 = vsub.f32 %v532, %v548
    %v565 = vsub.f32 %v533, %v549
    %v566 = vsub.f32 %v534, %v550
    %v567 = vsub.f32 %v535, %v551
    %v568 = vsub.f32 %v536, %v552
    %v569 = vsub.f32 %v537, %v553
    %v570 = vsub.f32 %v538, %v554
    %v571 = vsub.f32 %v539, %v555
    %v572 = vsub.f32 %v540, %v556
    %v573 = vsub.f32 %v541, %v557
    %v574 = vsub.f32 %v542, %v558
    %v575 = vsub.f32 %v543, %v559
    %v576 = vmax.f32 %v560, 0.0
    %v577 = vmax.f32 %v561, 0.0
    %v578 = vmax.f32 %v562, 0.0
    %v579 = vmax.f32 %v563, 0.0
    %v580 = vmax.f32 %v564, 0.0
    %v581 = vmax.f32 %v565, 0.0
    %v582 = vmax.f32 %v566, 0.0
    %v583 = vmax.f32 %v567, 0.0
    %v584 = vmax.f32 %v568, 0.0
    %v585 = vmax.f32 %v569, 0.0
    %v586 = vmax.f32 %v570, 0.0
    %v587 = vmax.f32 %v571, 0.0
    %v588 = vmax.f32 %v572, 0.0
    %v589 = vmax.f32 %v573, 0.0
    %v590 = vmax.f32 %v574, 0.0
    %v591 = vmax.f32 %v575, 0.0
    %v592 = vsub.f32 %v376, %v448
    %v593 = vsub.f32 %v377, %v449
    %v594 = vsub.f32 %v378, %v450
    %v595 = vsub.f32 %v379, %v451
    %v596 = vsub.f32 %v380, %v452
    %v597 = vsub.f32 %v381, %v453
    %v598 = vsub.f32 %v382, %v454
    %v599 = vsub.f32 %v383, %v455
    %v600 = vsub.f32 %v384, %v456
    %v601 = vsub.f32 %v385, %v457
    %v602 = vsub.f32 %v386, %v458
    %v603 = vsub.f32 %v387, %v459
    %v604 = vsub.f32 %v388, %v460
    %v605 = vsub.f32 %v389, %v461
    %v606 = vsub.f32 %v390, %v462
    %v607 = vsub.f32 %v391, %v463
    %v608 = vadd.f32 %v576, 1e-05
    %v609 = vadd.f32 %v577, 1e-05
    %v610 = vadd.f32 %v578, 1e-05
    %v611 = vadd.f32 %v579, 1e-05
    %v612 = vadd.f32 %v580, 1e-05
    %v613 = vadd.f32 %v581, 1e-05
    %v614 = vadd.f32 %v582, 1e-05
    %v615 = vadd.f32 %v583, 1e-05
    %v616 = vadd.f32 %v584, 1e-05
    %v617 = vadd.f32 %v585, 1e-05
    %v618 = vadd.f32 %v586, 1e-05
    %v619 = vadd.f32 %v587, 1e-05
    %v620 = vadd.f32 %v588, 1e-05
    %v621 = vadd.f32 %v589, 1e-05
    %v622 = vadd.f32 %v590, 1e-05
    %v623 = vadd.f32 %v591, 1e-05
    %v624 = vrsqrt.pop %v608
    %v625 = vmul.f32 %v624, %v608
    %v626 = vmul.f32 %v625, %v624
    %v627 = vmul.f32 0.5, %v626
    %v628 = vsub.f32 1.5, %v627
    %v629 = vmul.f32 %v624, %v628
    %vm630 = vweird.f32 %v608
    %vm631 = vweird.f32 %v624
    %vm632 = vmor %vm630, %vm631
    %v633 = vsel %vm632, %v624, %v629
    %v634 = vrsqrt.pop %v609
    %v635 = vmul.f32 %v634, %v609
    %v636 = vmul.f32 %v635, %v634
    %v637 = vmul.f32 0.5, %v636
    %v638 = vsub.f32 1.5, %v637
    %v639 = vmul.f32 %v634, %v638
    %vm640 = vweird.f32 %v609
    %vm641 = vweird.f32 %v634
    %vm642 = vmor %vm640, %vm641
    %v643 = vsel %vm642, %v634, %v639
    %v644 = vrsqrt.pop %v610
    %v645 = vmul.f32 %v644, %v610
    %v646 = vmul.f32 %v645, %v644
    %v647 = vmul.f32 0.5, %v646
    %v648 = vsub.f32 1.5, %v647
    %v649 = vmul.f32 %v644, %v648
    %vm650 = vweird.f32 %v610
    %vm651 = vweird.f32 %v644
    %vm652 = vmor %vm650, %vm651
    %v653 = vsel %vm652, %v644, %v649
    %v654 = vrsqrt.pop %v611
    %v655 = vmul.f32 %v654, %v611
    %v656 = vmul.f32 %v655, %v654
    %v657 = vmul.f32 0.5, %v656
    %v658 = vsub.f32 1.5, %v657
    %v659 = vmul.f32 %v654, %v658
    %vm660 = vweird.f32 %v611
    %vm661 = vweird.f32 %v654
    %vm662 = vmor %vm660, %vm661
    %v663 = vsel %vm662, %v654, %v659
    %v664 = vrsqrt.pop %v612
    %v665 = vmul.f32 %v664, %v612
    %v666 = vmul.f32 %v665, %v664
    %v667 = vmul.f32 0.5, %v666
    %v668 = vsub.f32 1.5, %v667
    %v669 = vmul.f32 %v664, %v668
    %vm670 = vweird.f32 %v612
    %vm671 = vweird.f32 %v664
    %vm672 = vmor %vm670, %vm671
    %v673 = vsel %vm672, %v664, %v669
    %v674 = vrsqrt.pop %v613
    %v675 = vmul.f32 %v674, %v613
    %v676 = vmul.f32 %v675, %v674
    %v677 = vmul.f32 0.5, %v676
    %v678 = vsub.f32 1.5, %v677
    %v679 = vmul.f32 %v674, %v678
    %vm680 = vweird.f32 %v613
    %vm681 = vweird.f32 %v674
    %vm682 = vmor %vm680, %vm681
    %v683 = vsel %vm682, %v674, %v679
    %v684 = vrsqrt.pop %v614
    %v685 = vmul.f32 %v684, %v614
    %v686 = vmul.f32 %v685, %v684
    %v687 = vmul.f32 0.5, %v686
    %v688 = vsub.f32 1.5, %v687
    %v689 = vmul.f32 %v684, %v688
    %vm690 = vweird.f32 %v614
    %vm691 = vweird.f32 %v684
    %vm692 = vmor %vm690, %vm691
    %v693 = vsel %vm692, %v684, %v689
    %v694 = vrsqrt.pop %v615
    %v695 = vmul.f32 %v694, %v615
    %v696 = vmul.f32 %v695, %v694
    %v697 = vmul.f32 0.5, %v696
    %v698 = vsub.f32 1.5, %v697
    %v699 = vmul.f32 %v694, %v698
    %vm700 = vweird.f32 %v615
    %vm701 = vweird.f32 %v694
    %vm702 = vmor %vm700, %vm701
    %v703 = vsel %vm702, %v694, %v699
    %v704 = vrsqrt.pop %v616
    %v705 = vmul.f32 %v704, %v616
    %v706 = vmul.f32 %v705, %v704
    %v707 = vmul.f32 0.5, %v706
    %v708 = vsub.f32 1.5, %v707
    %v709 = vmul.f32 %v704, %v708
    %vm710 = vweird.f32 %v616
    %vm711 = vweird.f32 %v704
    %vm712 = vmor %vm710, %vm711
    %v713 = vsel %vm712, %v704, %v709
    %v714 = vrsqrt.pop %v617
    %v715 = vmul.f32 %v714, %v617
    %v716 = vmul.f32 %v715, %v714
    %v717 = vmul.f32 0.5, %v716
    %v718 = vsub.f32 1.5, %v717
    %v719 = vmul.f32 %v714, %v718
    %vm720 = vweird.f32 %v617
    %vm721 = vweird.f32 %v714
    %vm722 = vmor %vm720, %vm721
    %v723 = vsel %vm722, %v714, %v719
    %v724 = vrsqrt.pop %v618
    %v725 = vmul.f32 %v724, %v618
    %v726 = vmul.f32 %v725, %v724
    %v727 = vmul.f32 0.5, %v726
    %v728 = vsub.f32 1.5, %v727
    %v729 = vmul.f32 %v724, %v728
    %vm730 = vweird.f32 %v618
    %vm731 = vweird.f32 %v724
    %vm732 = vmor %vm730, %vm731
    %v733 = vsel %vm732, %v724, %v729
    %v734 = vrsqrt.pop %v619
    %v735 = vmul.f32 %v734, %v619
    %v736 = vmul.f32 %v735, %v734
    %v737 = vmul.f32 0.5, %v736
    %v738 = vsub.f32 1.5, %v737
    %v739 = vmul.f32 %v734, %v738
    %vm740 = vweird.f32 %v619
    %vm741 = vweird.f32 %v734
    %vm742 = vmor %vm740, %vm741
    %v743 = vsel %vm742, %v734, %v739
    %v744 = vrsqrt.pop %v620
    %v745 = vmul.f32 %v744, %v620
    %v746 = vmul.f32 %v745, %v744
    %v747 = vmul.f32 0.5, %v746
    %v748 = vsub.f32 1.5, %v747
    %v749 = vmul.f32 %v744, %v748
    %vm750 = vweird.f32 %v620
    %vm751 = vweird.f32 %v744
    %vm752 = vmor %vm750, %vm751
    %v753 = vsel %vm752, %v744, %v749
    %v754 = vrsqrt.pop %v621
    %v755 = vmul.f32 %v754, %v621
    %v756 = vmul.f32 %v755, %v754
    %v757 = vmul.f32 0.5, %v756
    %v758 = vsub.f32 1.5, %v757
    %v759 = vmul.f32 %v754, %v758
    %vm760 = vweird.f32 %v621
    %vm761 = vweird.f32 %v754
    %vm762 = vmor %vm760, %vm761
    %v763 = vsel %vm762, %v754, %v759
    %v764 = vrsqrt.pop %v622
    %v765 = vmul.f32 %v764, %v622
    %v766 = vmul.f32 %v765, %v764
    %v767 = vmul.f32 0.5, %v766
    %v768 = vsub.f32 1.5, %v767
    %v769 = vmul.f32 %v764, %v768
    %vm770 = vweird.f32 %v622
    %vm771 = vweird.f32 %v764
    %vm772 = vmor %vm770, %vm771
    %v773 = vsel %vm772, %v764, %v769
    %v774 = vrsqrt.pop %v623
    %v775 = vmul.f32 %v774, %v623
    %v776 = vmul.f32 %v775, %v774
    %v777 = vmul.f32 0.5, %v776
    %v778 = vsub.f32 1.5, %v777
    %v779 = vmul.f32 %v774, %v778
    %vm780 = vweird.f32 %v623
    %vm781 = vweird.f32 %v774
    %vm782 = vmor %vm780, %vm781
    %v783 = vsel %vm782, %v774, %v779
    %v784 = vmul.f32 %v592, %v633
    %v785 = vmul.f32 %v593, %v643
    %v786 = vmul.f32 %v594, %v653
    %v787 = vmul.f32 %v595, %v663
    %v788 = vmul.f32 %v596, %v673
    %v789 = vmul.f32 %v597, %v683
    %v790 = vmul.f32 %v598, %v693
    %v791 = vmul.f32 %v599, %v703
    %v792 = vmul.f32 %v600, %v713
    %v793 = vmul.f32 %v601, %v723
    %v794 = vmul.f32 %v602, %v733
    %v795 = vmul.f32 %v603, %v743
    %v796 = vmul.f32 %v604, %v753
    %v797 = vmul.f32 %v605, %v763
    %v798 = vmul.f32 %v606, %v773
    %v799 = vmul.f32 %v607, %v783
    %v800 = vpack.c.bf16 %v784, %v784
    %v801 = vpack.c.bf16 %v785, %v785
    %v802 = vpack.c.bf16 %v786, %v786
    %v803 = vpack.c.bf16 %v787, %v787
    %v804 = vpack.c.bf16 %v788, %v788
    %v805 = vpack.c.bf16 %v789, %v789
    %v806 = vpack.c.bf16 %v790, %v790
    %v807 = vpack.c.bf16 %v791, %v791
    %v808 = vpack.c.bf16 %v792, %v792
    %v809 = vpack.c.bf16 %v793, %v793
    %v810 = vpack.c.bf16 %v794, %v794
    %v811 = vpack.c.bf16 %v795, %v795
    %v812 = vpack.c.bf16 %v796, %v796
    %v813 = vpack.c.bf16 %v797, %v797
    %v814 = vpack.c.bf16 %v798, %v798
    %v815 = vpack.c.bf16 %v799, %v799
    %v816 = vpack.c.bf16 %v83, %v83
    %v818 = vshrl.u32 %v816, 16
    %v819 = vpack.i.b16 %v818, %v818
    %v821 = vperm.slane %v819, 0
    %v822 = vunpack.c.l.bf16 %v800
    %v823 = vunpack.c.l.bf16 %v801
    %v824 = vunpack.c.l.bf16 %v802
    %v825 = vunpack.c.l.bf16 %v803
    %v826 = vunpack.c.l.bf16 %v804
    %v827 = vunpack.c.l.bf16 %v805
    %v828 = vunpack.c.l.bf16 %v806
    %v829 = vunpack.c.l.bf16 %v807
    %v830 = vunpack.c.l.bf16 %v808
    %v831 = vunpack.c.l.bf16 %v809
    %v832 = vunpack.c.l.bf16 %v810
    %v833 = vunpack.c.l.bf16 %v811
    %v834 = vunpack.c.l.bf16 %v812
    %v835 = vunpack.c.l.bf16 %v813
    %v836 = vunpack.c.l.bf16 %v814
    %v837 = vunpack.c.l.bf16 %v815
    %v838 = vunpack.c.l.bf16 %v821
    %v839 = vmul.f32 %v822, %v838
    %v840 = vmul.f32 %v823, %v838
    %v841 = vmul.f32 %v824, %v838
    %v842 = vmul.f32 %v825, %v838
    %v843 = vmul.f32 %v826, %v838
    %v844 = vmul.f32 %v827, %v838
    %v845 = vmul.f32 %v828, %v838
    %v846 = vmul.f32 %v829, %v838
    %v847 = vmul.f32 %v830, %v838
    %v848 = vmul.f32 %v831, %v838
    %v849 = vmul.f32 %v832, %v838
    %v850 = vmul.f32 %v833, %v838
    %v851 = vmul.f32 %v834, %v838
    %v852 = vmul.f32 %v835, %v838
    %v853 = vmul.f32 %v836, %v838
    %v854 = vmul.f32 %v837, %v838
    %v855 = vpack.c.bf16 %v839, %v839
    %v856 = vpack.c.bf16 %v840, %v840
    %v857 = vpack.c.bf16 %v841, %v841
    %v858 = vpack.c.bf16 %v842, %v842
    %v859 = vpack.c.bf16 %v843, %v843
    %v860 = vpack.c.bf16 %v844, %v844
    %v861 = vpack.c.bf16 %v845, %v845
    %v862 = vpack.c.bf16 %v846, %v846
    %v863 = vpack.c.bf16 %v847, %v847
    %v864 = vpack.c.bf16 %v848, %v848
    %v865 = vpack.c.bf16 %v849, %v849
    %v866 = vpack.c.bf16 %v850, %v850
    %v867 = vpack.c.bf16 %v851, %v851
    %v868 = vpack.c.bf16 %v852, %v852
    %v869 = vpack.c.bf16 %v853, %v853
    %v870 = vpack.c.bf16 %v854, %v854
    %v871 = vpack.i.b16 %v816, %v816
    %v873 = vperm.slane %v871, 1
    %v874 = vunpack.c.l.bf16 %v855
    %v875 = vunpack.c.l.bf16 %v856
    %v876 = vunpack.c.l.bf16 %v857
    %v877 = vunpack.c.l.bf16 %v858
    %v878 = vunpack.c.l.bf16 %v859
    %v879 = vunpack.c.l.bf16 %v860
    %v880 = vunpack.c.l.bf16 %v861
    %v881 = vunpack.c.l.bf16 %v862
    %v882 = vunpack.c.l.bf16 %v863
    %v883 = vunpack.c.l.bf16 %v864
    %v884 = vunpack.c.l.bf16 %v865
    %v885 = vunpack.c.l.bf16 %v866
    %v886 = vunpack.c.l.bf16 %v867
    %v887 = vunpack.c.l.bf16 %v868
    %v888 = vunpack.c.l.bf16 %v869
    %v889 = vunpack.c.l.bf16 %v870
    %v890 = vunpack.c.l.bf16 %v873
    %v891 = vadd.f32 %v874, %v890
    %v892 = vadd.f32 %v875, %v890
    %v893 = vadd.f32 %v876, %v890
    %v894 = vadd.f32 %v877, %v890
    %v895 = vadd.f32 %v878, %v890
    %v896 = vadd.f32 %v879, %v890
    %v897 = vadd.f32 %v880, %v890
    %v898 = vadd.f32 %v881, %v890
    %v899 = vadd.f32 %v882, %v890
    %v900 = vadd.f32 %v883, %v890
    %v901 = vadd.f32 %v884, %v890
    %v902 = vadd.f32 %v885, %v890
    %v903 = vadd.f32 %v886, %v890
    %v904 = vadd.f32 %v887, %v890
    %v905 = vadd.f32 %v888, %v890
    %v906 = vadd.f32 %v889, %v890
    %v907 = vpack.c.bf16 %v891, %v891
    %v908 = vpack.c.bf16 %v892, %v892
    %v909 = vpack.c.bf16 %v893, %v893
    %v910 = vpack.c.bf16 %v894, %v894
    %v911 = vpack.c.bf16 %v895, %v895
    %v912 = vpack.c.bf16 %v896, %v896
    %v913 = vpack.c.bf16 %v897, %v897
    %v914 = vpack.c.bf16 %v898, %v898
    %v915 = vpack.c.bf16 %v899, %v899
    %v916 = vpack.c.bf16 %v900, %v900
    %v917 = vpack.c.bf16 %v901, %v901
    %v918 = vpack.c.bf16 %v902, %v902
    %v919 = vpack.c.bf16 %v903, %v903
    %v920 = vpack.c.bf16 %v904, %v904
    %v921 = vpack.c.bf16 %v905, %v905
    %v922 = vpack.c.bf16 %v906, %v906
    %v923 = vunpack.c.l.bf16 %v907
    %v924 = vunpack.c.l.bf16 %v908
    %v925 = vunpack.c.l.bf16 %v909
    %v926 = vunpack.c.l.bf16 %v910
    %v927 = vunpack.c.l.bf16 %v911
    %v928 = vunpack.c.l.bf16 %v912
    %v929 = vunpack.c.l.bf16 %v913
    %v930 = vunpack.c.l.bf16 %v914
    %v931 = vunpack.c.l.bf16 %v915
    %v932 = vunpack.c.l.bf16 %v916
    %v933 = vunpack.c.l.bf16 %v917
    %v934 = vunpack.c.l.bf16 %v918
    %v935 = vunpack.c.l.bf16 %v919
    %v936 = vunpack.c.l.bf16 %v920
    %v937 = vunpack.c.l.bf16 %v921
    %v938 = vunpack.c.l.bf16 %v922
    %v939 = vmax.f32 %v923, 0.0
    %v940 = vmax.f32 %v924, 0.0
    %v941 = vmax.f32 %v925, 0.0
    %v942 = vmax.f32 %v926, 0.0
    %v943 = vmax.f32 %v927, 0.0
    %v944 = vmax.f32 %v928, 0.0
    %v945 = vmax.f32 %v929, 0.0
    %v946 = vmax.f32 %v930, 0.0
    %v947 = vmax.f32 %v931, 0.0
    %v948 = vmax.f32 %v932, 0.0
    %v949 = vmax.f32 %v933, 0.0
    %v950 = vmax.f32 %v934, 0.0
    %v951 = vmax.f32 %v935, 0.0
    %v952 = vmax.f32 %v936, 0.0
    %v953 = vmax.f32 %v937, 0.0
    %v954 = vmax.f32 %v938, 0.0
    %v955 = vpack.c.bf16 %v940, %v939
    %v956 = vpack.c.bf16 %v942, %v941
    %v957 = vpack.c.bf16 %v944, %v943
    %v958 = vpack.c.bf16 %v946, %v945
    %v959 = vpack.c.bf16 %v948, %v947
    %v960 = vpack.c.bf16 %v950, %v949
    %v961 = vpack.c.bf16 %v952, %v951
    %v962 = vpack.c.bf16 %v954, %v953
    %v963 = vld [vmem:[#allocation3] sm:$0xf]
    %v964 = vld [vmem:[#allocation3 + $0x4] sm:$0xf]
    %v965 = vld [vmem:[#allocation3 + $0x8] sm:$0xf]
    %v966 = vld [vmem:[#allocation3 + $0xc] sm:$0xf]
    %v967 = vld [vmem:[#allocation3 + $0x10] sm:$0xf]
    %v968 = vld [vmem:[#allocation3 + $0x14] sm:$0xf]
    %v969 = vld [vmem:[#allocation3 + $0x18] sm:$0xf]
    %v970 = vld [vmem:[#allocation3 + $0x1c] sm:$0xf]
    %v971 = vld [vmem:[%s4] sm:$0x7]
    %v972 = vperm.slane %v971, 0
    %v981 = vunpack.c.l.b16 %v963
    %v982 = vunpack.c.l.b16 %v964
    %v983 = vunpack.c.l.b16 %v965
    %v984 = vunpack.c.l.b16 %v966
    %v985 = vunpack.c.l.b16 %v967
    %v986 = vunpack.c.l.b16 %v968
    %v987 = vunpack.c.l.b16 %v969
    %v988 = vunpack.c.l.b16 %v970
    %v989 = vpack.c.b16 %v982, %v981
    %v990 = vpack.c.b16 %v984, %v983
    %v991 = vpack.c.b16 %v986, %v985
    %v992 = vpack.c.b16 %v988, %v987
    %v998 = vsel %vm392, %v955, 0
    %v1001 = vsel %vm392, %v956, 0
    %v1004 = vsel %vm392, %v957, 0
    %v1007 = vsel %vm392, %v958, 0
    %v1010 = vsel %vm392, %v959, 0
    %v1013 = vsel %vm392, %v960, 0
    %v1016 = vsel %vm392, %v961, 0
    %v1019 = vsel %vm392, %v962, 0
    %1021 = vmatpush.bf16.msra.mxu0 0
    %1022 = vmatpush.bf16.msra.mxu0 0
    %1023 = vmatpush.bf16.msra.mxu0 0
    %1024 = vmatpush.bf16.msra.mxu0 0
    %1025 = vmatpush.bf16.msra.mxu0 %v992
    %1026 = vmatpush.bf16.msra.mxu0 %v991
    %1027 = vmatpush.bf16.msra.mxu0 %v990
    %1028 = vmatpush.bf16.msra.mxu0 %v989
    %1029 = vmatmul.bf16.gmra.mxu0 %v998
    %v1030 = vpop.f32.mrf.mxu0
    %v1031 = vadd.f32 %v972, %v1030
    %v1032 = vpop.f32.mrf.mxu0
    %v1033 = vadd.f32 %v972, %v1032
    %1034 = vmatmul.bf16.gmra.mxu0 %v1001
    %v1035 = vpop.f32.mrf.mxu0
    %v1036 = vadd.f32 %v972, %v1035
    %v1037 = vpop.f32.mrf.mxu0
    %v1038 = vadd.f32 %v972, %v1037
    %1039 = vmatmul.bf16.gmra.mxu0 %v1004
    %v1040 = vpop.f32.mrf.mxu0
    %v1041 = vadd.f32 %v972, %v1040
    %v1042 = vpop.f32.mrf.mxu0
    %v1043 = vadd.f32 %v972, %v1042
    %1044 = vmatmul.bf16.gmra.mxu0 %v1007
    %v1045 = vpop.f32.mrf.mxu0
    %v1046 = vadd.f32 %v972, %v1045
    %v1047 = vpop.f32.mrf.mxu0
    %v1048 = vadd.f32 %v972, %v1047
    %1049 = vmatmul.bf16.gmra.mxu0 %v1010
    %v1050 = vpop.f32.mrf.mxu0
    %v1051 = vadd.f32 %v972, %v1050
    %v1052 = vpop.f32.mrf.mxu0
    %v1053 = vadd.f32 %v972, %v1052
    %1054 = vmatmul.bf16.gmra.mxu0 %v1013
    %v1055 = vpop.f32.mrf.mxu0
    %v1056 = vadd.f32 %v972, %v1055
    %v1057 = vpop.f32.mrf.mxu0
    %v1058 = vadd.f32 %v972, %v1057
    %1059 = vmatmul.bf16.gmra.mxu0 %v1016
    %v1060 = vpop.f32.mrf.mxu0
    %v1061 = vadd.f32 %v972, %v1060
    %v1062 = vpop.f32.mrf.mxu0
    %v1063 = vadd.f32 %v972, %v1062
    %1064 = vmatmul.bf16.gmra.mxu0 %v1019
    %v1065 = vpop.f32.mrf.mxu0
    %v1066 = vadd.f32 %v972, %v1065
    %v1067 = vpop.f32.mrf.mxu0
    %v1068 = vadd.f32 %v972, %v1067
    %1069 = vdwg.mxu0
    %1070 = vadd.xlane.f32.xlu0 %v1031
    %v1071 = vpop.xlane.xlu0 %1070
    %1072 = vadd.xlane.f32.xlu0 %v1033
    %v1073 = vpop.xlane.xlu0 %1072
    %1074 = vadd.xlane.f32.xlu0 %v1036
    %v1075 = vpop.xlane.xlu0 %1074
    %1076 = vadd.xlane.f32.xlu0 %v1038
    %v1077 = vpop.xlane.xlu0 %1076
    %1078 = vadd.xlane.f32.xlu0 %v1041
    %v1079 = vpop.xlane.xlu0 %1078
    %1080 = vadd.xlane.f32.xlu0 %v1043
    %v1081 = vpop.xlane.xlu0 %1080
    %1082 = vadd.xlane.f32.xlu0 %v1046
    %v1083 = vpop.xlane.xlu0 %1082
    %1084 = vadd.xlane.f32.xlu0 %v1048
    %v1085 = vpop.xlane.xlu0 %1084
    %1086 = vadd.xlane.f32.xlu0 %v1051
    %v1087 = vpop.xlane.xlu0 %1086
    %1088 = vadd.xlane.f32.xlu0 %v1053
    %v1089 = vpop.xlane.xlu0 %1088
    %1090 = vadd.xlane.f32.xlu0 %v1056
    %v1091 = vpop.xlane.xlu0 %1090
    %1092 = vadd.xlane.f32.xlu0 %v1058
    %v1093 = vpop.xlane.xlu0 %1092
    %1094 = vadd.xlane.f32.xlu0 %v1061
    %v1095 = vpop.xlane.xlu0 %1094
    %1096 = vadd.xlane.f32.xlu0 %v1063
    %v1097 = vpop.xlane.xlu0 %1096
    %1098 = vadd.xlane.f32.xlu0 %v1066
    %v1099 = vpop.xlane.xlu0 %1098
    %1100 = vadd.xlane.f32.xlu0 %v1068
    %v1101 = vpop.xlane.xlu0 %1100
    %v1102 = vrcp.pop 128.0
    %v1103 = vmul.f32 128.0, %v1102
    %v1104 = vsub.f32 1.0, %v1103
    %v1105 = vmul.f32 %v1102, %v1104
    %v1106 = vadd.f32 %v1102, %v1105
    %vm1107 = vweird.f32 %v1102
    %v1108 = vsel %vm1107, %v1102, %v1106
    %v1109 = vmul.f32 %v1071, %v1108
    %v1110 = vmul.f32 %v1073, %v1108
    %v1111 = vmul.f32 %v1075, %v1108
    %v1112 = vmul.f32 %v1077, %v1108
    %v1113 = vmul.f32 %v1079, %v1108
    %v1114 = vmul.f32 %v1081, %v1108
    %v1115 = vmul.f32 %v1083, %v1108
    %v1116 = vmul.f32 %v1085, %v1108
    %v1117 = vmul.f32 %v1087, %v1108
    %v1118 = vmul.f32 %v1089, %v1108
    %v1119 = vmul.f32 %v1091, %v1108
    %v1120 = vmul.f32 %v1093, %v1108
    %v1121 = vmul.f32 %v1095, %v1108
    %v1122 = vmul.f32 %v1097, %v1108
    %v1123 = vmul.f32 %v1099, %v1108
    %v1124 = vmul.f32 %v1101, %v1108
    %v1125 = vmul.f32 %v1031, %v1031
    %v1126 = vmul.f32 %v1033, %v1033
    %v1127 = vmul.f32 %v1036, %v1036
    %v1128 = vmul.f32 %v1038, %v1038
    %v1129 = vmul.f32 %v1041, %v1041
    %v1130 = vmul.f32 %v1043, %v1043
    %v1131 = vmul.f32 %v1046, %v1046
    %v1132 = vmul.f32 %v1048, %v1048
    %v1133 = vmul.f32 %v1051, %v1051
    %v1134 = vmul.f32 %v1053, %v1053
    %v1135 = vmul.f32 %v1056, %v1056
    %v1136 = vmul.f32 %v1058, %v1058
    %v1137 = vmul.f32 %v1061, %v1061
    %v1138 = vmul.f32 %v1063, %v1063
    %v1139 = vmul.f32 %v1066, %v1066
    %v1140 = vmul.f32 %v1068, %v1068
    %1141 = vadd.xlane.f32.xlu0 %v1125
    %v1142 = vpop.xlane.xlu0 %1141
    %1143 = vadd.xlane.f32.xlu0 %v1126
    %v1144 = vpop.xlane.xlu0 %1143
    %1145 = vadd.xlane.f32.xlu0 %v1127
    %v1146 = vpop.xlane.xlu0 %1145
    %1147 = vadd.xlane.f32.xlu0 %v1128
    %v1148 = vpop.xlane.xlu0 %1147
    %1149 = vadd.xlane.f32.xlu0 %v1129
    %v1150 = vpop.xlane.xlu0 %1149
    %1151 = vadd.xlane.f32.xlu0 %v1130
    %v1152 = vpop.xlane.xlu0 %1151
    %1153 = vadd.xlane.f32.xlu0 %v1131
    %v1154 = vpop.xlane.xlu0 %1153
    %1155 = vadd.xlane.f32.xlu0 %v1132
    %v1156 = vpop.xlane.xlu0 %1155
    %1157 = vadd.xlane.f32.xlu0 %v1133
    %v1158 = vpop.xlane.xlu0 %1157
    %1159 = vadd.xlane.f32.xlu0 %v1134
    %v1160 = vpop.xlane.xlu0 %1159
    %1161 = vadd.xlane.f32.xlu0 %v1135
    %v1162 = vpop.xlane.xlu0 %1161
    %1163 = vadd.xlane.f32.xlu0 %v1136
    %v1164 = vpop.xlane.xlu0 %1163
    %1165 = vadd.xlane.f32.xlu0 %v1137
    %v1166 = vpop.xlane.xlu0 %1165
    %1167 = vadd.xlane.f32.xlu0 %v1138
    %v1168 = vpop.xlane.xlu0 %1167
    %1169 = vadd.xlane.f32.xlu0 %v1139
    %v1170 = vpop.xlane.xlu0 %1169
    %1171 = vadd.xlane.f32.xlu0 %v1140
    %v1172 = vpop.xlane.xlu0 %1171
    %v1173 = vmul.f32 %v1142, %v1108
    %v1174 = vmul.f32 %v1144, %v1108
    %v1175 = vmul.f32 %v1146, %v1108
    %v1176 = vmul.f32 %v1148, %v1108
    %v1177 = vmul.f32 %v1150, %v1108
    %v1178 = vmul.f32 %v1152, %v1108
    %v1179 = vmul.f32 %v1154, %v1108
    %v1180 = vmul.f32 %v1156, %v1108
    %v1181 = vmul.f32 %v1158, %v1108
    %v1182 = vmul.f32 %v1160, %v1108
    %v1183 = vmul.f32 %v1162, %v1108
    %v1184 = vmul.f32 %v1164, %v1108
    %v1185 = vmul.f32 %v1166, %v1108
    %v1186 = vmul.f32 %v1168, %v1108
    %v1187 = vmul.f32 %v1170, %v1108
    %v1188 = vmul.f32 %v1172, %v1108
    %v1189 = vmul.f32 %v1109, %v1109
    %v1190 = vmul.f32 %v1110, %v1110
    %v1191 = vmul.f32 %v1111, %v1111
    %v1192 = vmul.f32 %v1112, %v1112
    %v1193 = vmul.f32 %v1113, %v1113
    %v1194 = vmul.f32 %v1114, %v1114
    %v1195 = vmul.f32 %v1115, %v1115
    %v1196 = vmul.f32 %v1116, %v1116
    %v1197 = vmul.f32 %v1117, %v1117
    %v1198 = vmul.f32 %v1118, %v1118
    %v1199 = vmul.f32 %v1119, %v1119
    %v1200 = vmul.f32 %v1120, %v1120
    %v1201 = vmul.f32 %v1121, %v1121
    %v1202 = vmul.f32 %v1122, %v1122
    %v1203 = vmul.f32 %v1123, %v1123
    %v1204 = vmul.f32 %v1124, %v1124
    %v1205 = vsub.f32 %v1173, %v1189
    %v1206 = vsub.f32 %v1174, %v1190
    %v1207 = vsub.f32 %v1175, %v1191
    %v1208 = vsub.f32 %v1176, %v1192
    %v1209 = vsub.f32 %v1177, %v1193
    %v1210 = vsub.f32 %v1178, %v1194
    %v1211 = vsub.f32 %v1179, %v1195
    %v1212 = vsub.f32 %v1180, %v1196
    %v1213 = vsub.f32 %v1181, %v1197
    %v1214 = vsub.f32 %v1182, %v1198
    %v1215 = vsub.f32 %v1183, %v1199
    %v1216 = vsub.f32 %v1184, %v1200
    %v1217 = vsub.f32 %v1185, %v1201
    %v1218 = vsub.f32 %v1186, %v1202
    %v1219 = vsub.f32 %v1187, %v1203
    %v1220 = vsub.f32 %v1188, %v1204
    %v1221 = vmax.f32 %v1205, 0.0
    %v1222 = vmax.f32 %v1206, 0.0
    %v1223 = vmax.f32 %v1207, 0.0
    %v1224 = vmax.f32 %v1208, 0.0
    %v1225 = vmax.f32 %v1209, 0.0
    %v1226 = vmax.f32 %v1210, 0.0
    %v1227 = vmax.f32 %v1211, 0.0
    %v1228 = vmax.f32 %v1212, 0.0
    %v1229 = vmax.f32 %v1213, 0.0
    %v1230 = vmax.f32 %v1214, 0.0
    %v1231 = vmax.f32 %v1215, 0.0
    %v1232 = vmax.f32 %v1216, 0.0
    %v1233 = vmax.f32 %v1217, 0.0
    %v1234 = vmax.f32 %v1218, 0.0
    %v1235 = vmax.f32 %v1219, 0.0
    %v1236 = vmax.f32 %v1220, 0.0
    %v1237 = vsub.f32 %v1031, %v1109
    %v1238 = vsub.f32 %v1033, %v1110
    %v1239 = vsub.f32 %v1036, %v1111
    %v1240 = vsub.f32 %v1038, %v1112
    %v1241 = vsub.f32 %v1041, %v1113
    %v1242 = vsub.f32 %v1043, %v1114
    %v1243 = vsub.f32 %v1046, %v1115
    %v1244 = vsub.f32 %v1048, %v1116
    %v1245 = vsub.f32 %v1051, %v1117
    %v1246 = vsub.f32 %v1053, %v1118
    %v1247 = vsub.f32 %v1056, %v1119
    %v1248 = vsub.f32 %v1058, %v1120
    %v1249 = vsub.f32 %v1061, %v1121
    %v1250 = vsub.f32 %v1063, %v1122
    %v1251 = vsub.f32 %v1066, %v1123
    %v1252 = vsub.f32 %v1068, %v1124
    %v1253 = vadd.f32 %v1221, 1e-05
    %v1254 = vadd.f32 %v1222, 1e-05
    %v1255 = vadd.f32 %v1223, 1e-05
    %v1256 = vadd.f32 %v1224, 1e-05
    %v1257 = vadd.f32 %v1225, 1e-05
    %v1258 = vadd.f32 %v1226, 1e-05
    %v1259 = vadd.f32 %v1227, 1e-05
    %v1260 = vadd.f32 %v1228, 1e-05
    %v1261 = vadd.f32 %v1229, 1e-05
    %v1262 = vadd.f32 %v1230, 1e-05
    %v1263 = vadd.f32 %v1231, 1e-05
    %v1264 = vadd.f32 %v1232, 1e-05
    %v1265 = vadd.f32 %v1233, 1e-05
    %v1266 = vadd.f32 %v1234, 1e-05
    %v1267 = vadd.f32 %v1235, 1e-05
    %v1268 = vadd.f32 %v1236, 1e-05
    %v1269 = vrsqrt.pop %v1253
    %v1270 = vmul.f32 %v1269, %v1253
    %v1271 = vmul.f32 %v1270, %v1269
    %v1272 = vmul.f32 0.5, %v1271
    %v1273 = vsub.f32 1.5, %v1272
    %v1274 = vmul.f32 %v1269, %v1273
    %vm1275 = vweird.f32 %v1253
    %vm1276 = vweird.f32 %v1269
    %vm1277 = vmor %vm1275, %vm1276
    %v1278 = vsel %vm1277, %v1269, %v1274
    %v1279 = vrsqrt.pop %v1254
    %v1280 = vmul.f32 %v1279, %v1254
    %v1281 = vmul.f32 %v1280, %v1279
    %v1282 = vmul.f32 0.5, %v1281
    %v1283 = vsub.f32 1.5, %v1282
    %v1284 = vmul.f32 %v1279, %v1283
    %vm1285 = vweird.f32 %v1254
    %vm1286 = vweird.f32 %v1279
    %vm1287 = vmor %vm1285, %vm1286
    %v1288 = vsel %vm1287, %v1279, %v1284
    %v1289 = vrsqrt.pop %v1255
    %v1290 = vmul.f32 %v1289, %v1255
    %v1291 = vmul.f32 %v1290, %v1289
    %v1292 = vmul.f32 0.5, %v1291
    %v1293 = vsub.f32 1.5, %v1292
    %v1294 = vmul.f32 %v1289, %v1293
    %vm1295 = vweird.f32 %v1255
    %vm1296 = vweird.f32 %v1289
    %vm1297 = vmor %vm1295, %vm1296
    %v1298 = vsel %vm1297, %v1289, %v1294
    %v1299 = vrsqrt.pop %v1256
    %v1300 = vmul.f32 %v1299, %v1256
    %v1301 = vmul.f32 %v1300, %v1299
    %v1302 = vmul.f32 0.5, %v1301
    %v1303 = vsub.f32 1.5, %v1302
    %v1304 = vmul.f32 %v1299, %v1303
    %vm1305 = vweird.f32 %v1256
    %vm1306 = vweird.f32 %v1299
    %vm1307 = vmor %vm1305, %vm1306
    %v1308 = vsel %vm1307, %v1299, %v1304
    %v1309 = vrsqrt.pop %v1257
    %v1310 = vmul.f32 %v1309, %v1257
    %v1311 = vmul.f32 %v1310, %v1309
    %v1312 = vmul.f32 0.5, %v1311
    %v1313 = vsub.f32 1.5, %v1312
    %v1314 = vmul.f32 %v1309, %v1313
    %vm1315 = vweird.f32 %v1257
    %vm1316 = vweird.f32 %v1309
    %vm1317 = vmor %vm1315, %vm1316
    %v1318 = vsel %vm1317, %v1309, %v1314
    %v1319 = vrsqrt.pop %v1258
    %v1320 = vmul.f32 %v1319, %v1258
    %v1321 = vmul.f32 %v1320, %v1319
    %v1322 = vmul.f32 0.5, %v1321
    %v1323 = vsub.f32 1.5, %v1322
    %v1324 = vmul.f32 %v1319, %v1323
    %vm1325 = vweird.f32 %v1258
    %vm1326 = vweird.f32 %v1319
    %vm1327 = vmor %vm1325, %vm1326
    %v1328 = vsel %vm1327, %v1319, %v1324
    %v1329 = vrsqrt.pop %v1259
    %v1330 = vmul.f32 %v1329, %v1259
    %v1331 = vmul.f32 %v1330, %v1329
    %v1332 = vmul.f32 0.5, %v1331
    %v1333 = vsub.f32 1.5, %v1332
    %v1334 = vmul.f32 %v1329, %v1333
    %vm1335 = vweird.f32 %v1259
    %vm1336 = vweird.f32 %v1329
    %vm1337 = vmor %vm1335, %vm1336
    %v1338 = vsel %vm1337, %v1329, %v1334
    %v1339 = vrsqrt.pop %v1260
    %v1340 = vmul.f32 %v1339, %v1260
    %v1341 = vmul.f32 %v1340, %v1339
    %v1342 = vmul.f32 0.5, %v1341
    %v1343 = vsub.f32 1.5, %v1342
    %v1344 = vmul.f32 %v1339, %v1343
    %vm1345 = vweird.f32 %v1260
    %vm1346 = vweird.f32 %v1339
    %vm1347 = vmor %vm1345, %vm1346
    %v1348 = vsel %vm1347, %v1339, %v1344
    %v1349 = vrsqrt.pop %v1261
    %v1350 = vmul.f32 %v1349, %v1261
    %v1351 = vmul.f32 %v1350, %v1349
    %v1352 = vmul.f32 0.5, %v1351
    %v1353 = vsub.f32 1.5, %v1352
    %v1354 = vmul.f32 %v1349, %v1353
    %vm1355 = vweird.f32 %v1261
    %vm1356 = vweird.f32 %v1349
    %vm1357 = vmor %vm1355, %vm1356
    %v1358 = vsel %vm1357, %v1349, %v1354
    %v1359 = vrsqrt.pop %v1262
    %v1360 = vmul.f32 %v1359, %v1262
    %v1361 = vmul.f32 %v1360, %v1359
    %v1362 = vmul.f32 0.5, %v1361
    %v1363 = vsub.f32 1.5, %v1362
    %v1364 = vmul.f32 %v1359, %v1363
    %vm1365 = vweird.f32 %v1262
    %vm1366 = vweird.f32 %v1359
    %vm1367 = vmor %vm1365, %vm1366
    %v1368 = vsel %vm1367, %v1359, %v1364
    %v1369 = vrsqrt.pop %v1263
    %v1370 = vmul.f32 %v1369, %v1263
    %v1371 = vmul.f32 %v1370, %v1369
    %v1372 = vmul.f32 0.5, %v1371
    %v1373 = vsub.f32 1.5, %v1372
    %v1374 = vmul.f32 %v1369, %v1373
    %vm1375 = vweird.f32 %v1263
    %vm1376 = vweird.f32 %v1369
    %vm1377 = vmor %vm1375, %vm1376
    %v1378 = vsel %vm1377, %v1369, %v1374
    %v1379 = vrsqrt.pop %v1264
    %v1380 = vmul.f32 %v1379, %v1264
    %v1381 = vmul.f32 %v1380, %v1379
    %v1382 = vmul.f32 0.5, %v1381
    %v1383 = vsub.f32 1.5, %v1382
    %v1384 = vmul.f32 %v1379, %v1383
    %vm1385 = vweird.f32 %v1264
    %vm1386 = vweird.f32 %v1379
    %vm1387 = vmor %vm1385, %vm1386
    %v1388 = vsel %vm1387, %v1379, %v1384
    %v1389 = vrsqrt.pop %v1265
    %v1390 = vmul.f32 %v1389, %v1265
    %v1391 = vmul.f32 %v1390, %v1389
    %v1392 = vmul.f32 0.5, %v1391
    %v1393 = vsub.f32 1.5, %v1392
    %v1394 = vmul.f32 %v1389, %v1393
    %vm1395 = vweird.f32 %v1265
    %vm1396 = vweird.f32 %v1389
    %vm1397 = vmor %vm1395, %vm1396
    %v1398 = vsel %vm1397, %v1389, %v1394
    %v1399 = vrsqrt.pop %v1266
    %v1400 = vmul.f32 %v1399, %v1266
    %v1401 = vmul.f32 %v1400, %v1399
    %v1402 = vmul.f32 0.5, %v1401
    %v1403 = vsub.f32 1.5, %v1402
    %v1404 = vmul.f32 %v1399, %v1403
    %vm1405 = vweird.f32 %v1266
    %vm1406 = vweird.f32 %v1399
    %vm1407 = vmor %vm1405, %vm1406
    %v1408 = vsel %vm1407, %v1399, %v1404
    %v1409 = vrsqrt.pop %v1267
    %v1410 = vmul.f32 %v1409, %v1267
    %v1411 = vmul.f32 %v1410, %v1409
    %v1412 = vmul.f32 0.5, %v1411
    %v1413 = vsub.f32 1.5, %v1412
    %v1414 = vmul.f32 %v1409, %v1413
    %vm1415 = vweird.f32 %v1267
    %vm1416 = vweird.f32 %v1409
    %vm1417 = vmor %vm1415, %vm1416
    %v1418 = vsel %vm1417, %v1409, %v1414
    %v1419 = vrsqrt.pop %v1268
    %v1420 = vmul.f32 %v1419, %v1268
    %v1421 = vmul.f32 %v1420, %v1419
    %v1422 = vmul.f32 0.5, %v1421
    %v1423 = vsub.f32 1.5, %v1422
    %v1424 = vmul.f32 %v1419, %v1423
    %vm1425 = vweird.f32 %v1268
    %vm1426 = vweird.f32 %v1419
    %vm1427 = vmor %vm1425, %vm1426
    %v1428 = vsel %vm1427, %v1419, %v1424
    %v1429 = vmul.f32 %v1237, %v1278
    %v1430 = vmul.f32 %v1238, %v1288
    %v1431 = vmul.f32 %v1239, %v1298
    %v1432 = vmul.f32 %v1240, %v1308
    %v1433 = vmul.f32 %v1241, %v1318
    %v1434 = vmul.f32 %v1242, %v1328
    %v1435 = vmul.f32 %v1243, %v1338
    %v1436 = vmul.f32 %v1244, %v1348
    %v1437 = vmul.f32 %v1245, %v1358
    %v1438 = vmul.f32 %v1246, %v1368
    %v1439 = vmul.f32 %v1247, %v1378
    %v1440 = vmul.f32 %v1248, %v1388
    %v1441 = vmul.f32 %v1249, %v1398
    %v1442 = vmul.f32 %v1250, %v1408
    %v1443 = vmul.f32 %v1251, %v1418
    %v1444 = vmul.f32 %v1252, %v1428
    %v1445 = vpack.c.bf16 %v1429, %v1429
    %v1446 = vpack.c.bf16 %v1430, %v1430
    %v1447 = vpack.c.bf16 %v1431, %v1431
    %v1448 = vpack.c.bf16 %v1432, %v1432
    %v1449 = vpack.c.bf16 %v1433, %v1433
    %v1450 = vpack.c.bf16 %v1434, %v1434
    %v1451 = vpack.c.bf16 %v1435, %v1435
    %v1452 = vpack.c.bf16 %v1436, %v1436
    %v1453 = vpack.c.bf16 %v1437, %v1437
    %v1454 = vpack.c.bf16 %v1438, %v1438
    %v1455 = vpack.c.bf16 %v1439, %v1439
    %v1456 = vpack.c.bf16 %v1440, %v1440
    %v1457 = vpack.c.bf16 %v1441, %v1441
    %v1458 = vpack.c.bf16 %v1442, %v1442
    %v1459 = vpack.c.bf16 %v1443, %v1443
    %v1460 = vpack.c.bf16 %v1444, %v1444
    %v1461 = vpack.c.bf16 %v971, %v971
    %v1463 = vshrl.u32 %v1461, 16
    %v1464 = vpack.i.b16 %v1463, %v1463
    %v1466 = vperm.slane %v1464, 0
    %v1467 = vunpack.c.l.bf16 %v1445
    %v1468 = vunpack.c.l.bf16 %v1446
    %v1469 = vunpack.c.l.bf16 %v1447
    %v1470 = vunpack.c.l.bf16 %v1448
    %v1471 = vunpack.c.l.bf16 %v1449
    %v1472 = vunpack.c.l.bf16 %v1450
    %v1473 = vunpack.c.l.bf16 %v1451
    %v1474 = vunpack.c.l.bf16 %v1452
    %v1475 = vunpack.c.l.bf16 %v1453
    %v1476 = vunpack.c.l.bf16 %v1454
    %v1477 = vunpack.c.l.bf16 %v1455
    %v1478 = vunpack.c.l.bf16 %v1456
    %v1479 = vunpack.c.l.bf16 %v1457
    %v1480 = vunpack.c.l.bf16 %v1458
    %v1481 = vunpack.c.l.bf16 %v1459
    %v1482 = vunpack.c.l.bf16 %v1460
    %v1483 = vunpack.c.l.bf16 %v1466
    %v1484 = vmul.f32 %v1467, %v1483
    %v1485 = vmul.f32 %v1468, %v1483
    %v1486 = vmul.f32 %v1469, %v1483
    %v1487 = vmul.f32 %v1470, %v1483
    %v1488 = vmul.f32 %v1471, %v1483
    %v1489 = vmul.f32 %v1472, %v1483
    %v1490 = vmul.f32 %v1473, %v1483
    %v1491 = vmul.f32 %v1474, %v1483
    %v1492 = vmul.f32 %v1475, %v1483
    %v1493 = vmul.f32 %v1476, %v1483
    %v1494 = vmul.f32 %v1477, %v1483
    %v1495 = vmul.f32 %v1478, %v1483
    %v1496 = vmul.f32 %v1479, %v1483
    %v1497 = vmul.f32 %v1480, %v1483
    %v1498 = vmul.f32 %v1481, %v1483
    %v1499 = vmul.f32 %v1482, %v1483
    %v1500 = vpack.c.bf16 %v1484, %v1484
    %v1501 = vpack.c.bf16 %v1485, %v1485
    %v1502 = vpack.c.bf16 %v1486, %v1486
    %v1503 = vpack.c.bf16 %v1487, %v1487
    %v1504 = vpack.c.bf16 %v1488, %v1488
    %v1505 = vpack.c.bf16 %v1489, %v1489
    %v1506 = vpack.c.bf16 %v1490, %v1490
    %v1507 = vpack.c.bf16 %v1491, %v1491
    %v1508 = vpack.c.bf16 %v1492, %v1492
    %v1509 = vpack.c.bf16 %v1493, %v1493
    %v1510 = vpack.c.bf16 %v1494, %v1494
    %v1511 = vpack.c.bf16 %v1495, %v1495
    %v1512 = vpack.c.bf16 %v1496, %v1496
    %v1513 = vpack.c.bf16 %v1497, %v1497
    %v1514 = vpack.c.bf16 %v1498, %v1498
    %v1515 = vpack.c.bf16 %v1499, %v1499
    %v1516 = vpack.i.b16 %v1461, %v1461
    %v1518 = vperm.slane %v1516, 1
    %v1519 = vunpack.c.l.bf16 %v1500
    %v1520 = vunpack.c.l.bf16 %v1501
    %v1521 = vunpack.c.l.bf16 %v1502
    %v1522 = vunpack.c.l.bf16 %v1503
    %v1523 = vunpack.c.l.bf16 %v1504
    %v1524 = vunpack.c.l.bf16 %v1505
    %v1525 = vunpack.c.l.bf16 %v1506
    %v1526 = vunpack.c.l.bf16 %v1507
    %v1527 = vunpack.c.l.bf16 %v1508
    %v1528 = vunpack.c.l.bf16 %v1509
    %v1529 = vunpack.c.l.bf16 %v1510
    %v1530 = vunpack.c.l.bf16 %v1511
    %v1531 = vunpack.c.l.bf16 %v1512
    %v1532 = vunpack.c.l.bf16 %v1513
    %v1533 = vunpack.c.l.bf16 %v1514
    %v1534 = vunpack.c.l.bf16 %v1515
    %v1535 = vunpack.c.l.bf16 %v1518
    %v1536 = vadd.f32 %v1519, %v1535
    %v1537 = vadd.f32 %v1520, %v1535
    %v1538 = vadd.f32 %v1521, %v1535
    %v1539 = vadd.f32 %v1522, %v1535
    %v1540 = vadd.f32 %v1523, %v1535
    %v1541 = vadd.f32 %v1524, %v1535
    %v1542 = vadd.f32 %v1525, %v1535
    %v1543 = vadd.f32 %v1526, %v1535
    %v1544 = vadd.f32 %v1527, %v1535
    %v1545 = vadd.f32 %v1528, %v1535
    %v1546 = vadd.f32 %v1529, %v1535
    %v1547 = vadd.f32 %v1530, %v1535
    %v1548 = vadd.f32 %v1531, %v1535
    %v1549 = vadd.f32 %v1532, %v1535
    %v1550 = vadd.f32 %v1533, %v1535
    %v1551 = vadd.f32 %v1534, %v1535
    %v1552 = vpack.c.bf16 %v1536, %v1536
    %v1553 = vpack.c.bf16 %v1537, %v1537
    %v1554 = vpack.c.bf16 %v1538, %v1538
    %v1555 = vpack.c.bf16 %v1539, %v1539
    %v1556 = vpack.c.bf16 %v1540, %v1540
    %v1557 = vpack.c.bf16 %v1541, %v1541
    %v1558 = vpack.c.bf16 %v1542, %v1542
    %v1559 = vpack.c.bf16 %v1543, %v1543
    %v1560 = vpack.c.bf16 %v1544, %v1544
    %v1561 = vpack.c.bf16 %v1545, %v1545
    %v1562 = vpack.c.bf16 %v1546, %v1546
    %v1563 = vpack.c.bf16 %v1547, %v1547
    %v1564 = vpack.c.bf16 %v1548, %v1548
    %v1565 = vpack.c.bf16 %v1549, %v1549
    %v1566 = vpack.c.bf16 %v1550, %v1550
    %v1567 = vpack.c.bf16 %v1551, %v1551
    %v1568 = vunpack.c.l.bf16 %v1552
    %v1569 = vunpack.c.l.bf16 %v1553
    %v1570 = vunpack.c.l.bf16 %v1554
    %v1571 = vunpack.c.l.bf16 %v1555
    %v1572 = vunpack.c.l.bf16 %v1556
    %v1573 = vunpack.c.l.bf16 %v1557
    %v1574 = vunpack.c.l.bf16 %v1558
    %v1575 = vunpack.c.l.bf16 %v1559
    %v1576 = vunpack.c.l.bf16 %v1560
    %v1577 = vunpack.c.l.bf16 %v1561
    %v1578 = vunpack.c.l.bf16 %v1562
    %v1579 = vunpack.c.l.bf16 %v1563
    %v1580 = vunpack.c.l.bf16 %v1564
    %v1581 = vunpack.c.l.bf16 %v1565
    %v1582 = vunpack.c.l.bf16 %v1566
    %v1583 = vunpack.c.l.bf16 %v1567
    %v1584 = vmax.f32 %v1568, 0.0
    %v1585 = vmax.f32 %v1569, 0.0
    %v1586 = vmax.f32 %v1570, 0.0
    %v1587 = vmax.f32 %v1571, 0.0
    %v1588 = vmax.f32 %v1572, 0.0
    %v1589 = vmax.f32 %v1573, 0.0
    %v1590 = vmax.f32 %v1574, 0.0
    %v1591 = vmax.f32 %v1575, 0.0
    %v1592 = vmax.f32 %v1576, 0.0
    %v1593 = vmax.f32 %v1577, 0.0
    %v1594 = vmax.f32 %v1578, 0.0
    %v1595 = vmax.f32 %v1579, 0.0
    %v1596 = vmax.f32 %v1580, 0.0
    %v1597 = vmax.f32 %v1581, 0.0
    %v1598 = vmax.f32 %v1582, 0.0
    %v1599 = vmax.f32 %v1583, 0.0
    %v1600 = vpack.c.bf16 %v1585, %v1584
    %v1601 = vpack.c.bf16 %v1587, %v1586
    %v1602 = vpack.c.bf16 %v1589, %v1588
    %v1603 = vpack.c.bf16 %v1591, %v1590
    %v1604 = vpack.c.bf16 %v1593, %v1592
    %v1605 = vpack.c.bf16 %v1595, %v1594
    %v1606 = vpack.c.bf16 %v1597, %v1596
    %v1607 = vpack.c.bf16 %v1599, %v1598
    %v1608 = vld [vmem:[%s5] sm:$0xff]
    %v1609 = vld [vmem:[%s5 + $0x8] sm:$0xff]
    %v1610 = vld [vmem:[%s5 + $0x10] sm:$0xff]
    %v1611 = vld [vmem:[%s5 + $0x18] sm:$0xff]
    %v1612 = vld [vmem:[%s5 + $0x20] sm:$0xff]
    %v1613 = vld [vmem:[%s5 + $0x28] sm:$0xff]
    %v1614 = vld [vmem:[%s5 + $0x30] sm:$0xff]
    %v1615 = vld [vmem:[%s5 + $0x38] sm:$0xff]
    %v1616 = vld [vmem:[%s5 + $0x40] sm:$0xff]
    %v1617 = vld [vmem:[%s5 + $0x48] sm:$0xff]
    %v1618 = vld [vmem:[%s5 + $0x50] sm:$0xff]
    %v1619 = vld [vmem:[%s5 + $0x58] sm:$0xff]
    %v1620 = vld [vmem:[%s5 + $0x60] sm:$0xff]
    %v1621 = vld [vmem:[%s5 + $0x68] sm:$0xff]
    %v1622 = vld [vmem:[%s5 + $0x70] sm:$0xff]
    %v1623 = vld [vmem:[%s5 + $0x78] sm:$0xff]
    %v1624 = vld [vmem:[%s6] sm:$0x77]
    %v1626 = vperm.slane %v1624, 0
    %v1627 = vperm.slane %v1624, 4
    %v1630 = vperm.slane %v1626, 0
    %v1631 = vperm.slane %v1627, 0
    %v1648 = vunpack.c.l.b16 %v1608
    %v1649 = vunpack.c.h.b16 %v1608
    %v1650 = vunpack.c.l.b16 %v1609
    %v1651 = vunpack.c.h.b16 %v1609
    %v1652 = vunpack.c.l.b16 %v1610
    %v1653 = vunpack.c.h.b16 %v1610
    %v1654 = vunpack.c.l.b16 %v1611
    %v1655 = vunpack.c.h.b16 %v1611
    %v1656 = vunpack.c.l.b16 %v1612
    %v1657 = vunpack.c.h.b16 %v1612
    %v1658 = vunpack.c.l.b16 %v1613
    %v1659 = vunpack.c.h.b16 %v1613
    %v1660 = vunpack.c.l.b16 %v1614
    %v1661 = vunpack.c.h.b16 %v1614
    %v1662 = vunpack.c.l.b16 %v1615
    %v1663 = vunpack.c.h.b16 %v1615
    %v1664 = vunpack.c.l.b16 %v1616
    %v1665 = vunpack.c.h.b16 %v1616
    %v1666 = vunpack.c.l.b16 %v1617
    %v1667 = vunpack.c.h.b16 %v1617
    %v1668 = vunpack.c.l.b16 %v1618
    %v1669 = vunpack.c.h.b16 %v1618
    %v1670 = vunpack.c.l.b16 %v1619
    %v1671 = vunpack.c.h.b16 %v1619
    %v1672 = vunpack.c.l.b16 %v1620
    %v1673 = vunpack.c.h.b16 %v1620
    %v1674 = vunpack.c.l.b16 %v1621
    %v1675 = vunpack.c.h.b16 %v1621
    %v1676 = vunpack.c.l.b16 %v1622
    %v1677 = vunpack.c.h.b16 %v1622
    %v1678 = vunpack.c.l.b16 %v1623
    %v1679 = vunpack.c.h.b16 %v1623
    %v1680 = vpack.c.b16 %v1650, %v1648
    %v1681 = vpack.c.b16 %v1651, %v1649
    %v1682 = vpack.c.b16 %v1654, %v1652
    %v1683 = vpack.c.b16 %v1655, %v1653
    %v1684 = vpack.c.b16 %v1658, %v1656
    %v1685 = vpack.c.b16 %v1659, %v1657
    %v1686 = vpack.c.b16 %v1662, %v1660
    %v1687 = vpack.c.b16 %v1663, %v1661
    %v1688 = vpack.c.b16 %v1666, %v1664
    %v1689 = vpack.c.b16 %v1667, %v1665
    %v1690 = vpack.c.b16 %v1670, %v1668
    %v1691 = vpack.c.b16 %v1671, %v1669
    %v1692 = vpack.c.b16 %v1674, %v1672
    %v1693 = vpack.c.b16 %v1675, %v1673
    %v1694 = vpack.c.b16 %v1678, %v1676
    %v1695 = vpack.c.b16 %v1679, %v1677
    %1712 = vmatpush.bf16.msra.mxu0 %v1694
    %1713 = vmatpush.bf16.msra.mxu0 %v1692
    %1714 = vmatpush.bf16.msra.mxu0 %v1690
    %1715 = vmatpush.bf16.msra.mxu0 %v1688
    %1716 = vmatpush.bf16.msra.mxu0 %v1686
    %1717 = vmatpush.bf16.msra.mxu0 %v1684
    %1718 = vmatpush.bf16.msra.mxu0 %v1682
    %1719 = vmatpush.bf16.msra.mxu0 %v1680
    %1720 = vmatmul.bf16.gmra.mxu0 %v1600
    %v1721 = vpop.f32.mrf.mxu0
    %v1722 = vadd.f32 %v1630, %v1721
    %v1723 = vpop.f32.mrf.mxu0
    %v1724 = vadd.f32 %v1630, %v1723
    %1725 = vmatmul.bf16.gmra.mxu0 %v1601
    %v1726 = vpop.f32.mrf.mxu0
    %v1727 = vadd.f32 %v1630, %v1726
    %v1728 = vpop.f32.mrf.mxu0
    %v1729 = vadd.f32 %v1630, %v1728
    %1730 = vmatmul.bf16.gmra.mxu0 %v1602
    %v1731 = vpop.f32.mrf.mxu0
    %v1732 = vadd.f32 %v1630, %v1731
    %v1733 = vpop.f32.mrf.mxu0
    %v1734 = vadd.f32 %v1630, %v1733
    %1735 = vmatmul.bf16.gmra.mxu0 %v1603
    %v1736 = vpop.f32.mrf.mxu0
    %v1737 = vadd.f32 %v1630, %v1736
    %v1738 = vpop.f32.mrf.mxu0
    %v1739 = vadd.f32 %v1630, %v1738
    %1740 = vmatmul.bf16.gmra.mxu0 %v1604
    %v1741 = vpop.f32.mrf.mxu0
    %v1742 = vadd.f32 %v1630, %v1741
    %v1743 = vpop.f32.mrf.mxu0
    %v1744 = vadd.f32 %v1630, %v1743
    %1745 = vmatmul.bf16.gmra.mxu0 %v1605
    %v1746 = vpop.f32.mrf.mxu0
    %v1747 = vadd.f32 %v1630, %v1746
    %v1748 = vpop.f32.mrf.mxu0
    %v1749 = vadd.f32 %v1630, %v1748
    %1750 = vmatmul.bf16.gmra.mxu0 %v1606
    %v1751 = vpop.f32.mrf.mxu0
    %v1752 = vadd.f32 %v1630, %v1751
    %v1753 = vpop.f32.mrf.mxu0
    %v1754 = vadd.f32 %v1630, %v1753
    %1755 = vmatmul.bf16.gmra.mxu0 %v1607
    %v1756 = vpop.f32.mrf.mxu0
    %v1757 = vadd.f32 %v1630, %v1756
    %v1758 = vpop.f32.mrf.mxu0
    %v1759 = vadd.f32 %v1630, %v1758
    %1760 = vdwg.mxu0
    %1761 = vmatpush.bf16.msra.mxu0 %v1695
    %1762 = vmatpush.bf16.msra.mxu0 %v1693
    %1763 = vmatpush.bf16.msra.mxu0 %v1691
    %1764 = vmatpush.bf16.msra.mxu0 %v1689
    %1765 = vmatpush.bf16.msra.mxu0 %v1687
    %1766 = vmatpush.bf16.msra.mxu0 %v1685
    %1767 = vmatpush.bf16.msra.mxu0 %v1683
    %1768 = vmatpush.bf16.msra.mxu0 %v1681
    %1769 = vmatmul.bf16.gmra.mxu0 %v1600
    %v1770 = vpop.f32.mrf.mxu0
    %v1771 = vadd.f32 %v1631, %v1770
    %v1772 = vpop.f32.mrf.mxu0
    %v1773 = vadd.f32 %v1631, %v1772
    %1774 = vmatmul.bf16.gmra.mxu0 %v1601
    %v1775 = vpop.f32.mrf.mxu0
    %v1776 = vadd.f32 %v1631, %v1775
    %v1777 = vpop.f32.mrf.mxu0
    %v1778 = vadd.f32 %v1631, %v1777
    %1779 = vmatmul.bf16.gmra.mxu0 %v1602
    %v1780 = vpop.f32.mrf.mxu0
    %v1781 = vadd.f32 %v1631, %v1780
    %v1782 = vpop.f32.mrf.mxu0
    %v1783 = vadd.f32 %v1631, %v1782
    %1784 = vmatmul.bf16.gmra.mxu0 %v1603
    %v1785 = vpop.f32.mrf.mxu0
    %v1786 = vadd.f32 %v1631, %v1785
    %v1787 = vpop.f32.mrf.mxu0
    %v1788 = vadd.f32 %v1631, %v1787
    %1789 = vmatmul.bf16.gmra.mxu0 %v1604
    %v1790 = vpop.f32.mrf.mxu0
    %v1791 = vadd.f32 %v1631, %v1790
    %v1792 = vpop.f32.mrf.mxu0
    %v1793 = vadd.f32 %v1631, %v1792
    %1794 = vmatmul.bf16.gmra.mxu0 %v1605
    %v1795 = vpop.f32.mrf.mxu0
    %v1796 = vadd.f32 %v1631, %v1795
    %v1797 = vpop.f32.mrf.mxu0
    %v1798 = vadd.f32 %v1631, %v1797
    %1799 = vmatmul.bf16.gmra.mxu0 %v1606
    %v1800 = vpop.f32.mrf.mxu0
    %v1801 = vadd.f32 %v1631, %v1800
    %v1802 = vpop.f32.mrf.mxu0
    %v1803 = vadd.f32 %v1631, %v1802
    %1804 = vmatmul.bf16.gmra.mxu0 %v1607
    %v1805 = vpop.f32.mrf.mxu0
    %v1806 = vadd.f32 %v1631, %v1805
    %v1807 = vpop.f32.mrf.mxu0
    %v1808 = vadd.f32 %v1631, %v1807
    %1809 = vdwg.mxu0
    %v1810 = vadd.f32 %v1722, %v1771
    %1811 = vadd.xlane.f32.xlu0 %v1810
    %v1812 = vpop.xlane.xlu0 %1811
    %v1813 = vadd.f32 %v1724, %v1773
    %1814 = vadd.xlane.f32.xlu0 %v1813
    %v1815 = vpop.xlane.xlu0 %1814
    %v1816 = vadd.f32 %v1727, %v1776
    %1817 = vadd.xlane.f32.xlu0 %v1816
    %v1818 = vpop.xlane.xlu0 %1817
    %v1819 = vadd.f32 %v1729, %v1778
    %1820 = vadd.xlane.f32.xlu0 %v1819
    %v1821 = vpop.xlane.xlu0 %1820
    %v1822 = vadd.f32 %v1732, %v1781
    %1823 = vadd.xlane.f32.xlu0 %v1822
    %v1824 = vpop.xlane.xlu0 %1823
    %v1825 = vadd.f32 %v1734, %v1783
    %1826 = vadd.xlane.f32.xlu0 %v1825
    %v1827 = vpop.xlane.xlu0 %1826
    %v1828 = vadd.f32 %v1737, %v1786
    %1829 = vadd.xlane.f32.xlu0 %v1828
    %v1830 = vpop.xlane.xlu0 %1829
    %v1831 = vadd.f32 %v1739, %v1788
    %1832 = vadd.xlane.f32.xlu0 %v1831
    %v1833 = vpop.xlane.xlu0 %1832
    %v1834 = vadd.f32 %v1742, %v1791
    %1835 = vadd.xlane.f32.xlu0 %v1834
    %v1836 = vpop.xlane.xlu0 %1835
    %v1837 = vadd.f32 %v1744, %v1793
    %1838 = vadd.xlane.f32.xlu0 %v1837
    %v1839 = vpop.xlane.xlu0 %1838
    %v1840 = vadd.f32 %v1747, %v1796
    %1841 = vadd.xlane.f32.xlu0 %v1840
    %v1842 = vpop.xlane.xlu0 %1841
    %v1843 = vadd.f32 %v1749, %v1798
    %1844 = vadd.xlane.f32.xlu0 %v1843
    %v1845 = vpop.xlane.xlu0 %1844
    %v1846 = vadd.f32 %v1752, %v1801
    %1847 = vadd.xlane.f32.xlu0 %v1846
    %v1848 = vpop.xlane.xlu0 %1847
    %v1849 = vadd.f32 %v1754, %v1803
    %1850 = vadd.xlane.f32.xlu0 %v1849
    %v1851 = vpop.xlane.xlu0 %1850
    %v1852 = vadd.f32 %v1757, %v1806
    %1853 = vadd.xlane.f32.xlu0 %v1852
    %v1854 = vpop.xlane.xlu0 %1853
    %v1855 = vadd.f32 %v1759, %v1808
    %1856 = vadd.xlane.f32.xlu0 %v1855
    %v1857 = vpop.xlane.xlu0 %1856
    %v1858 = vrcp.pop 256.0
    %v1859 = vmul.f32 256.0, %v1858
    %v1860 = vsub.f32 1.0, %v1859
    %v1861 = vmul.f32 %v1858, %v1860
    %v1862 = vadd.f32 %v1858, %v1861
    %vm1863 = vweird.f32 %v1858
    %v1864 = vsel %vm1863, %v1858, %v1862
    %v1865 = vmul.f32 %v1812, %v1864
    %v1866 = vmul.f32 %v1815, %v1864
    %v1867 = vmul.f32 %v1818, %v1864
    %v1868 = vmul.f32 %v1821, %v1864
    %v1869 = vmul.f32 %v1824, %v1864
    %v1870 = vmul.f32 %v1827, %v1864
    %v1871 = vmul.f32 %v1830, %v1864
    %v1872 = vmul.f32 %v1833, %v1864
    %v1873 = vmul.f32 %v1836, %v1864
    %v1874 = vmul.f32 %v1839, %v1864
    %v1875 = vmul.f32 %v1842, %v1864
    %v1876 = vmul.f32 %v1845, %v1864
    %v1877 = vmul.f32 %v1848, %v1864
    %v1878 = vmul.f32 %v1851, %v1864
    %v1879 = vmul.f32 %v1854, %v1864
    %v1880 = vmul.f32 %v1857, %v1864
    %v1881 = vmul.f32 %v1722, %v1722
    %v1882 = vmul.f32 %v1771, %v1771
    %v1883 = vmul.f32 %v1724, %v1724
    %v1884 = vmul.f32 %v1773, %v1773
    %v1885 = vmul.f32 %v1727, %v1727
    %v1886 = vmul.f32 %v1776, %v1776
    %v1887 = vmul.f32 %v1729, %v1729
    %v1888 = vmul.f32 %v1778, %v1778
    %v1889 = vmul.f32 %v1732, %v1732
    %v1890 = vmul.f32 %v1781, %v1781
    %v1891 = vmul.f32 %v1734, %v1734
    %v1892 = vmul.f32 %v1783, %v1783
    %v1893 = vmul.f32 %v1737, %v1737
    %v1894 = vmul.f32 %v1786, %v1786
    %v1895 = vmul.f32 %v1739, %v1739
    %v1896 = vmul.f32 %v1788, %v1788
    %v1897 = vmul.f32 %v1742, %v1742
    %v1898 = vmul.f32 %v1791, %v1791
    %v1899 = vmul.f32 %v1744, %v1744
    %v1900 = vmul.f32 %v1793, %v1793
    %v1901 = vmul.f32 %v1747, %v1747
    %v1902 = vmul.f32 %v1796, %v1796
    %v1903 = vmul.f32 %v1749, %v1749
    %v1904 = vmul.f32 %v1798, %v1798
    %v1905 = vmul.f32 %v1752, %v1752
    %v1906 = vmul.f32 %v1801, %v1801
    %v1907 = vmul.f32 %v1754, %v1754
    %v1908 = vmul.f32 %v1803, %v1803
    %v1909 = vmul.f32 %v1757, %v1757
    %v1910 = vmul.f32 %v1806, %v1806
    %v1911 = vmul.f32 %v1759, %v1759
    %v1912 = vmul.f32 %v1808, %v1808
    %v1913 = vadd.f32 %v1881, %v1882
    %1914 = vadd.xlane.f32.xlu0 %v1913
    %v1915 = vpop.xlane.xlu0 %1914
    %v1916 = vadd.f32 %v1883, %v1884
    %1917 = vadd.xlane.f32.xlu0 %v1916
    %v1918 = vpop.xlane.xlu0 %1917
    %v1919 = vadd.f32 %v1885, %v1886
    %1920 = vadd.xlane.f32.xlu0 %v1919
    %v1921 = vpop.xlane.xlu0 %1920
    %v1922 = vadd.f32 %v1887, %v1888
    %1923 = vadd.xlane.f32.xlu0 %v1922
    %v1924 = vpop.xlane.xlu0 %1923
    %v1925 = vadd.f32 %v1889, %v1890
    %1926 = vadd.xlane.f32.xlu0 %v1925
    %v1927 = vpop.xlane.xlu0 %1926
    %v1928 = vadd.f32 %v1891, %v1892
    %1929 = vadd.xlane.f32.xlu0 %v1928
    %v1930 = vpop.xlane.xlu0 %1929
    %v1931 = vadd.f32 %v1893, %v1894
    %1932 = vadd.xlane.f32.xlu0 %v1931
    %v1933 = vpop.xlane.xlu0 %1932
    %v1934 = vadd.f32 %v1895, %v1896
    %1935 = vadd.xlane.f32.xlu0 %v1934
    %v1936 = vpop.xlane.xlu0 %1935
    %v1937 = vadd.f32 %v1897, %v1898
    %1938 = vadd.xlane.f32.xlu0 %v1937
    %v1939 = vpop.xlane.xlu0 %1938
    %v1940 = vadd.f32 %v1899, %v1900
    %1941 = vadd.xlane.f32.xlu0 %v1940
    %v1942 = vpop.xlane.xlu0 %1941
    %v1943 = vadd.f32 %v1901, %v1902
    %1944 = vadd.xlane.f32.xlu0 %v1943
    %v1945 = vpop.xlane.xlu0 %1944
    %v1946 = vadd.f32 %v1903, %v1904
    %1947 = vadd.xlane.f32.xlu0 %v1946
    %v1948 = vpop.xlane.xlu0 %1947
    %v1949 = vadd.f32 %v1905, %v1906
    %1950 = vadd.xlane.f32.xlu0 %v1949
    %v1951 = vpop.xlane.xlu0 %1950
    %v1952 = vadd.f32 %v1907, %v1908
    %1953 = vadd.xlane.f32.xlu0 %v1952
    %v1954 = vpop.xlane.xlu0 %1953
    %v1955 = vadd.f32 %v1909, %v1910
    %1956 = vadd.xlane.f32.xlu0 %v1955
    %v1957 = vpop.xlane.xlu0 %1956
    %v1958 = vadd.f32 %v1911, %v1912
    %1959 = vadd.xlane.f32.xlu0 %v1958
    %v1960 = vpop.xlane.xlu0 %1959
    %v1961 = vmul.f32 %v1915, %v1864
    %v1962 = vmul.f32 %v1918, %v1864
    %v1963 = vmul.f32 %v1921, %v1864
    %v1964 = vmul.f32 %v1924, %v1864
    %v1965 = vmul.f32 %v1927, %v1864
    %v1966 = vmul.f32 %v1930, %v1864
    %v1967 = vmul.f32 %v1933, %v1864
    %v1968 = vmul.f32 %v1936, %v1864
    %v1969 = vmul.f32 %v1939, %v1864
    %v1970 = vmul.f32 %v1942, %v1864
    %v1971 = vmul.f32 %v1945, %v1864
    %v1972 = vmul.f32 %v1948, %v1864
    %v1973 = vmul.f32 %v1951, %v1864
    %v1974 = vmul.f32 %v1954, %v1864
    %v1975 = vmul.f32 %v1957, %v1864
    %v1976 = vmul.f32 %v1960, %v1864
    %v1977 = vmul.f32 %v1865, %v1865
    %v1978 = vmul.f32 %v1866, %v1866
    %v1979 = vmul.f32 %v1867, %v1867
    %v1980 = vmul.f32 %v1868, %v1868
    %v1981 = vmul.f32 %v1869, %v1869
    %v1982 = vmul.f32 %v1870, %v1870
    %v1983 = vmul.f32 %v1871, %v1871
    %v1984 = vmul.f32 %v1872, %v1872
    %v1985 = vmul.f32 %v1873, %v1873
    %v1986 = vmul.f32 %v1874, %v1874
    %v1987 = vmul.f32 %v1875, %v1875
    %v1988 = vmul.f32 %v1876, %v1876
    %v1989 = vmul.f32 %v1877, %v1877
    %v1990 = vmul.f32 %v1878, %v1878
    %v1991 = vmul.f32 %v1879, %v1879
    %v1992 = vmul.f32 %v1880, %v1880
    %v1993 = vsub.f32 %v1961, %v1977
    %v1994 = vsub.f32 %v1962, %v1978
    %v1995 = vsub.f32 %v1963, %v1979
    %v1996 = vsub.f32 %v1964, %v1980
    %v1997 = vsub.f32 %v1965, %v1981
    %v1998 = vsub.f32 %v1966, %v1982
    %v1999 = vsub.f32 %v1967, %v1983
    %v2000 = vsub.f32 %v1968, %v1984
    %v2001 = vsub.f32 %v1969, %v1985
    %v2002 = vsub.f32 %v1970, %v1986
    %v2003 = vsub.f32 %v1971, %v1987
    %v2004 = vsub.f32 %v1972, %v1988
    %v2005 = vsub.f32 %v1973, %v1989
    %v2006 = vsub.f32 %v1974, %v1990
    %v2007 = vsub.f32 %v1975, %v1991
    %v2008 = vsub.f32 %v1976, %v1992
    %v2009 = vmax.f32 %v1993, 0.0
    %v2010 = vmax.f32 %v1994, 0.0
    %v2011 = vmax.f32 %v1995, 0.0
    %v2012 = vmax.f32 %v1996, 0.0
    %v2013 = vmax.f32 %v1997, 0.0
    %v2014 = vmax.f32 %v1998, 0.0
    %v2015 = vmax.f32 %v1999, 0.0
    %v2016 = vmax.f32 %v2000, 0.0
    %v2017 = vmax.f32 %v2001, 0.0
    %v2018 = vmax.f32 %v2002, 0.0
    %v2019 = vmax.f32 %v2003, 0.0
    %v2020 = vmax.f32 %v2004, 0.0
    %v2021 = vmax.f32 %v2005, 0.0
    %v2022 = vmax.f32 %v2006, 0.0
    %v2023 = vmax.f32 %v2007, 0.0
    %v2024 = vmax.f32 %v2008, 0.0
    %v2025 = vsub.f32 %v1722, %v1865
    %v2026 = vsub.f32 %v1771, %v1865
    %v2027 = vsub.f32 %v1724, %v1866
    %v2028 = vsub.f32 %v1773, %v1866
    %v2029 = vsub.f32 %v1727, %v1867
    %v2030 = vsub.f32 %v1776, %v1867
    %v2031 = vsub.f32 %v1729, %v1868
    %v2032 = vsub.f32 %v1778, %v1868
    %v2033 = vsub.f32 %v1732, %v1869
    %v2034 = vsub.f32 %v1781, %v1869
    %v2035 = vsub.f32 %v1734, %v1870
    %v2036 = vsub.f32 %v1783, %v1870
    %v2037 = vsub.f32 %v1737, %v1871
    %v2038 = vsub.f32 %v1786, %v1871
    %v2039 = vsub.f32 %v1739, %v1872
    %v2040 = vsub.f32 %v1788, %v1872
    %v2041 = vsub.f32 %v1742, %v1873
    %v2042 = vsub.f32 %v1791, %v1873
    %v2043 = vsub.f32 %v1744, %v1874
    %v2044 = vsub.f32 %v1793, %v1874
    %v2045 = vsub.f32 %v1747, %v1875
    %v2046 = vsub.f32 %v1796, %v1875
    %v2047 = vsub.f32 %v1749, %v1876
    %v2048 = vsub.f32 %v1798, %v1876
    %v2049 = vsub.f32 %v1752, %v1877
    %v2050 = vsub.f32 %v1801, %v1877
    %v2051 = vsub.f32 %v1754, %v1878
    %v2052 = vsub.f32 %v1803, %v1878
    %v2053 = vsub.f32 %v1757, %v1879
    %v2054 = vsub.f32 %v1806, %v1879
    %v2055 = vsub.f32 %v1759, %v1880
    %v2056 = vsub.f32 %v1808, %v1880
    %v2057 = vadd.f32 %v2009, 1e-05
    %v2058 = vadd.f32 %v2010, 1e-05
    %v2059 = vadd.f32 %v2011, 1e-05
    %v2060 = vadd.f32 %v2012, 1e-05
    %v2061 = vadd.f32 %v2013, 1e-05
    %v2062 = vadd.f32 %v2014, 1e-05
    %v2063 = vadd.f32 %v2015, 1e-05
    %v2064 = vadd.f32 %v2016, 1e-05
    %v2065 = vadd.f32 %v2017, 1e-05
    %v2066 = vadd.f32 %v2018, 1e-05
    %v2067 = vadd.f32 %v2019, 1e-05
    %v2068 = vadd.f32 %v2020, 1e-05
    %v2069 = vadd.f32 %v2021, 1e-05
    %v2070 = vadd.f32 %v2022, 1e-05
    %v2071 = vadd.f32 %v2023, 1e-05
    %v2072 = vadd.f32 %v2024, 1e-05
    %v2073 = vrsqrt.pop %v2057
    %v2074 = vmul.f32 %v2073, %v2057
    %v2075 = vmul.f32 %v2074, %v2073
    %v2076 = vmul.f32 0.5, %v2075
    %v2077 = vsub.f32 1.5, %v2076
    %v2078 = vmul.f32 %v2073, %v2077
    %vm2079 = vweird.f32 %v2057
    %vm2080 = vweird.f32 %v2073
    %vm2081 = vmor %vm2079, %vm2080
    %v2082 = vsel %vm2081, %v2073, %v2078
    %v2083 = vrsqrt.pop %v2058
    %v2084 = vmul.f32 %v2083, %v2058
    %v2085 = vmul.f32 %v2084, %v2083
    %v2086 = vmul.f32 0.5, %v2085
    %v2087 = vsub.f32 1.5, %v2086
    %v2088 = vmul.f32 %v2083, %v2087
    %vm2089 = vweird.f32 %v2058
    %vm2090 = vweird.f32 %v2083
    %vm2091 = vmor %vm2089, %vm2090
    %v2092 = vsel %vm2091, %v2083, %v2088
    %v2093 = vrsqrt.pop %v2059
    %v2094 = vmul.f32 %v2093, %v2059
    %v2095 = vmul.f32 %v2094, %v2093
    %v2096 = vmul.f32 0.5, %v2095
    %v2097 = vsub.f32 1.5, %v2096
    %v2098 = vmul.f32 %v2093, %v2097
    %vm2099 = vweird.f32 %v2059
    %vm2100 = vweird.f32 %v2093
    %vm2101 = vmor %vm2099, %vm2100
    %v2102 = vsel %vm2101, %v2093, %v2098
    %v2103 = vrsqrt.pop %v2060
    %v2104 = vmul.f32 %v2103, %v2060
    %v2105 = vmul.f32 %v2104, %v2103
    %v2106 = vmul.f32 0.5, %v2105
    %v2107 = vsub.f32 1.5, %v2106
    %v2108 = vmul.f32 %v2103, %v2107
    %vm2109 = vweird.f32 %v2060
    %vm2110 = vweird.f32 %v2103
    %vm2111 = vmor %vm2109, %vm2110
    %v2112 = vsel %vm2111, %v2103, %v2108
    %v2113 = vrsqrt.pop %v2061
    %v2114 = vmul.f32 %v2113, %v2061
    %v2115 = vmul.f32 %v2114, %v2113
    %v2116 = vmul.f32 0.5, %v2115
    %v2117 = vsub.f32 1.5, %v2116
    %v2118 = vmul.f32 %v2113, %v2117
    %vm2119 = vweird.f32 %v2061
    %vm2120 = vweird.f32 %v2113
    %vm2121 = vmor %vm2119, %vm2120
    %v2122 = vsel %vm2121, %v2113, %v2118
    %v2123 = vrsqrt.pop %v2062
    %v2124 = vmul.f32 %v2123, %v2062
    %v2125 = vmul.f32 %v2124, %v2123
    %v2126 = vmul.f32 0.5, %v2125
    %v2127 = vsub.f32 1.5, %v2126
    %v2128 = vmul.f32 %v2123, %v2127
    %vm2129 = vweird.f32 %v2062
    %vm2130 = vweird.f32 %v2123
    %vm2131 = vmor %vm2129, %vm2130
    %v2132 = vsel %vm2131, %v2123, %v2128
    %v2133 = vrsqrt.pop %v2063
    %v2134 = vmul.f32 %v2133, %v2063
    %v2135 = vmul.f32 %v2134, %v2133
    %v2136 = vmul.f32 0.5, %v2135
    %v2137 = vsub.f32 1.5, %v2136
    %v2138 = vmul.f32 %v2133, %v2137
    %vm2139 = vweird.f32 %v2063
    %vm2140 = vweird.f32 %v2133
    %vm2141 = vmor %vm2139, %vm2140
    %v2142 = vsel %vm2141, %v2133, %v2138
    %v2143 = vrsqrt.pop %v2064
    %v2144 = vmul.f32 %v2143, %v2064
    %v2145 = vmul.f32 %v2144, %v2143
    %v2146 = vmul.f32 0.5, %v2145
    %v2147 = vsub.f32 1.5, %v2146
    %v2148 = vmul.f32 %v2143, %v2147
    %vm2149 = vweird.f32 %v2064
    %vm2150 = vweird.f32 %v2143
    %vm2151 = vmor %vm2149, %vm2150
    %v2152 = vsel %vm2151, %v2143, %v2148
    %v2153 = vrsqrt.pop %v2065
    %v2154 = vmul.f32 %v2153, %v2065
    %v2155 = vmul.f32 %v2154, %v2153
    %v2156 = vmul.f32 0.5, %v2155
    %v2157 = vsub.f32 1.5, %v2156
    %v2158 = vmul.f32 %v2153, %v2157
    %vm2159 = vweird.f32 %v2065
    %vm2160 = vweird.f32 %v2153
    %vm2161 = vmor %vm2159, %vm2160
    %v2162 = vsel %vm2161, %v2153, %v2158
    %v2163 = vrsqrt.pop %v2066
    %v2164 = vmul.f32 %v2163, %v2066
    %v2165 = vmul.f32 %v2164, %v2163
    %v2166 = vmul.f32 0.5, %v2165
    %v2167 = vsub.f32 1.5, %v2166
    %v2168 = vmul.f32 %v2163, %v2167
    %vm2169 = vweird.f32 %v2066
    %vm2170 = vweird.f32 %v2163
    %vm2171 = vmor %vm2169, %vm2170
    %v2172 = vsel %vm2171, %v2163, %v2168
    %v2173 = vrsqrt.pop %v2067
    %v2174 = vmul.f32 %v2173, %v2067
    %v2175 = vmul.f32 %v2174, %v2173
    %v2176 = vmul.f32 0.5, %v2175
    %v2177 = vsub.f32 1.5, %v2176
    %v2178 = vmul.f32 %v2173, %v2177
    %vm2179 = vweird.f32 %v2067
    %vm2180 = vweird.f32 %v2173
    %vm2181 = vmor %vm2179, %vm2180
    %v2182 = vsel %vm2181, %v2173, %v2178
    %v2183 = vrsqrt.pop %v2068
    %v2184 = vmul.f32 %v2183, %v2068
    %v2185 = vmul.f32 %v2184, %v2183
    %v2186 = vmul.f32 0.5, %v2185
    %v2187 = vsub.f32 1.5, %v2186
    %v2188 = vmul.f32 %v2183, %v2187
    %vm2189 = vweird.f32 %v2068
    %vm2190 = vweird.f32 %v2183
    %vm2191 = vmor %vm2189, %vm2190
    %v2192 = vsel %vm2191, %v2183, %v2188
    %v2193 = vrsqrt.pop %v2069
    %v2194 = vmul.f32 %v2193, %v2069
    %v2195 = vmul.f32 %v2194, %v2193
    %v2196 = vmul.f32 0.5, %v2195
    %v2197 = vsub.f32 1.5, %v2196
    %v2198 = vmul.f32 %v2193, %v2197
    %vm2199 = vweird.f32 %v2069
    %vm2200 = vweird.f32 %v2193
    %vm2201 = vmor %vm2199, %vm2200
    %v2202 = vsel %vm2201, %v2193, %v2198
    %v2203 = vrsqrt.pop %v2070
    %v2204 = vmul.f32 %v2203, %v2070
    %v2205 = vmul.f32 %v2204, %v2203
    %v2206 = vmul.f32 0.5, %v2205
    %v2207 = vsub.f32 1.5, %v2206
    %v2208 = vmul.f32 %v2203, %v2207
    %vm2209 = vweird.f32 %v2070
    %vm2210 = vweird.f32 %v2203
    %vm2211 = vmor %vm2209, %vm2210
    %v2212 = vsel %vm2211, %v2203, %v2208
    %v2213 = vrsqrt.pop %v2071
    %v2214 = vmul.f32 %v2213, %v2071
    %v2215 = vmul.f32 %v2214, %v2213
    %v2216 = vmul.f32 0.5, %v2215
    %v2217 = vsub.f32 1.5, %v2216
    %v2218 = vmul.f32 %v2213, %v2217
    %vm2219 = vweird.f32 %v2071
    %vm2220 = vweird.f32 %v2213
    %vm2221 = vmor %vm2219, %vm2220
    %v2222 = vsel %vm2221, %v2213, %v2218
    %v2223 = vrsqrt.pop %v2072
    %v2224 = vmul.f32 %v2223, %v2072
    %v2225 = vmul.f32 %v2224, %v2223
    %v2226 = vmul.f32 0.5, %v2225
    %v2227 = vsub.f32 1.5, %v2226
    %v2228 = vmul.f32 %v2223, %v2227
    %vm2229 = vweird.f32 %v2072
    %vm2230 = vweird.f32 %v2223
    %vm2231 = vmor %vm2229, %vm2230
    %v2232 = vsel %vm2231, %v2223, %v2228
    %v2233 = vmul.f32 %v2025, %v2082
    %v2234 = vmul.f32 %v2026, %v2082
    %v2235 = vmul.f32 %v2027, %v2092
    %v2236 = vmul.f32 %v2028, %v2092
    %v2237 = vmul.f32 %v2029, %v2102
    %v2238 = vmul.f32 %v2030, %v2102
    %v2239 = vmul.f32 %v2031, %v2112
    %v2240 = vmul.f32 %v2032, %v2112
    %v2241 = vmul.f32 %v2033, %v2122
    %v2242 = vmul.f32 %v2034, %v2122
    %v2243 = vmul.f32 %v2035, %v2132
    %v2244 = vmul.f32 %v2036, %v2132
    %v2245 = vmul.f32 %v2037, %v2142
    %v2246 = vmul.f32 %v2038, %v2142
    %v2247 = vmul.f32 %v2039, %v2152
    %v2248 = vmul.f32 %v2040, %v2152
    %v2249 = vmul.f32 %v2041, %v2162
    %v2250 = vmul.f32 %v2042, %v2162
    %v2251 = vmul.f32 %v2043, %v2172
    %v2252 = vmul.f32 %v2044, %v2172
    %v2253 = vmul.f32 %v2045, %v2182
    %v2254 = vmul.f32 %v2046, %v2182
    %v2255 = vmul.f32 %v2047, %v2192
    %v2256 = vmul.f32 %v2048, %v2192
    %v2257 = vmul.f32 %v2049, %v2202
    %v2258 = vmul.f32 %v2050, %v2202
    %v2259 = vmul.f32 %v2051, %v2212
    %v2260 = vmul.f32 %v2052, %v2212
    %v2261 = vmul.f32 %v2053, %v2222
    %v2262 = vmul.f32 %v2054, %v2222
    %v2263 = vmul.f32 %v2055, %v2232
    %v2264 = vmul.f32 %v2056, %v2232
    %v2265 = vpack.c.bf16 %v2234, %v2233
    %v2266 = vpack.c.bf16 %v2236, %v2235
    %v2267 = vpack.c.bf16 %v2238, %v2237
    %v2268 = vpack.c.bf16 %v2240, %v2239
    %v2269 = vpack.c.bf16 %v2242, %v2241
    %v2270 = vpack.c.bf16 %v2244, %v2243
    %v2271 = vpack.c.bf16 %v2246, %v2245
    %v2272 = vpack.c.bf16 %v2248, %v2247
    %v2273 = vpack.c.bf16 %v2250, %v2249
    %v2274 = vpack.c.bf16 %v2252, %v2251
    %v2275 = vpack.c.bf16 %v2254, %v2253
    %v2276 = vpack.c.bf16 %v2256, %v2255
    %v2277 = vpack.c.bf16 %v2258, %v2257
    %v2278 = vpack.c.bf16 %v2260, %v2259
    %v2279 = vpack.c.bf16 %v2262, %v2261
    %v2280 = vpack.c.bf16 %v2264, %v2263
    %v2281 = vperm.slane %v1624, 1
    %v2282 = vperm.slane %v1624, 5
    %v2285 = vpack.c.bf16 %v2282, %v2281
    %v2286 = vperm.slane %v1624, 2
    %v2287 = vperm.slane %v1624, 6
    %v2290 = vpack.c.bf16 %v2287, %v2286
    %v2292 = vunpack.c.l.b16 %v2285
    %v2293 = vunpack.c.h.b16 %v2285
    %v2294 = vpack.c.b16 %v2292, %v2292
    %v2295 = vpack.c.b16 %v2293, %v2293
    %v2297 = vshrl.u32 %v2294, 16
    %v2298 = vpack.i.b16 %v2297, %v2297
    %v2300 = vperm.slane %v2298, 0
    %v2302 = vshrl.u32 %v2295, 16
    %v2303 = vpack.i.b16 %v2302, %v2302
    %v2305 = vperm.slane %v2303, 0
    %v2306 = vunpack.c.l.bf16 %v2265
    %v2307 = vunpack.c.h.bf16 %v2265
    %v2308 = vunpack.c.l.bf16 %v2266
    %v2309 = vunpack.c.h.bf16 %v2266
    %v2310 = vunpack.c.l.bf16 %v2267
    %v2311 = vunpack.c.h.bf16 %v2267
    %v2312 = vunpack.c.l.bf16 %v2268
    %v2313 = vunpack.c.h.bf16 %v2268
    %v2314 = vunpack.c.l.bf16 %v2269
    %v2315 = vunpack.c.h.bf16 %v2269
    %v2316 = vunpack.c.l.bf16 %v2270
    %v2317 = vunpack.c.h.bf16 %v2270
    %v2318 = vunpack.c.l.bf16 %v2271
    %v2319 = vunpack.c.h.bf16 %v2271
    %v2320 = vunpack.c.l.bf16 %v2272
    %v2321 = vunpack.c.h.bf16 %v2272
    %v2322 = vunpack.c.l.bf16 %v2273
    %v2323 = vunpack.c.h.bf16 %v2273
    %v2324 = vunpack.c.l.bf16 %v2274
    %v2325 = vunpack.c.h.bf16 %v2274
    %v2326 = vunpack.c.l.bf16 %v2275
    %v2327 = vunpack.c.h.bf16 %v2275
    %v2328 = vunpack.c.l.bf16 %v2276
    %v2329 = vunpack.c.h.bf16 %v2276
    %v2330 = vunpack.c.l.bf16 %v2277
    %v2331 = vunpack.c.h.bf16 %v2277
    %v2332 = vunpack.c.l.bf16 %v2278
    %v2333 = vunpack.c.h.bf16 %v2278
    %v2334 = vunpack.c.l.bf16 %v2279
    %v2335 = vunpack.c.h.bf16 %v2279
    %v2336 = vunpack.c.l.bf16 %v2280
    %v2337 = vunpack.c.h.bf16 %v2280
    %v2338 = vunpack.c.l.bf16 %v2300
    %v2339 = vunpack.c.l.bf16 %v2305
    %v2340 = vmul.f32 %v2306, %v2338
    %v2341 = vmul.f32 %v2307, %v2339
    %v2342 = vmul.f32 %v2308, %v2338
    %v2343 = vmul.f32 %v2309, %v2339
    %v2344 = vmul.f32 %v2310, %v2338
    %v2345 = vmul.f32 %v2311, %v2339
    %v2346 = vmul.f32 %v2312, %v2338
    %v2347 = vmul.f32 %v2313, %v2339
    %v2348 = vmul.f32 %v2314, %v2338
    %v2349 = vmul.f32 %v2315, %v2339
    %v2350 = vmul.f32 %v2316, %v2338
    %v2351 = vmul.f32 %v2317, %v2339
    %v2352 = vmul.f32 %v2318, %v2338
    %v2353 = vmul.f32 %v2319, %v2339
    %v2354 = vmul.f32 %v2320, %v2338
    %v2355 = vmul.f32 %v2321, %v2339
    %v2356 = vmul.f32 %v2322, %v2338
    %v2357 = vmul.f32 %v2323, %v2339
    %v2358 = vmul.f32 %v2324, %v2338
    %v2359 = vmul.f32 %v2325, %v2339
    %v2360 = vmul.f32 %v2326, %v2338
    %v2361 = vmul.f32 %v2327, %v2339
    %v2362 = vmul.f32 %v2328, %v2338
    %v2363 = vmul.f32 %v2329, %v2339
    %v2364 = vmul.f32 %v2330, %v2338
    %v2365 = vmul.f32 %v2331, %v2339
    %v2366 = vmul.f32 %v2332, %v2338
    %v2367 = vmul.f32 %v2333, %v2339
    %v2368 = vmul.f32 %v2334, %v2338
    %v2369 = vmul.f32 %v2335, %v2339
    %v2370 = vmul.f32 %v2336, %v2338
    %v2371 = vmul.f32 %v2337, %v2339
    %v2372 = vpack.c.bf16 %v2341, %v2340
    %v2373 = vpack.c.bf16 %v2343, %v2342
    %v2374 = vpack.c.bf16 %v2345, %v2344
    %v2375 = vpack.c.bf16 %v2347, %v2346
    %v2376 = vpack.c.bf16 %v2349, %v2348
    %v2377 = vpack.c.bf16 %v2351, %v2350
    %v2378 = vpack.c.bf16 %v2353, %v2352
    %v2379 = vpack.c.bf16 %v2355, %v2354
    %v2380 = vpack.c.bf16 %v2357, %v2356
    %v2381 = vpack.c.bf16 %v2359, %v2358
    %v2382 = vpack.c.bf16 %v2361, %v2360
    %v2383 = vpack.c.bf16 %v2363, %v2362
    %v2384 = vpack.c.bf16 %v2365, %v2364
    %v2385 = vpack.c.bf16 %v2367, %v2366
    %v2386 = vpack.c.bf16 %v2369, %v2368
    %v2387 = vpack.c.bf16 %v2371, %v2370
    %v2389 = vunpack.c.l.b16 %v2290
    %v2390 = vunpack.c.h.b16 %v2290
    %v2391 = vpack.c.b16 %v2389, %v2389
    %v2392 = vpack.c.b16 %v2390, %v2390
    %v2394 = vpack.i.b16 %v2391, %v2391
    %v2396 = vperm.slane %v2394, 1
    %v2398 = vpack.i.b16 %v2392, %v2392
    %v2400 = vperm.slane %v2398, 1
    %v2401 = vunpack.c.l.bf16 %v2372
    %v2402 = vunpack.c.h.bf16 %v2372
    %v2403 = vunpack.c.l.bf16 %v2373
    %v2404 = vunpack.c.h.bf16 %v2373
    %v2405 = vunpack.c.l.bf16 %v2374
    %v2406 = vunpack.c.h.bf16 %v2374
    %v2407 = vunpack.c.l.bf16 %v2375
    %v2408 = vunpack.c.h.bf16 %v2375
    %v2409 = vunpack.c.l.bf16 %v2376
    %v2410 = vunpack.c.h.bf16 %v2376
    %v2411 = vunpack.c.l.bf16 %v2377
    %v2412 = vunpack.c.h.bf16 %v2377
    %v2413 = vunpack.c.l.bf16 %v2378
    %v2414 = vunpack.c.h.bf16 %v2378
    %v2415 = vunpack.c.l.bf16 %v2379
    %v2416 = vunpack.c.h.bf16 %v2379
    %v2417 = vunpack.c.l.bf16 %v2380
    %v2418 = vunpack.c.h.bf16 %v2380
    %v2419 = vunpack.c.l.bf16 %v2381
    %v2420 = vunpack.c.h.bf16 %v2381
    %v2421 = vunpack.c.l.bf16 %v2382
    %v2422 = vunpack.c.h.bf16 %v2382
    %v2423 = vunpack.c.l.bf16 %v2383
    %v2424 = vunpack.c.h.bf16 %v2383
    %v2425 = vunpack.c.l.bf16 %v2384
    %v2426 = vunpack.c.h.bf16 %v2384
    %v2427 = vunpack.c.l.bf16 %v2385
    %v2428 = vunpack.c.h.bf16 %v2385
    %v2429 = vunpack.c.l.bf16 %v2386
    %v2430 = vunpack.c.h.bf16 %v2386
    %v2431 = vunpack.c.l.bf16 %v2387
    %v2432 = vunpack.c.h.bf16 %v2387
    %v2433 = vunpack.c.l.bf16 %v2396
    %v2434 = vunpack.c.l.bf16 %v2400
    %v2435 = vadd.f32 %v2401, %v2433
    %v2436 = vadd.f32 %v2402, %v2434
    %v2437 = vadd.f32 %v2403, %v2433
    %v2438 = vadd.f32 %v2404, %v2434
    %v2439 = vadd.f32 %v2405, %v2433
    %v2440 = vadd.f32 %v2406, %v2434
    %v2441 = vadd.f32 %v2407, %v2433
    %v2442 = vadd.f32 %v2408, %v2434
    %v2443 = vadd.f32 %v2409, %v2433
    %v2444 = vadd.f32 %v2410, %v2434
    %v2445 = vadd.f32 %v2411, %v2433
    %v2446 = vadd.f32 %v2412, %v2434
    %v2447 = vadd.f32 %v2413, %v2433
    %v2448 = vadd.f32 %v2414, %v2434
    %v2449 = vadd.f32 %v2415, %v2433
    %v2450 = vadd.f32 %v2416, %v2434
    %v2451 = vadd.f32 %v2417, %v2433
    %v2452 = vadd.f32 %v2418, %v2434
    %v2453 = vadd.f32 %v2419, %v2433
    %v2454 = vadd.f32 %v2420, %v2434
    %v2455 = vadd.f32 %v2421, %v2433
    %v2456 = vadd.f32 %v2422, %v2434
    %v2457 = vadd.f32 %v2423, %v2433
    %v2458 = vadd.f32 %v2424, %v2434
    %v2459 = vadd.f32 %v2425, %v2433
    %v2460 = vadd.f32 %v2426, %v2434
    %v2461 = vadd.f32 %v2427, %v2433
    %v2462 = vadd.f32 %v2428, %v2434
    %v2463 = vadd.f32 %v2429, %v2433
    %v2464 = vadd.f32 %v2430, %v2434
    %v2465 = vadd.f32 %v2431, %v2433
    %v2466 = vadd.f32 %v2432, %v2434
    %v2467 = vpack.c.bf16 %v2436, %v2435
    %v2468 = vpack.c.bf16 %v2438, %v2437
    %v2469 = vpack.c.bf16 %v2440, %v2439
    %v2470 = vpack.c.bf16 %v2442, %v2441
    %v2471 = vpack.c.bf16 %v2444, %v2443
    %v2472 = vpack.c.bf16 %v2446, %v2445
    %v2473 = vpack.c.bf16 %v2448, %v2447
    %v2474 = vpack.c.bf16 %v2450, %v2449
    %v2475 = vpack.c.bf16 %v2452, %v2451
    %v2476 = vpack.c.bf16 %v2454, %v2453
    %v2477 = vpack.c.bf16 %v2456, %v2455
    %v2478 = vpack.c.bf16 %v2458, %v2457
    %v2479 = vpack.c.bf16 %v2460, %v2459
    %v2480 = vpack.c.bf16 %v2462, %v2461
    %v2481 = vpack.c.bf16 %v2464, %v2463
    %v2482 = vpack.c.bf16 %v2466, %v2465
    %v2483 = vunpack.c.l.bf16 %v2467
    %v2484 = vunpack.c.h.bf16 %v2467
    %v2485 = vunpack.c.l.bf16 %v2468
    %v2486 = vunpack.c.h.bf16 %v2468
    %v2487 = vunpack.c.l.bf16 %v2469
    %v2488 = vunpack.c.h.bf16 %v2469
    %v2489 = vunpack.c.l.bf16 %v2470
    %v2490 = vunpack.c.h.bf16 %v2470
    %v2491 = vunpack.c.l.bf16 %v2471
    %v2492 = vunpack.c.h.bf16 %v2471
    %v2493 = vunpack.c.l.bf16 %v2472
    %v2494 = vunpack.c.h.bf16 %v2472
    %v2495 = vunpack.c.l.bf16 %v2473
    %v2496 = vunpack.c.h.bf16 %v2473
    %v2497 = vunpack.c.l.bf16 %v2474
    %v2498 = vunpack.c.h.bf16 %v2474
    %v2499 = vunpack.c.l.bf16 %v2475
    %v2500 = vunpack.c.h.bf16 %v2475
    %v2501 = vunpack.c.l.bf16 %v2476
    %v2502 = vunpack.c.h.bf16 %v2476
    %v2503 = vunpack.c.l.bf16 %v2477
    %v2504 = vunpack.c.h.bf16 %v2477
    %v2505 = vunpack.c.l.bf16 %v2478
    %v2506 = vunpack.c.h.bf16 %v2478
    %v2507 = vunpack.c.l.bf16 %v2479
    %v2508 = vunpack.c.h.bf16 %v2479
    %v2509 = vunpack.c.l.bf16 %v2480
    %v2510 = vunpack.c.h.bf16 %v2480
    %v2511 = vunpack.c.l.bf16 %v2481
    %v2512 = vunpack.c.h.bf16 %v2481
    %v2513 = vunpack.c.l.bf16 %v2482
    %v2514 = vunpack.c.h.bf16 %v2482
    %v2515 = vmax.f32 %v2483, 0.0
    %v2516 = vmax.f32 %v2484, 0.0
    %v2517 = vmax.f32 %v2485, 0.0
    %v2518 = vmax.f32 %v2486, 0.0
    %v2519 = vmax.f32 %v2487, 0.0
    %v2520 = vmax.f32 %v2488, 0.0
    %v2521 = vmax.f32 %v2489, 0.0
    %v2522 = vmax.f32 %v2490, 0.0
    %v2523 = vmax.f32 %v2491, 0.0
    %v2524 = vmax.f32 %v2492, 0.0
    %v2525 = vmax.f32 %v2493, 0.0
    %v2526 = vmax.f32 %v2494, 0.0
    %v2527 = vmax.f32 %v2495, 0.0
    %v2528 = vmax.f32 %v2496, 0.0
    %v2529 = vmax.f32 %v2497, 0.0
    %v2530 = vmax.f32 %v2498, 0.0
    %v2531 = vmax.f32 %v2499, 0.0
    %v2532 = vmax.f32 %v2500, 0.0
    %v2533 = vmax.f32 %v2501, 0.0
    %v2534 = vmax.f32 %v2502, 0.0
    %v2535 = vmax.f32 %v2503, 0.0
    %v2536 = vmax.f32 %v2504, 0.0
    %v2537 = vmax.f32 %v2505, 0.0
    %v2538 = vmax.f32 %v2506, 0.0
    %v2539 = vmax.f32 %v2507, 0.0
    %v2540 = vmax.f32 %v2508, 0.0
    %v2541 = vmax.f32 %v2509, 0.0
    %v2542 = vmax.f32 %v2510, 0.0
    %v2543 = vmax.f32 %v2511, 0.0
    %v2544 = vmax.f32 %v2512, 0.0
    %v2545 = vmax.f32 %v2513, 0.0
    %v2546 = vmax.f32 %v2514, 0.0
    %v2547 = vpack.c.bf16 %v2517, %v2515
    %v2548 = vpack.c.bf16 %v2518, %v2516
    %v2549 = vpack.c.bf16 %v2521, %v2519
    %v2550 = vpack.c.bf16 %v2522, %v2520
    %v2551 = vpack.c.bf16 %v2525, %v2523
    %v2552 = vpack.c.bf16 %v2526, %v2524
    %v2553 = vpack.c.bf16 %v2529, %v2527
    %v2554 = vpack.c.bf16 %v2530, %v2528
    %v2555 = vpack.c.bf16 %v2533, %v2531
    %v2556 = vpack.c.bf16 %v2534, %v2532
    %v2557 = vpack.c.bf16 %v2537, %v2535
    %v2558 = vpack.c.bf16 %v2538, %v2536
    %v2559 = vpack.c.bf16 %v2541, %v2539
    %v2560 = vpack.c.bf16 %v2542, %v2540
    %v2561 = vpack.c.bf16 %v2545, %v2543
    %v2562 = vpack.c.bf16 %v2546, %v2544
    %v2563 = vld [vmem:[#allocation6] sm:$0xff]
    %v2564 = vld [vmem:[#allocation6 + $0x8] sm:$0xff]
    %v2565 = vld [vmem:[#allocation6 + $0x10] sm:$0xff]
    %v2566 = vld [vmem:[#allocation6 + $0x18] sm:$0xff]
    %v2567 = vld [vmem:[#allocation6 + $0x20] sm:$0xff]
    %v2568 = vld [vmem:[#allocation6 + $0x28] sm:$0xff]
    %v2569 = vld [vmem:[#allocation6 + $0x30] sm:$0xff]
    %v2570 = vld [vmem:[#allocation6 + $0x38] sm:$0xff]
    %v2571 = vld [vmem:[#allocation6 + $0x40] sm:$0xff]
    %v2572 = vld [vmem:[#allocation6 + $0x48] sm:$0xff]
    %v2573 = vld [vmem:[#allocation6 + $0x50] sm:$0xff]
    %v2574 = vld [vmem:[#allocation6 + $0x58] sm:$0xff]
    %v2575 = vld [vmem:[#allocation6 + $0x60] sm:$0xff]
    %v2576 = vld [vmem:[#allocation6 + $0x68] sm:$0xff]
    %v2577 = vld [vmem:[#allocation6 + $0x70] sm:$0xff]
    %v2578 = vld [vmem:[#allocation6 + $0x78] sm:$0xff]
    %v2579 = vld [vmem:[#allocation6 + $0x80] sm:$0xff]
    %v2580 = vld [vmem:[#allocation6 + $0x88] sm:$0xff]
    %v2581 = vld [vmem:[#allocation6 + $0x90] sm:$0xff]
    %v2582 = vld [vmem:[#allocation6 + $0x98] sm:$0xff]
    %v2583 = vld [vmem:[#allocation6 + $0xa0] sm:$0xff]
    %v2584 = vld [vmem:[#allocation6 + $0xa8] sm:$0xff]
    %v2585 = vld [vmem:[#allocation6 + $0xb0] sm:$0xff]
    %v2586 = vld [vmem:[#allocation6 + $0xb8] sm:$0xff]
    %v2587 = vld [vmem:[#allocation6 + $0xc0] sm:$0xff]
    %v2588 = vld [vmem:[#allocation6 + $0xc8] sm:$0xff]
    %v2589 = vld [vmem:[#allocation6 + $0xd0] sm:$0xff]
    %v2590 = vld [vmem:[#allocation6 + $0xd8] sm:$0xff]
    %v2591 = vld [vmem:[#allocation6 + $0xe0] sm:$0xff]
    %v2592 = vld [vmem:[#allocation6 + $0xe8] sm:$0xff]
    %v2593 = vld [vmem:[#allocation6 + $0xf0] sm:$0xff]
    %v2594 = vld [vmem:[#allocation6 + $0xf8] sm:$0xff]
    %v2595 = vld [vmem:[%s8] sm:$0x77]
    %v2597 = vperm.slane %v2595, 0
    %v2598 = vperm.slane %v2595, 4
    %v2601 = vperm.slane %v2597, 0
    %v2602 = vperm.slane %v2598, 0
    %v2635 = vunpack.c.l.b16 %v2563
    %v2636 = vunpack.c.h.b16 %v2563
    %v2637 = vunpack.c.l.b16 %v2564
    %v2638 = vunpack.c.h.b16 %v2564
    %v2639 = vunpack.c.l.b16 %v2565
    %v2640 = vunpack.c.h.b16 %v2565
    %v2641 = vunpack.c.l.b16 %v2566
    %v2642 = vunpack.c.h.b16 %v2566
    %v2643 = vunpack.c.l.b16 %v2567
    %v2644 = vunpack.c.h.b16 %v2567
    %v2645 = vunpack.c.l.b16 %v2568
    %v2646 = vunpack.c.h.b16 %v2568
    %v2647 = vunpack.c.l.b16 %v2569
    %v2648 = vunpack.c.h.b16 %v2569
    %v2649 = vunpack.c.l.b16 %v2570
    %v2650 = vunpack.c.h.b16 %v2570
    %v2651 = vunpack.c.l.b16 %v2571
    %v2652 = vunpack.c.h.b16 %v2571
    %v2653 = vunpack.c.l.b16 %v2572
    %v2654 = vunpack.c.h.b16 %v2572
    %v2655 = vunpack.c.l.b16 %v2573
    %v2656 = vunpack.c.h.b16 %v2573
    %v2657 = vunpack.c.l.b16 %v2574
    %v2658 = vunpack.c.h.b16 %v2574
    %v2659 = vunpack.c.l.b16 %v2575
    %v2660 = vunpack.c.h.b16 %v2575
    %v2661 = vunpack.c.l.b16 %v2576
    %v2662 = vunpack.c.h.b16 %v2576
    %v2663 = vunpack.c.l.b16 %v2577
    %v2664 = vunpack.c.h.b16 %v2577
    %v2665 = vunpack.c.l.b16 %v2578
    %v2666 = vunpack.c.h.b16 %v2578
    %v2667 = vunpack.c.l.b16 %v2579
    %v2668 = vunpack.c.h.b16 %v2579
    %v2669 = vunpack.c.l.b16 %v2580
    %v2670 = vunpack.c.h.b16 %v2580
    %v2671 = vunpack.c.l.b16 %v2581
    %v2672 = vunpack.c.h.b16 %v2581
    %v2673 = vunpack.c.l.b16 %v2582
    %v2674 = vunpack.c.h.b16 %v2582
    %v2675 = vunpack.c.l.b16 %v2583
    %v2676 = vunpack.c.h.b16 %v2583
    %v2677 = vunpack.c.l.b16 %v2584
    %v2678 = vunpack.c.h.b16 %v2584
    %v2679 = vunpack.c.l.b16 %v2585
    %v2680 = vunpack.c.h.b16 %v2585
    %v2681 = vunpack.c.l.b16 %v2586
    %v2682 = vunpack.c.h.b16 %v2586
    %v2683 = vunpack.c.l.b16 %v2587
    %v2684 = vunpack.c.h.b16 %v2587
    %v2685 = vunpack.c.l.b16 %v2588
    %v2686 = vunpack.c.h.b16 %v2588
    %v2687 = vunpack.c.l.b16 %v2589
    %v2688 = vunpack.c.h.b16 %v2589
    %v2689 = vunpack.c.l.b16 %v2590
    %v2690 = vunpack.c.h.b16 %v2590
    %v2691 = vunpack.c.l.b16 %v2591
    %v2692 = vunpack.c.h.b16 %v2591
    %v2693 = vunpack.c.l.b16 %v2592
    %v2694 = vunpack.c.h.b16 %v2592
    %v2695 = vunpack.c.l.b16 %v2593
    %v2696 = vunpack.c.h.b16 %v2593
    %v2697 = vunpack.c.l.b16 %v2594
    %v2698 = vunpack.c.h.b16 %v2594
    %v2699 = vpack.c.b16 %v2637, %v2635
    %v2700 = vpack.c.b16 %v2638, %v2636
    %v2701 = vpack.c.b16 %v2641, %v2639
    %v2702 = vpack.c.b16 %v2642, %v2640
    %v2703 = vpack.c.b16 %v2645, %v2643
    %v2704 = vpack.c.b16 %v2646, %v2644
    %v2705 = vpack.c.b16 %v2649, %v2647
    %v2706 = vpack.c.b16 %v2650, %v2648
    %v2707 = vpack.c.b16 %v2653, %v2651
    %v2708 = vpack.c.b16 %v2654, %v2652
    %v2709 = vpack.c.b16 %v2657, %v2655
    %v2710 = vpack.c.b16 %v2658, %v2656
    %v2711 = vpack.c.b16 %v2661, %v2659
    %v2712 = vpack.c.b16 %v2662, %v2660
    %v2713 = vpack.c.b16 %v2665, %v2663
    %v2714 = vpack.c.b16 %v2666, %v2664
    %v2715 = vpack.c.b16 %v2669, %v2667
    %v2716 = vpack.c.b16 %v2670, %v2668
    %v2717 = vpack.c.b16 %v2673, %v2671
    %v2718 = vpack.c.b16 %v2674, %v2672
    %v2719 = vpack.c.b16 %v2677, %v2675
    %v2720 = vpack.c.b16 %v2678, %v2676
    %v2721 = vpack.c.b16 %v2681, %v2679
    %v2722 = vpack.c.b16 %v2682, %v2680
    %v2723 = vpack.c.b16 %v2685, %v2683
    %v2724 = vpack.c.b16 %v2686, %v2684
    %v2725 = vpack.c.b16 %v2689, %v2687
    %v2726 = vpack.c.b16 %v2690, %v2688
    %v2727 = vpack.c.b16 %v2693, %v2691
    %v2728 = vpack.c.b16 %v2694, %v2692
    %v2729 = vpack.c.b16 %v2697, %v2695
    %v2730 = vpack.c.b16 %v2698, %v2696
    %2763 = vmatpush.bf16.msra.mxu0 %v2713
    %2764 = vmatpush.bf16.msra.mxu0 %v2711
    %2765 = vmatpush.bf16.msra.mxu0 %v2709
    %2766 = vmatpush.bf16.msra.mxu0 %v2707
    %2767 = vmatpush.bf16.msra.mxu0 %v2705
    %2768 = vmatpush.bf16.msra.mxu0 %v2703
    %2769 = vmatpush.bf16.msra.mxu0 %v2701
    %2770 = vmatpush.bf16.msra.mxu0 %v2699
    %2771 = vmatmul.bf16.gmra.mxu0 %v2547
    %v2772 = vpop.f32.mrf.mxu0
    %v2773 = vadd.f32 %v2601, %v2772
    %v2774 = vpop.f32.mrf.mxu0
    %v2775 = vadd.f32 %v2601, %v2774
    %2776 = vmatmul.bf16.gmra.mxu0 %v2549
    %v2777 = vpop.f32.mrf.mxu0
    %v2778 = vadd.f32 %v2601, %v2777
    %v2779 = vpop.f32.mrf.mxu0
    %v2780 = vadd.f32 %v2601, %v2779
    %2781 = vmatmul.bf16.gmra.mxu0 %v2551
    %v2782 = vpop.f32.mrf.mxu0
    %v2783 = vadd.f32 %v2601, %v2782
    %v2784 = vpop.f32.mrf.mxu0
    %v2785 = vadd.f32 %v2601, %v2784
    %2786 = vmatmul.bf16.gmra.mxu0 %v2553
    %v2787 = vpop.f32.mrf.mxu0
    %v2788 = vadd.f32 %v2601, %v2787
    %v2789 = vpop.f32.mrf.mxu0
    %v2790 = vadd.f32 %v2601, %v2789
    %2791 = vmatmul.bf16.gmra.mxu0 %v2555
    %v2792 = vpop.f32.mrf.mxu0
    %v2793 = vadd.f32 %v2601, %v2792
    %v2794 = vpop.f32.mrf.mxu0
    %v2795 = vadd.f32 %v2601, %v2794
    %2796 = vmatmul.bf16.gmra.mxu0 %v2557
    %v2797 = vpop.f32.mrf.mxu0
    %v2798 = vadd.f32 %v2601, %v2797
    %v2799 = vpop.f32.mrf.mxu0
    %v2800 = vadd.f32 %v2601, %v2799
    %2801 = vmatmul.bf16.gmra.mxu0 %v2559
    %v2802 = vpop.f32.mrf.mxu0
    %v2803 = vadd.f32 %v2601, %v2802
    %v2804 = vpop.f32.mrf.mxu0
    %v2805 = vadd.f32 %v2601, %v2804
    %2806 = vmatmul.bf16.gmra.mxu0 %v2561
    %v2807 = vpop.f32.mrf.mxu0
    %v2808 = vadd.f32 %v2601, %v2807
    %v2809 = vpop.f32.mrf.mxu0
    %v2810 = vadd.f32 %v2601, %v2809
    %2811 = vdwg.mxu0
    %2812 = vmatpush.bf16.msra.mxu0 %v2729
    %2813 = vmatpush.bf16.msra.mxu0 %v2727
    %2814 = vmatpush.bf16.msra.mxu0 %v2725
    %2815 = vmatpush.bf16.msra.mxu0 %v2723
    %2816 = vmatpush.bf16.msra.mxu0 %v2721
    %2817 = vmatpush.bf16.msra.mxu0 %v2719
    %2818 = vmatpush.bf16.msra.mxu0 %v2717
    %2819 = vmatpush.bf16.msra.mxu0 %v2715
    %2820 = vmatmul.bf16.gmra.mxu0 %v2548
    %v2821 = vpop.f32.mrf.mxu0
    %v2822 = vadd.f32 %v2773, %v2821
    %v2823 = vpop.f32.mrf.mxu0
    %v2824 = vadd.f32 %v2775, %v2823
    %2825 = vmatmul.bf16.gmra.mxu0 %v2550
    %v2826 = vpop.f32.mrf.mxu0
    %v2827 = vadd.f32 %v2778, %v2826
    %v2828 = vpop.f32.mrf.mxu0
    %v2829 = vadd.f32 %v2780, %v2828
    %2830 = vmatmul.bf16.gmra.mxu0 %v2552
    %v2831 = vpop.f32.mrf.mxu0
    %v2832 = vadd.f32 %v2783, %v2831
    %v2833 = vpop.f32.mrf.mxu0
    %v2834 = vadd.f32 %v2785, %v2833
    %2835 = vmatmul.bf16.gmra.mxu0 %v2554
    %v2836 = vpop.f32.mrf.mxu0
    %v2837 = vadd.f32 %v2788, %v2836
    %v2838 = vpop.f32.mrf.mxu0
    %v2839 = vadd.f32 %v2790, %v2838
    %2840 = vmatmul.bf16.gmra.mxu0 %v2556
    %v2841 = vpop.f32.mrf.mxu0
    %v2842 = vadd.f32 %v2793, %v2841
    %v2843 = vpop.f32.mrf.mxu0
    %v2844 = vadd.f32 %v2795, %v2843
    %2845 = vmatmul.bf16.gmra.mxu0 %v2558
    %v2846 = vpop.f32.mrf.mxu0
    %v2847 = vadd.f32 %v2798, %v2846
    %v2848 = vpop.f32.mrf.mxu0
    %v2849 = vadd.f32 %v2800, %v2848
    %2850 = vmatmul.bf16.gmra.mxu0 %v2560
    %v2851 = vpop.f32.mrf.mxu0
    %v2852 = vadd.f32 %v2803, %v2851
    %v2853 = vpop.f32.mrf.mxu0
    %v2854 = vadd.f32 %v2805, %v2853
    %2855 = vmatmul.bf16.gmra.mxu0 %v2562
    %v2856 = vpop.f32.mrf.mxu0
    %v2857 = vadd.f32 %v2808, %v2856
    %v2858 = vpop.f32.mrf.mxu0
    %v2859 = vadd.f32 %v2810, %v2858
    %2860 = vdwg.mxu0
    %2861 = vmatpush.bf16.msra.mxu0 %v2714
    %2862 = vmatpush.bf16.msra.mxu0 %v2712
    %2863 = vmatpush.bf16.msra.mxu0 %v2710
    %2864 = vmatpush.bf16.msra.mxu0 %v2708
    %2865 = vmatpush.bf16.msra.mxu0 %v2706
    %2866 = vmatpush.bf16.msra.mxu0 %v2704
    %2867 = vmatpush.bf16.msra.mxu0 %v2702
    %2868 = vmatpush.bf16.msra.mxu0 %v2700
    %2869 = vmatmul.bf16.gmra.mxu0 %v2547
    %v2870 = vpop.f32.mrf.mxu0
    %v2871 = vadd.f32 %v2602, %v2870
    %v2872 = vpop.f32.mrf.mxu0
    %v2873 = vadd.f32 %v2602, %v2872
    %2874 = vmatmul.bf16.gmra.mxu0 %v2549
    %v2875 = vpop.f32.mrf.mxu0
    %v2876 = vadd.f32 %v2602, %v2875
    %v2877 = vpop.f32.mrf.mxu0
    %v2878 = vadd.f32 %v2602, %v2877
    %2879 = vmatmul.bf16.gmra.mxu0 %v2551
    %v2880 = vpop.f32.mrf.mxu0
    %v2881 = vadd.f32 %v2602, %v2880
    %v2882 = vpop.f32.mrf.mxu0
    %v2883 = vadd.f32 %v2602, %v2882
    %2884 = vmatmul.bf16.gmra.mxu0 %v2553
    %v2885 = vpop.f32.mrf.mxu0
    %v2886 = vadd.f32 %v2602, %v2885
    %v2887 = vpop.f32.mrf.mxu0
    %v2888 = vadd.f32 %v2602, %v2887
    %2889 = vmatmul.bf16.gmra.mxu0 %v2555
    %v2890 = vpop.f32.mrf.mxu0
    %v2891 = vadd.f32 %v2602, %v2890
    %v2892 = vpop.f32.mrf.mxu0
    %v2893 = vadd.f32 %v2602, %v2892
    %2894 = vmatmul.bf16.gmra.mxu0 %v2557
    %v2895 = vpop.f32.mrf.mxu0
    %v2896 = vadd.f32 %v2602, %v2895
    %v2897 = vpop.f32.mrf.mxu0
    %v2898 = vadd.f32 %v2602, %v2897
    %2899 = vmatmul.bf16.gmra.mxu0 %v2559
    %v2900 = vpop.f32.mrf.mxu0
    %v2901 = vadd.f32 %v2602, %v2900
    %v2902 = vpop.f32.mrf.mxu0
    %v2903 = vadd.f32 %v2602, %v2902
    %2904 = vmatmul.bf16.gmra.mxu0 %v2561
    %v2905 = vpop.f32.mrf.mxu0
    %v2906 = vadd.f32 %v2602, %v2905
    %v2907 = vpop.f32.mrf.mxu0
    %v2908 = vadd.f32 %v2602, %v2907
    %2909 = vdwg.mxu0
    %2910 = vmatpush.bf16.msra.mxu0 %v2730
    %2911 = vmatpush.bf16.msra.mxu0 %v2728
    %2912 = vmatpush.bf16.msra.mxu0 %v2726
    %2913 = vmatpush.bf16.msra.mxu0 %v2724
    %2914 = vmatpush.bf16.msra.mxu0 %v2722
    %2915 = vmatpush.bf16.msra.mxu0 %v2720
    %2916 = vmatpush.bf16.msra.mxu0 %v2718
    %2917 = vmatpush.bf16.msra.mxu0 %v2716
    %2918 = vmatmul.bf16.gmra.mxu0 %v2548
    %v2919 = vpop.f32.mrf.mxu0
    %v2920 = vadd.f32 %v2871, %v2919
    %v2921 = vpop.f32.mrf.mxu0
    %v2922 = vadd.f32 %v2873, %v2921
    %2923 = vmatmul.bf16.gmra.mxu0 %v2550
    %v2924 = vpop.f32.mrf.mxu0
    %v2925 = vadd.f32 %v2876, %v2924
    %v2926 = vpop.f32.mrf.mxu0
    %v2927 = vadd.f32 %v2878, %v2926
    %2928 = vmatmul.bf16.gmra.mxu0 %v2552
    %v2929 = vpop.f32.mrf.mxu0
    %v2930 = vadd.f32 %v2881, %v2929
    %v2931 = vpop.f32.mrf.mxu0
    %v2932 = vadd.f32 %v2883, %v2931
    %2933 = vmatmul.bf16.gmra.mxu0 %v2554
    %v2934 = vpop.f32.mrf.mxu0
    %v2935 = vadd.f32 %v2886, %v2934
    %v2936 = vpop.f32.mrf.mxu0
    %v2937 = vadd.f32 %v2888, %v2936
    %2938 = vmatmul.bf16.gmra.mxu0 %v2556
    %v2939 = vpop.f32.mrf.mxu0
    %v2940 = vadd.f32 %v2891, %v2939
    %v2941 = vpop.f32.mrf.mxu0
    %v2942 = vadd.f32 %v2893, %v2941
    %2943 = vmatmul.bf16.gmra.mxu0 %v2558
    %v2944 = vpop.f32.mrf.mxu0
    %v2945 = vadd.f32 %v2896, %v2944
    %v2946 = vpop.f32.mrf.mxu0
    %v2947 = vadd.f32 %v2898, %v2946
    %2948 = vmatmul.bf16.gmra.mxu0 %v2560
    %v2949 = vpop.f32.mrf.mxu0
    %v2950 = vadd.f32 %v2901, %v2949
    %v2951 = vpop.f32.mrf.mxu0
    %v2952 = vadd.f32 %v2903, %v2951
    %2953 = vmatmul.bf16.gmra.mxu0 %v2562
    %v2954 = vpop.f32.mrf.mxu0
    %v2955 = vadd.f32 %v2906, %v2954
    %v2956 = vpop.f32.mrf.mxu0
    %v2957 = vadd.f32 %v2908, %v2956
    %2958 = vdwg.mxu0
    %v2959 = vadd.f32 %v2822, %v2920
    %2960 = vadd.xlane.f32.xlu0 %v2959
    %v2961 = vpop.xlane.xlu0 %2960
    %v2962 = vadd.f32 %v2824, %v2922
    %2963 = vadd.xlane.f32.xlu0 %v2962
    %v2964 = vpop.xlane.xlu0 %2963
    %v2965 = vadd.f32 %v2827, %v2925
    %2966 = vadd.xlane.f32.xlu0 %v2965
    %v2967 = vpop.xlane.xlu0 %2966
    %v2968 = vadd.f32 %v2829, %v2927
    %2969 = vadd.xlane.f32.xlu0 %v2968
    %v2970 = vpop.xlane.xlu0 %2969
    %v2971 = vadd.f32 %v2832, %v2930
    %2972 = vadd.xlane.f32.xlu0 %v2971
    %v2973 = vpop.xlane.xlu0 %2972
    %v2974 = vadd.f32 %v2834, %v2932
    %2975 = vadd.xlane.f32.xlu0 %v2974
    %v2976 = vpop.xlane.xlu0 %2975
    %v2977 = vadd.f32 %v2837, %v2935
    %2978 = vadd.xlane.f32.xlu0 %v2977
    %v2979 = vpop.xlane.xlu0 %2978
    %v2980 = vadd.f32 %v2839, %v2937
    %2981 = vadd.xlane.f32.xlu0 %v2980
    %v2982 = vpop.xlane.xlu0 %2981
    %v2983 = vadd.f32 %v2842, %v2940
    %2984 = vadd.xlane.f32.xlu0 %v2983
    %v2985 = vpop.xlane.xlu0 %2984
    %v2986 = vadd.f32 %v2844, %v2942
    %2987 = vadd.xlane.f32.xlu0 %v2986
    %v2988 = vpop.xlane.xlu0 %2987
    %v2989 = vadd.f32 %v2847, %v2945
    %2990 = vadd.xlane.f32.xlu0 %v2989
    %v2991 = vpop.xlane.xlu0 %2990
    %v2992 = vadd.f32 %v2849, %v2947
    %2993 = vadd.xlane.f32.xlu0 %v2992
    %v2994 = vpop.xlane.xlu0 %2993
    %v2995 = vadd.f32 %v2852, %v2950
    %2996 = vadd.xlane.f32.xlu0 %v2995
    %v2997 = vpop.xlane.xlu0 %2996
    %v2998 = vadd.f32 %v2854, %v2952
    %2999 = vadd.xlane.f32.xlu0 %v2998
    %v3000 = vpop.xlane.xlu0 %2999
    %v3001 = vadd.f32 %v2857, %v2955
    %3002 = vadd.xlane.f32.xlu0 %v3001
    %v3003 = vpop.xlane.xlu0 %3002
    %v3004 = vadd.f32 %v2859, %v2957
    %3005 = vadd.xlane.f32.xlu0 %v3004
    %v3006 = vpop.xlane.xlu0 %3005
    %v3007 = vmul.f32 %v2961, %v1864
    %v3008 = vmul.f32 %v2964, %v1864
    %v3009 = vmul.f32 %v2967, %v1864
    %v3010 = vmul.f32 %v2970, %v1864
    %v3011 = vmul.f32 %v2973, %v1864
    %v3012 = vmul.f32 %v2976, %v1864
    %v3013 = vmul.f32 %v2979, %v1864
    %v3014 = vmul.f32 %v2982, %v1864
    %v3015 = vmul.f32 %v2985, %v1864
    %v3016 = vmul.f32 %v2988, %v1864
    %v3017 = vmul.f32 %v2991, %v1864
    %v3018 = vmul.f32 %v2994, %v1864
    %v3019 = vmul.f32 %v2997, %v1864
    %v3020 = vmul.f32 %v3000, %v1864
    %v3021 = vmul.f32 %v3003, %v1864
    %v3022 = vmul.f32 %v3006, %v1864
    %v3023 = vmul.f32 %v2822, %v2822
    %v3024 = vmul.f32 %v2920, %v2920
    %v3025 = vmul.f32 %v2824, %v2824
    %v3026 = vmul.f32 %v2922, %v2922
    %v3027 = vmul.f32 %v2827, %v2827
    %v3028 = vmul.f32 %v2925, %v2925
    %v3029 = vmul.f32 %v2829, %v2829
    %v3030 = vmul.f32 %v2927, %v2927
    %v3031 = vmul.f32 %v2832, %v2832
    %v3032 = vmul.f32 %v2930, %v2930
    %v3033 = vmul.f32 %v2834, %v2834
    %v3034 = vmul.f32 %v2932, %v2932
    %v3035 = vmul.f32 %v2837, %v2837
    %v3036 = vmul.f32 %v2935, %v2935
    %v3037 = vmul.f32 %v2839, %v2839
    %v3038 = vmul.f32 %v2937, %v2937
    %v3039 = vmul.f32 %v2842, %v2842
    %v3040 = vmul.f32 %v2940, %v2940
    %v3041 = vmul.f32 %v2844, %v2844
    %v3042 = vmul.f32 %v2942, %v2942
    %v3043 = vmul.f32 %v2847, %v2847
    %v3044 = vmul.f32 %v2945, %v2945
    %v3045 = vmul.f32 %v2849, %v2849
    %v3046 = vmul.f32 %v2947, %v2947
    %v3047 = vmul.f32 %v2852, %v2852
    %v3048 = vmul.f32 %v2950, %v2950
    %v3049 = vmul.f32 %v2854, %v2854
    %v3050 = vmul.f32 %v2952, %v2952
    %v3051 = vmul.f32 %v2857, %v2857
    %v3052 = vmul.f32 %v2955, %v2955
    %v3053 = vmul.f32 %v2859, %v2859
    %v3054 = vmul.f32 %v2957, %v2957
    %v3055 = vadd.f32 %v3023, %v3024
    %3056 = vadd.xlane.f32.xlu0 %v3055
    %v3057 = vpop.xlane.xlu0 %3056
    %v3058 = vadd.f32 %v3025, %v3026
    %3059 = vadd.xlane.f32.xlu0 %v3058
    %v3060 = vpop.xlane.xlu0 %3059
    %v3061 = vadd.f32 %v3027, %v3028
    %3062 = vadd.xlane.f32.xlu0 %v3061
    %v3063 = vpop.xlane.xlu0 %3062
    %v3064 = vadd.f32 %v3029, %v3030
    %3065 = vadd.xlane.f32.xlu0 %v3064
    %v3066 = vpop.xlane.xlu0 %3065
    %v3067 = vadd.f32 %v3031, %v3032
    %3068 = vadd.xlane.f32.xlu0 %v3067
    %v3069 = vpop.xlane.xlu0 %3068
    %v3070 = vadd.f32 %v3033, %v3034
    %3071 = vadd.xlane.f32.xlu0 %v3070
    %v3072 = vpop.xlane.xlu0 %3071
    %v3073 = vadd.f32 %v3035, %v3036
    %3074 = vadd.xlane.f32.xlu0 %v3073
    %v3075 = vpop.xlane.xlu0 %3074
    %v3076 = vadd.f32 %v3037, %v3038
    %3077 = vadd.xlane.f32.xlu0 %v3076
    %v3078 = vpop.xlane.xlu0 %3077
    %v3079 = vadd.f32 %v3039, %v3040
    %3080 = vadd.xlane.f32.xlu0 %v3079
    %v3081 = vpop.xlane.xlu0 %3080
    %v3082 = vadd.f32 %v3041, %v3042
    %3083 = vadd.xlane.f32.xlu0 %v3082
    %v3084 = vpop.xlane.xlu0 %3083
    %v3085 = vadd.f32 %v3043, %v3044
    %3086 = vadd.xlane.f32.xlu0 %v3085
    %v3087 = vpop.xlane.xlu0 %3086
    %v3088 = vadd.f32 %v3045, %v3046
    %3089 = vadd.xlane.f32.xlu0 %v3088
    %v3090 = vpop.xlane.xlu0 %3089
    %v3091 = vadd.f32 %v3047, %v3048
    %3092 = vadd.xlane.f32.xlu0 %v3091
    %v3093 = vpop.xlane.xlu0 %3092
    %v3094 = vadd.f32 %v3049, %v3050
    %3095 = vadd.xlane.f32.xlu0 %v3094
    %v3096 = vpop.xlane.xlu0 %3095
    %v3097 = vadd.f32 %v3051, %v3052
    %3098 = vadd.xlane.f32.xlu0 %v3097
    %v3099 = vpop.xlane.xlu0 %3098
    %v3100 = vadd.f32 %v3053, %v3054
    %3101 = vadd.xlane.f32.xlu0 %v3100
    %v3102 = vpop.xlane.xlu0 %3101
    %v3103 = vmul.f32 %v3057, %v1864
    %v3104 = vmul.f32 %v3060, %v1864
    %v3105 = vmul.f32 %v3063, %v1864
    %v3106 = vmul.f32 %v3066, %v1864
    %v3107 = vmul.f32 %v3069, %v1864
    %v3108 = vmul.f32 %v3072, %v1864
    %v3109 = vmul.f32 %v3075, %v1864
    %v3110 = vmul.f32 %v3078, %v1864
    %v3111 = vmul.f32 %v3081, %v1864
    %v3112 = vmul.f32 %v3084, %v1864
    %v3113 = vmul.f32 %v3087, %v1864
    %v3114 = vmul.f32 %v3090, %v1864
    %v3115 = vmul.f32 %v3093, %v1864
    %v3116 = vmul.f32 %v3096, %v1864
    %v3117 = vmul.f32 %v3099, %v1864
    %v3118 = vmul.f32 %v3102, %v1864
    %v3119 = vmul.f32 %v3007, %v3007
    %v3120 = vmul.f32 %v3008, %v3008
    %v3121 = vmul.f32 %v3009, %v3009
    %v3122 = vmul.f32 %v3010, %v3010
    %v3123 = vmul.f32 %v3011, %v3011
    %v3124 = vmul.f32 %v3012, %v3012
    %v3125 = vmul.f32 %v3013, %v3013
    %v3126 = vmul.f32 %v3014, %v3014
    %v3127 = vmul.f32 %v3015, %v3015
    %v3128 = vmul.f32 %v3016, %v3016
    %v3129 = vmul.f32 %v3017, %v3017
    %v3130 = vmul.f32 %v3018, %v3018
    %v3131 = vmul.f32 %v3019, %v3019
    %v3132 = vmul.f32 %v3020, %v3020
    %v3133 = vmul.f32 %v3021, %v3021
    %v3134 = vmul.f32 %v3022, %v3022
    %v3135 = vsub.f32 %v3103, %v3119
    %v3136 = vsub.f32 %v3104, %v3120
    %v3137 = vsub.f32 %v3105, %v3121
    %v3138 = vsub.f32 %v3106, %v3122
    %v3139 = vsub.f32 %v3107, %v3123
    %v3140 = vsub.f32 %v3108, %v3124
    %v3141 = vsub.f32 %v3109, %v3125
    %v3142 = vsub.f32 %v3110, %v3126
    %v3143 = vsub.f32 %v3111, %v3127
    %v3144 = vsub.f32 %v3112, %v3128
    %v3145 = vsub.f32 %v3113, %v3129
    %v3146 = vsub.f32 %v3114, %v3130
    %v3147 = vsub.f32 %v3115, %v3131
    %v3148 = vsub.f32 %v3116, %v3132
    %v3149 = vsub.f32 %v3117, %v3133
    %v3150 = vsub.f32 %v3118, %v3134
    %v3151 = vmax.f32 %v3135, 0.0
    %v3152 = vmax.f32 %v3136, 0.0
    %v3153 = vmax.f32 %v3137, 0.0
    %v3154 = vmax.f32 %v3138, 0.0
    %v3155 = vmax.f32 %v3139, 0.0
    %v3156 = vmax.f32 %v3140, 0.0
    %v3157 = vmax.f32 %v3141, 0.0
    %v3158 = vmax.f32 %v3142, 0.0
    %v3159 = vmax.f32 %v3143, 0.0
    %v3160 = vmax.f32 %v3144, 0.0
    %v3161 = vmax.f32 %v3145, 0.0
    %v3162 = vmax.f32 %v3146, 0.0
    %v3163 = vmax.f32 %v3147, 0.0
    %v3164 = vmax.f32 %v3148, 0.0
    %v3165 = vmax.f32 %v3149, 0.0
    %v3166 = vmax.f32 %v3150, 0.0
    %v3167 = vsub.f32 %v2822, %v3007
    %v3168 = vsub.f32 %v2920, %v3007
    %v3169 = vsub.f32 %v2824, %v3008
    %v3170 = vsub.f32 %v2922, %v3008
    %v3171 = vsub.f32 %v2827, %v3009
    %v3172 = vsub.f32 %v2925, %v3009
    %v3173 = vsub.f32 %v2829, %v3010
    %v3174 = vsub.f32 %v2927, %v3010
    %v3175 = vsub.f32 %v2832, %v3011
    %v3176 = vsub.f32 %v2930, %v3011
    %v3177 = vsub.f32 %v2834, %v3012
    %v3178 = vsub.f32 %v2932, %v3012
    %v3179 = vsub.f32 %v2837, %v3013
    %v3180 = vsub.f32 %v2935, %v3013
    %v3181 = vsub.f32 %v2839, %v3014
    %v3182 = vsub.f32 %v2937, %v3014
    %v3183 = vsub.f32 %v2842, %v3015
    %v3184 = vsub.f32 %v2940, %v3015
    %v3185 = vsub.f32 %v2844, %v3016
    %v3186 = vsub.f32 %v2942, %v3016
    %v3187 = vsub.f32 %v2847, %v3017
    %v3188 = vsub.f32 %v2945, %v3017
    %v3189 = vsub.f32 %v2849, %v3018
    %v3190 = vsub.f32 %v2947, %v3018
    %v3191 = vsub.f32 %v2852, %v3019
    %v3192 = vsub.f32 %v2950, %v3019
    %v3193 = vsub.f32 %v2854, %v3020
    %v3194 = vsub.f32 %v2952, %v3020
    %v3195 = vsub.f32 %v2857, %v3021
    %v3196 = vsub.f32 %v2955, %v3021
    %v3197 = vsub.f32 %v2859, %v3022
    %v3198 = vsub.f32 %v2957, %v3022
    %v3199 = vadd.f32 %v3151, 1e-05
    %v3200 = vadd.f32 %v3152, 1e-05
    %v3201 = vadd.f32 %v3153, 1e-05
    %v3202 = vadd.f32 %v3154, 1e-05
    %v3203 = vadd.f32 %v3155, 1e-05
    %v3204 = vadd.f32 %v3156, 1e-05
    %v3205 = vadd.f32 %v3157, 1e-05
    %v3206 = vadd.f32 %v3158, 1e-05
    %v3207 = vadd.f32 %v3159, 1e-05
    %v3208 = vadd.f32 %v3160, 1e-05
    %v3209 = vadd.f32 %v3161, 1e-05
    %v3210 = vadd.f32 %v3162, 1e-05
    %v3211 = vadd.f32 %v3163, 1e-05
    %v3212 = vadd.f32 %v3164, 1e-05
    %v3213 = vadd.f32 %v3165, 1e-05
    %v3214 = vadd.f32 %v3166, 1e-05
    %v3215 = vrsqrt.pop %v3199
    %v3216 = vmul.f32 %v3215, %v3199
    %v3217 = vmul.f32 %v3216, %v3215
    %v3218 = vmul.f32 0.5, %v3217
    %v3219 = vsub.f32 1.5, %v3218
    %v3220 = vmul.f32 %v3215, %v3219
    %vm3221 = vweird.f32 %v3199
    %vm3222 = vweird.f32 %v3215
    %vm3223 = vmor %vm3221, %vm3222
    %v3224 = vsel %vm3223, %v3215, %v3220
    %v3225 = vrsqrt.pop %v3200
    %v3226 = vmul.f32 %v3225, %v3200
    %v3227 = vmul.f32 %v3226, %v3225
    %v3228 = vmul.f32 0.5, %v3227
    %v3229 = vsub.f32 1.5, %v3228
    %v3230 = vmul.f32 %v3225, %v3229
    %vm3231 = vweird.f32 %v3200
    %vm3232 = vweird.f32 %v3225
    %vm3233 = vmor %vm3231, %vm3232
    %v3234 = vsel %vm3233, %v3225, %v3230
    %v3235 = vrsqrt.pop %v3201
    %v3236 = vmul.f32 %v3235, %v3201
    %v3237 = vmul.f32 %v3236, %v3235
    %v3238 = vmul.f32 0.5, %v3237
    %v3239 = vsub.f32 1.5, %v3238
    %v3240 = vmul.f32 %v3235, %v3239
    %vm3241 = vweird.f32 %v3201
    %vm3242 = vweird.f32 %v3235
    %vm3243 = vmor %vm3241, %vm3242
    %v3244 = vsel %vm3243, %v3235, %v3240
    %v3245 = vrsqrt.pop %v3202
    %v3246 = vmul.f32 %v3245, %v3202
    %v3247 = vmul.f32 %v3246, %v3245
    %v3248 = vmul.f32 0.5, %v3247
    %v3249 = vsub.f32 1.5, %v3248
    %v3250 = vmul.f32 %v3245, %v3249
    %vm3251 = vweird.f32 %v3202
    %vm3252 = vweird.f32 %v3245
    %vm3253 = vmor %vm3251, %vm3252
    %v3254 = vsel %vm3253, %v3245, %v3250
    %v3255 = vrsqrt.pop %v3203
    %v3256 = vmul.f32 %v3255, %v3203
    %v3257 = vmul.f32 %v3256, %v3255
    %v3258 = vmul.f32 0.5, %v3257
    %v3259 = vsub.f32 1.5, %v3258
    %v3260 = vmul.f32 %v3255, %v3259
    %vm3261 = vweird.f32 %v3203
    %vm3262 = vweird.f32 %v3255
    %vm3263 = vmor %vm3261, %vm3262
    %v3264 = vsel %vm3263, %v3255, %v3260
    %v3265 = vrsqrt.pop %v3204
    %v3266 = vmul.f32 %v3265, %v3204
    %v3267 = vmul.f32 %v3266, %v3265
    %v3268 = vmul.f32 0.5, %v3267
    %v3269 = vsub.f32 1.5, %v3268
    %v3270 = vmul.f32 %v3265, %v3269
    %vm3271 = vweird.f32 %v3204
    %vm3272 = vweird.f32 %v3265
    %vm3273 = vmor %vm3271, %vm3272
    %v3274 = vsel %vm3273, %v3265, %v3270
    %v3275 = vrsqrt.pop %v3205
    %v3276 = vmul.f32 %v3275, %v3205
    %v3277 = vmul.f32 %v3276, %v3275
    %v3278 = vmul.f32 0.5, %v3277
    %v3279 = vsub.f32 1.5, %v3278
    %v3280 = vmul.f32 %v3275, %v3279
    %vm3281 = vweird.f32 %v3205
    %vm3282 = vweird.f32 %v3275
    %vm3283 = vmor %vm3281, %vm3282
    %v3284 = vsel %vm3283, %v3275, %v3280
    %v3285 = vrsqrt.pop %v3206
    %v3286 = vmul.f32 %v3285, %v3206
    %v3287 = vmul.f32 %v3286, %v3285
    %v3288 = vmul.f32 0.5, %v3287
    %v3289 = vsub.f32 1.5, %v3288
    %v3290 = vmul.f32 %v3285, %v3289
    %vm3291 = vweird.f32 %v3206
    %vm3292 = vweird.f32 %v3285
    %vm3293 = vmor %vm3291, %vm3292
    %v3294 = vsel %vm3293, %v3285, %v3290
    %v3295 = vrsqrt.pop %v3207
    %v3296 = vmul.f32 %v3295, %v3207
    %v3297 = vmul.f32 %v3296, %v3295
    %v3298 = vmul.f32 0.5, %v3297
    %v3299 = vsub.f32 1.5, %v3298
    %v3300 = vmul.f32 %v3295, %v3299
    %vm3301 = vweird.f32 %v3207
    %vm3302 = vweird.f32 %v3295
    %vm3303 = vmor %vm3301, %vm3302
    %v3304 = vsel %vm3303, %v3295, %v3300
    %v3305 = vrsqrt.pop %v3208
    %v3306 = vmul.f32 %v3305, %v3208
    %v3307 = vmul.f32 %v3306, %v3305
    %v3308 = vmul.f32 0.5, %v3307
    %v3309 = vsub.f32 1.5, %v3308
    %v3310 = vmul.f32 %v3305, %v3309
    %vm3311 = vweird.f32 %v3208
    %vm3312 = vweird.f32 %v3305
    %vm3313 = vmor %vm3311, %vm3312
    %v3314 = vsel %vm3313, %v3305, %v3310
    %v3315 = vrsqrt.pop %v3209
    %v3316 = vmul.f32 %v3315, %v3209
    %v3317 = vmul.f32 %v3316, %v3315
    %v3318 = vmul.f32 0.5, %v3317
    %v3319 = vsub.f32 1.5, %v3318
    %v3320 = vmul.f32 %v3315, %v3319
    %vm3321 = vweird.f32 %v3209
    %vm3322 = vweird.f32 %v3315
    %vm3323 = vmor %vm3321, %vm3322
    %v3324 = vsel %vm3323, %v3315, %v3320
    %v3325 = vrsqrt.pop %v3210
    %v3326 = vmul.f32 %v3325, %v3210
    %v3327 = vmul.f32 %v3326, %v3325
    %v3328 = vmul.f32 0.5, %v3327
    %v3329 = vsub.f32 1.5, %v3328
    %v3330 = vmul.f32 %v3325, %v3329
    %vm3331 = vweird.f32 %v3210
    %vm3332 = vweird.f32 %v3325
    %vm3333 = vmor %vm3331, %vm3332
    %v3334 = vsel %vm3333, %v3325, %v3330
    %v3335 = vrsqrt.pop %v3211
    %v3336 = vmul.f32 %v3335, %v3211
    %v3337 = vmul.f32 %v3336, %v3335
    %v3338 = vmul.f32 0.5, %v3337
    %v3339 = vsub.f32 1.5, %v3338
    %v3340 = vmul.f32 %v3335, %v3339
    %vm3341 = vweird.f32 %v3211
    %vm3342 = vweird.f32 %v3335
    %vm3343 = vmor %vm3341, %vm3342
    %v3344 = vsel %vm3343, %v3335, %v3340
    %v3345 = vrsqrt.pop %v3212
    %v3346 = vmul.f32 %v3345, %v3212
    %v3347 = vmul.f32 %v3346, %v3345
    %v3348 = vmul.f32 0.5, %v3347
    %v3349 = vsub.f32 1.5, %v3348
    %v3350 = vmul.f32 %v3345, %v3349
    %vm3351 = vweird.f32 %v3212
    %vm3352 = vweird.f32 %v3345
    %vm3353 = vmor %vm3351, %vm3352
    %v3354 = vsel %vm3353, %v3345, %v3350
    %v3355 = vrsqrt.pop %v3213
    %v3356 = vmul.f32 %v3355, %v3213
    %v3357 = vmul.f32 %v3356, %v3355
    %v3358 = vmul.f32 0.5, %v3357
    %v3359 = vsub.f32 1.5, %v3358
    %v3360 = vmul.f32 %v3355, %v3359
    %vm3361 = vweird.f32 %v3213
    %vm3362 = vweird.f32 %v3355
    %vm3363 = vmor %vm3361, %vm3362
    %v3364 = vsel %vm3363, %v3355, %v3360
    %v3365 = vrsqrt.pop %v3214
    %v3366 = vmul.f32 %v3365, %v3214
    %v3367 = vmul.f32 %v3366, %v3365
    %v3368 = vmul.f32 0.5, %v3367
    %v3369 = vsub.f32 1.5, %v3368
    %v3370 = vmul.f32 %v3365, %v3369
    %vm3371 = vweird.f32 %v3214
    %vm3372 = vweird.f32 %v3365
    %vm3373 = vmor %vm3371, %vm3372
    %v3374 = vsel %vm3373, %v3365, %v3370
    %v3375 = vmul.f32 %v3167, %v3224
    %v3376 = vmul.f32 %v3168, %v3224
    %v3377 = vmul.f32 %v3169, %v3234
    %v3378 = vmul.f32 %v3170, %v3234
    %v3379 = vmul.f32 %v3171, %v3244
    %v3380 = vmul.f32 %v3172, %v3244
    %v3381 = vmul.f32 %v3173, %v3254
    %v3382 = vmul.f32 %v3174, %v3254
    %v3383 = vmul.f32 %v3175, %v3264
    %v3384 = vmul.f32 %v3176, %v3264
    %v3385 = vmul.f32 %v3177, %v3274
    %v3386 = vmul.f32 %v3178, %v3274
    %v3387 = vmul.f32 %v3179, %v3284
    %v3388 = vmul.f32 %v3180, %v3284
    %v3389 = vmul.f32 %v3181, %v3294
    %v3390 = vmul.f32 %v3182, %v3294
    %v3391 = vmul.f32 %v3183, %v3304
    %v3392 = vmul.f32 %v3184, %v3304
    %v3393 = vmul.f32 %v3185, %v3314
    %v3394 = vmul.f32 %v3186, %v3314
    %v3395 = vmul.f32 %v3187, %v3324
    %v3396 = vmul.f32 %v3188, %v3324
    %v3397 = vmul.f32 %v3189, %v3334
    %v3398 = vmul.f32 %v3190, %v3334
    %v3399 = vmul.f32 %v3191, %v3344
    %v3400 = vmul.f32 %v3192, %v3344
    %v3401 = vmul.f32 %v3193, %v3354
    %v3402 = vmul.f32 %v3194, %v3354
    %v3403 = vmul.f32 %v3195, %v3364
    %v3404 = vmul.f32 %v3196, %v3364
    %v3405 = vmul.f32 %v3197, %v3374
    %v3406 = vmul.f32 %v3198, %v3374
    %v3407 = vperm.slane %v2595, 1
    %v3408 = vperm.slane %v2595, 5
    %v3411 = vperm.slane %v3407, 1
    %v3412 = vperm.slane %v3408, 1
    %v3413 = vmul.f32 %v3375, %v3411
    %v3414 = vmul.f32 %v3376, %v3412
    %v3415 = vmul.f32 %v3377, %v3411
    %v3416 = vmul.f32 %v3378, %v3412
    %v3417 = vmul.f32 %v3379, %v3411
    %v3418 = vmul.f32 %v3380, %v3412
    %v3419 = vmul.f32 %v3381, %v3411
    %v3420 = vmul.f32 %v3382, %v3412
    %v3421 = vmul.f32 %v3383, %v3411
    %v3422 = vmul.f32 %v3384, %v3412
    %v3423 = vmul.f32 %v3385, %v3411
    %v3424 = vmul.f32 %v3386, %v3412
    %v3425 = vmul.f32 %v3387, %v3411
    %v3426 = vmul.f32 %v3388, %v3412
    %v3427 = vmul.f32 %v3389, %v3411
    %v3428 = vmul.f32 %v3390, %v3412
    %v3429 = vmul.f32 %v3391, %v3411
    %v3430 = vmul.f32 %v3392, %v3412
    %v3431 = vmul.f32 %v3393, %v3411
    %v3432 = vmul.f32 %v3394, %v3412
    %v3433 = vmul.f32 %v3395, %v3411
    %v3434 = vmul.f32 %v3396, %v3412
    %v3435 = vmul.f32 %v3397, %v3411
    %v3436 = vmul.f32 %v3398, %v3412
    %v3437 = vmul.f32 %v3399, %v3411
    %v3438 = vmul.f32 %v3400, %v3412
    %v3439 = vmul.f32 %v3401, %v3411
    %v3440 = vmul.f32 %v3402, %v3412
    %v3441 = vmul.f32 %v3403, %v3411
    %v3442 = vmul.f32 %v3404, %v3412
    %v3443 = vmul.f32 %v3405, %v3411
    %v3444 = vmul.f32 %v3406, %v3412
    %v3445 = vperm.slane %v2595, 2
    %v3446 = vperm.slane %v2595, 6
    %v3449 = vperm.slane %v3445, 2
    %v3450 = vperm.slane %v3446, 2
    %v3451 = vadd.f32 %v3413, %v3449
    %v3452 = vadd.f32 %v3414, %v3450
    %v3453 = vadd.f32 %v3415, %v3449
    %v3454 = vadd.f32 %v3416, %v3450
    %v3455 = vadd.f32 %v3417, %v3449
    %v3456 = vadd.f32 %v3418, %v3450
    %v3457 = vadd.f32 %v3419, %v3449
    %v3458 = vadd.f32 %v3420, %v3450
    %v3459 = vadd.f32 %v3421, %v3449
    %v3460 = vadd.f32 %v3422, %v3450
    %v3461 = vadd.f32 %v3423, %v3449
    %v3462 = vadd.f32 %v3424, %v3450
    %v3463 = vadd.f32 %v3425, %v3449
    %v3464 = vadd.f32 %v3426, %v3450
    %v3465 = vadd.f32 %v3427, %v3449
    %v3466 = vadd.f32 %v3428, %v3450
    %v3467 = vadd.f32 %v3429, %v3449
    %v3468 = vadd.f32 %v3430, %v3450
    %v3469 = vadd.f32 %v3431, %v3449
    %v3470 = vadd.f32 %v3432, %v3450
    %v3471 = vadd.f32 %v3433, %v3449
    %v3472 = vadd.f32 %v3434, %v3450
    %v3473 = vadd.f32 %v3435, %v3449
    %v3474 = vadd.f32 %v3436, %v3450
    %v3475 = vadd.f32 %v3437, %v3449
    %v3476 = vadd.f32 %v3438, %v3450
    %v3477 = vadd.f32 %v3439, %v3449
    %v3478 = vadd.f32 %v3440, %v3450
    %v3479 = vadd.f32 %v3441, %v3449
    %v3480 = vadd.f32 %v3442, %v3450
    %v3481 = vadd.f32 %v3443, %v3449
    %v3482 = vadd.f32 %v3444, %v3450
    %v3483 = vmax.f32 %v3451, 0.0
    %v3484 = vmax.f32 %v3452, 0.0
    %v3485 = vmax.f32 %v3453, 0.0
    %v3486 = vmax.f32 %v3454, 0.0
    %v3487 = vmax.f32 %v3455, 0.0
    %v3488 = vmax.f32 %v3456, 0.0
    %v3489 = vmax.f32 %v3457, 0.0
    %v3490 = vmax.f32 %v3458, 0.0
    %v3491 = vmax.f32 %v3459, 0.0
    %v3492 = vmax.f32 %v3460, 0.0
    %v3493 = vmax.f32 %v3461, 0.0
    %v3494 = vmax.f32 %v3462, 0.0
    %v3495 = vmax.f32 %v3463, 0.0
    %v3496 = vmax.f32 %v3464, 0.0
    %v3497 = vmax.f32 %v3465, 0.0
    %v3498 = vmax.f32 %v3466, 0.0
    %v3499 = vmax.f32 %v3467, 0.0
    %v3500 = vmax.f32 %v3468, 0.0
    %v3501 = vmax.f32 %v3469, 0.0
    %v3502 = vmax.f32 %v3470, 0.0
    %v3503 = vmax.f32 %v3471, 0.0
    %v3504 = vmax.f32 %v3472, 0.0
    %v3505 = vmax.f32 %v3473, 0.0
    %v3506 = vmax.f32 %v3474, 0.0
    %v3507 = vmax.f32 %v3475, 0.0
    %v3508 = vmax.f32 %v3476, 0.0
    %v3509 = vmax.f32 %v3477, 0.0
    %v3510 = vmax.f32 %v3478, 0.0
    %v3511 = vmax.f32 %v3479, 0.0
    %v3512 = vmax.f32 %v3480, 0.0
    %v3513 = vmax.f32 %v3481, 0.0
    %v3514 = vmax.f32 %v3482, 0.0
    %v3515 = vrot.slane %v3483, 4
    %v3516 = vmax.f32 %v3483, %v3515
    %v3517 = vrot.slane %v3516, 2
    %v3518 = vmax.f32 %v3516, %v3517
    %v3519 = vrot.slane %v3518, 1
    %v3520 = vmax.f32 %v3518, %v3519
    %v3521 = vrot.slane %v3484, 4
    %v3522 = vmax.f32 %v3484, %v3521
    %v3523 = vrot.slane %v3522, 2
    %v3524 = vmax.f32 %v3522, %v3523
    %v3525 = vrot.slane %v3524, 1
    %v3526 = vmax.f32 %v3524, %v3525
    %v3527 = vrot.slane %v3485, 4
    %v3528 = vmax.f32 %v3485, %v3527
    %v3529 = vrot.slane %v3528, 2
    %v3530 = vmax.f32 %v3528, %v3529
    %v3531 = vrot.slane %v3530, 1
    %v3532 = vmax.f32 %v3530, %v3531
    %v3533 = vrot.slane %v3486, 4
    %v3534 = vmax.f32 %v3486, %v3533
    %v3535 = vrot.slane %v3534, 2
    %v3536 = vmax.f32 %v3534, %v3535
    %v3537 = vrot.slane %v3536, 1
    %v3538 = vmax.f32 %v3536, %v3537
    %v3539 = vrot.slane %v3487, 4
    %v3540 = vmax.f32 %v3487, %v3539
    %v3541 = vrot.slane %v3540, 2
    %v3542 = vmax.f32 %v3540, %v3541
    %v3543 = vrot.slane %v3542, 1
    %v3544 = vmax.f32 %v3542, %v3543
    %v3545 = vrot.slane %v3488, 4
    %v3546 = vmax.f32 %v3488, %v3545
    %v3547 = vrot.slane %v3546, 2
    %v3548 = vmax.f32 %v3546, %v3547
    %v3549 = vrot.slane %v3548, 1
    %v3550 = vmax.f32 %v3548, %v3549
    %v3551 = vrot.slane %v3489, 4
    %v3552 = vmax.f32 %v3489, %v3551
    %v3553 = vrot.slane %v3552, 2
    %v3554 = vmax.f32 %v3552, %v3553
    %v3555 = vrot.slane %v3554, 1
    %v3556 = vmax.f32 %v3554, %v3555
    %v3557 = vrot.slane %v3490, 4
    %v3558 = vmax.f32 %v3490, %v3557
    %v3559 = vrot.slane %v3558, 2
    %v3560 = vmax.f32 %v3558, %v3559
    %v3561 = vrot.slane %v3560, 1
    %v3562 = vmax.f32 %v3560, %v3561
    %v3563 = vrot.slane %v3491, 4
    %v3564 = vmax.f32 %v3491, %v3563
    %v3565 = vrot.slane %v3564, 2
    %v3566 = vmax.f32 %v3564, %v3565
    %v3567 = vrot.slane %v3566, 1
    %v3568 = vmax.f32 %v3566, %v3567
    %v3569 = vrot.slane %v3492, 4
    %v3570 = vmax.f32 %v3492, %v3569
    %v3571 = vrot.slane %v3570, 2
    %v3572 = vmax.f32 %v3570, %v3571
    %v3573 = vrot.slane %v3572, 1
    %v3574 = vmax.f32 %v3572, %v3573
    %v3575 = vrot.slane %v3493, 4
    %v3576 = vmax.f32 %v3493, %v3575
    %v3577 = vrot.slane %v3576, 2
    %v3578 = vmax.f32 %v3576, %v3577
    %v3579 = vrot.slane %v3578, 1
    %v3580 = vmax.f32 %v3578, %v3579
    %v3581 = vrot.slane %v3494, 4
    %v3582 = vmax.f32 %v3494, %v3581
    %v3583 = vrot.slane %v3582, 2
    %v3584 = vmax.f32 %v3582, %v3583
    %v3585 = vrot.slane %v3584, 1
    %v3586 = vmax.f32 %v3584, %v3585
    %v3587 = vrot.slane %v3495, 4
    %v3588 = vmax.f32 %v3495, %v3587
    %v3589 = vrot.slane %v3588, 2
    %v3590 = vmax.f32 %v3588, %v3589
    %v3591 = vrot.slane %v3590, 1
    %v3592 = vmax.f32 %v3590, %v3591
    %v3593 = vrot.slane %v3496, 4
    %v3594 = vmax.f32 %v3496, %v3593
    %v3595 = vrot.slane %v3594, 2
    %v3596 = vmax.f32 %v3594, %v3595
    %v3597 = vrot.slane %v3596, 1
    %v3598 = vmax.f32 %v3596, %v3597
    %v3599 = vrot.slane %v3497, 4
    %v3600 = vmax.f32 %v3497, %v3599
    %v3601 = vrot.slane %v3600, 2
    %v3602 = vmax.f32 %v3600, %v3601
    %v3603 = vrot.slane %v3602, 1
    %v3604 = vmax.f32 %v3602, %v3603
    %v3605 = vrot.slane %v3498, 4
    %v3606 = vmax.f32 %v3498, %v3605
    %v3607 = vrot.slane %v3606, 2
    %v3608 = vmax.f32 %v3606, %v3607
    %v3609 = vrot.slane %v3608, 1
    %v3610 = vmax.f32 %v3608, %v3609
    %v3611 = vrot.slane %v3499, 4
    %v3612 = vmax.f32 %v3499, %v3611
    %v3613 = vrot.slane %v3612, 2
    %v3614 = vmax.f32 %v3612, %v3613
    %v3615 = vrot.slane %v3614, 1
    %v3616 = vmax.f32 %v3614, %v3615
    %v3617 = vrot.slane %v3500, 4
    %v3618 = vmax.f32 %v3500, %v3617
    %v3619 = vrot.slane %v3618, 2
    %v3620 = vmax.f32 %v3618, %v3619
    %v3621 = vrot.slane %v3620, 1
    %v3622 = vmax.f32 %v3620, %v3621
    %v3623 = vrot.slane %v3501, 4
    %v3624 = vmax.f32 %v3501, %v3623
    %v3625 = vrot.slane %v3624, 2
    %v3626 = vmax.f32 %v3624, %v3625
    %v3627 = vrot.slane %v3626, 1
    %v3628 = vmax.f32 %v3626, %v3627
    %v3629 = vrot.slane %v3502, 4
    %v3630 = vmax.f32 %v3502, %v3629
    %v3631 = vrot.slane %v3630, 2
    %v3632 = vmax.f32 %v3630, %v3631
    %v3633 = vrot.slane %v3632, 1
    %v3634 = vmax.f32 %v3632, %v3633
    %v3635 = vrot.slane %v3503, 4
    %v3636 = vmax.f32 %v3503, %v3635
    %v3637 = vrot.slane %v3636, 2
    %v3638 = vmax.f32 %v3636, %v3637
    %v3639 = vrot.slane %v3638, 1
    %v3640 = vmax.f32 %v3638, %v3639
    %v3641 = vrot.slane %v3504, 4
    %v3642 = vmax.f32 %v3504, %v3641
    %v3643 = vrot.slane %v3642, 2
    %v3644 = vmax.f32 %v3642, %v3643
    %v3645 = vrot.slane %v3644, 1
    %v3646 = vmax.f32 %v3644, %v3645
    %v3647 = vrot.slane %v3505, 4
    %v3648 = vmax.f32 %v3505, %v3647
    %v3649 = vrot.slane %v3648, 2
    %v3650 = vmax.f32 %v3648, %v3649
    %v3651 = vrot.slane %v3650, 1
    %v3652 = vmax.f32 %v3650, %v3651
    %v3653 = vrot.slane %v3506, 4
    %v3654 = vmax.f32 %v3506, %v3653
    %v3655 = vrot.slane %v3654, 2
    %v3656 = vmax.f32 %v3654, %v3655
    %v3657 = vrot.slane %v3656, 1
    %v3658 = vmax.f32 %v3656, %v3657
    %v3659 = vrot.slane %v3507, 4
    %v3660 = vmax.f32 %v3507, %v3659
    %v3661 = vrot.slane %v3660, 2
    %v3662 = vmax.f32 %v3660, %v3661
    %v3663 = vrot.slane %v3662, 1
    %v3664 = vmax.f32 %v3662, %v3663
    %v3665 = vrot.slane %v3508, 4
    %v3666 = vmax.f32 %v3508, %v3665
    %v3667 = vrot.slane %v3666, 2
    %v3668 = vmax.f32 %v3666, %v3667
    %v3669 = vrot.slane %v3668, 1
    %v3670 = vmax.f32 %v3668, %v3669
    %v3671 = vrot.slane %v3509, 4
    %v3672 = vmax.f32 %v3509, %v3671
    %v3673 = vrot.slane %v3672, 2
    %v3674 = vmax.f32 %v3672, %v3673
    %v3675 = vrot.slane %v3674, 1
    %v3676 = vmax.f32 %v3674, %v3675
    %v3677 = vrot.slane %v3510, 4
    %v3678 = vmax.f32 %v3510, %v3677
    %v3679 = vrot.slane %v3678, 2
    %v3680 = vmax.f32 %v3678, %v3679
    %v3681 = vrot.slane %v3680, 1
    %v3682 = vmax.f32 %v3680, %v3681
    %v3683 = vrot.slane %v3511, 4
    %v3684 = vmax.f32 %v3511, %v3683
    %v3685 = vrot.slane %v3684, 2
    %v3686 = vmax.f32 %v3684, %v3685
    %v3687 = vrot.slane %v3686, 1
    %v3688 = vmax.f32 %v3686, %v3687
    %v3689 = vrot.slane %v3512, 4
    %v3690 = vmax.f32 %v3512, %v3689
    %v3691 = vrot.slane %v3690, 2
    %v3692 = vmax.f32 %v3690, %v3691
    %v3693 = vrot.slane %v3692, 1
    %v3694 = vmax.f32 %v3692, %v3693
    %v3695 = vrot.slane %v3513, 4
    %v3696 = vmax.f32 %v3513, %v3695
    %v3697 = vrot.slane %v3696, 2
    %v3698 = vmax.f32 %v3696, %v3697
    %v3699 = vrot.slane %v3698, 1
    %v3700 = vmax.f32 %v3698, %v3699
    %v3701 = vrot.slane %v3514, 4
    %v3702 = vmax.f32 %v3514, %v3701
    %v3703 = vrot.slane %v3702, 2
    %v3704 = vmax.f32 %v3702, %v3703
    %v3705 = vrot.slane %v3704, 1
    %v3706 = vmax.f32 %v3704, %v3705
    %p3707 = scmp.eq.s32.totalorder 0, 0
    // Predicated region
    $region46: #{tpu_custom_call.1} parent=1 // pred_check
      %p3708 = pneg %p3707
    $region47: #{tpu_custom_call.1} parent=1 // pred_check_branch
      %3710 = sbr.rel (%p3708) target = $region49
    $region48: #{tpu_custom_call.1} parent=1 // pred_region
      %vm3743 = vcmask 1041409
      %v3744 = vsel %vm3743, %v3532, %v3520
      %vm3745 = vcmask 1042434
      %v3746 = vsel %vm3745, %v3544, %v3744
      %vm3747 = vcmask 1043459
      %v3748 = vsel %vm3747, %v3556, %v3746
      %vm3749 = vcmask 1044484
      %v3750 = vsel %vm3749, %v3568, %v3748
      %vm3751 = vcmask 1045509
      %v3752 = vsel %vm3751, %v3580, %v3750
      %vm3753 = vcmask 1046534
      %v3754 = vsel %vm3753, %v3592, %v3752
      %vm3755 = vcmask 1047559
      %v3756 = vsel %vm3755, %v3604, %v3754
      %v3757 = vsel %vm3743, %v3538, %v3526
      %v3758 = vsel %vm3745, %v3550, %v3757
      %v3759 = vsel %vm3747, %v3562, %v3758
      %v3760 = vsel %vm3749, %v3574, %v3759
      %v3761 = vsel %vm3751, %v3586, %v3760
      %v3762 = vsel %vm3753, %v3598, %v3761
      %v3763 = vsel %vm3755, %v3610, %v3762
      %v3764 = vsel %vm3743, %v3628, %v3616
      %v3765 = vsel %vm3745, %v3640, %v3764
      %v3766 = vsel %vm3747, %v3652, %v3765
      %v3767 = vsel %vm3749, %v3664, %v3766
      %v3768 = vsel %vm3751, %v3676, %v3767
      %v3769 = vsel %vm3753, %v3688, %v3768
      %v3770 = vsel %vm3755, %v3700, %v3769
      %v3771 = vsel %vm3743, %v3634, %v3622
      %v3772 = vsel %vm3745, %v3646, %v3771
      %v3773 = vsel %vm3747, %v3658, %v3772
      %v3774 = vsel %vm3749, %v3670, %v3773
      %v3775 = vsel %vm3751, %v3682, %v3774
      %v3776 = vsel %vm3753, %v3694, %v3775
      %v3777 = vsel %vm3755, %v3706, %v3776
      %3782 = vst [vmem:[#allocation2] sm:$0xff] %v3756
      %3783 = vst [vmem:[#allocation2 + $0x8] sm:$0xff] %v3763
      %3784 = vst [vmem:[#allocation2 + $0x10] sm:$0xff] %v3770
      %3785 = vst [vmem:[#allocation2 + $0x18] sm:$0xff] %v3777
    $region49: #{tpu_custom_call.1} parent=1 // pred_fallthru
      _
    %p3786 = scmp.gt.s32.totalorder 0, 0
    // Predicated region
    $region50: #{tpu_custom_call.1} parent=1 // pred_check
      %p3787 = pneg %p3786
    $region51: #{tpu_custom_call.1} parent=1 // pred_check_branch
      %3789 = sbr.rel (%p3787) target = $region53
    $region52: #{tpu_custom_call.1} parent=1 // pred_region
      %v3790 = vld [vmem:[#allocation2] sm:$0xff]
      %v3791 = vld [vmem:[#allocation2 + $0x8] sm:$0xff]
      %v3792 = vld [vmem:[#allocation2 + $0x10] sm:$0xff]
      %v3793 = vld [vmem:[#allocation2 + $0x18] sm:$0xff]
      %vm3826 = vcmask 1041409
      %v3827 = vsel %vm3826, %v3532, %v3520
      %vm3828 = vcmask 1042434
      %v3829 = vsel %vm3828, %v3544, %v3827
      %vm3830 = vcmask 1043459
      %v3831 = vsel %vm3830, %v3556, %v3829
      %vm3832 = vcmask 1044484
      %v3833 = vsel %vm3832, %v3568, %v3831
      %vm3834 = vcmask 1045509
      %v3835 = vsel %vm3834, %v3580, %v3833
      %vm3836 = vcmask 1046534
      %v3837 = vsel %vm3836, %v3592, %v3835
      %vm3838 = vcmask 1047559
      %v3839 = vsel %vm3838, %v3604, %v3837
      %v3840 = vsel %vm3826, %v3538, %v3526
      %v3841 = vsel %vm3828, %v3550, %v3840
      %v3842 = vsel %vm3830, %v3562, %v3841
      %v3843 = vsel %vm3832, %v3574, %v3842
      %v3844 = vsel %vm3834, %v3586, %v3843
      %v3845 = vsel %vm3836, %v3598, %v3844
      %v3846 = vsel %vm3838, %v3610, %v3845
      %v3847 = vsel %vm3826, %v3628, %v3616
      %v3848 = vsel %vm3828, %v3640, %v3847
      %v3849 = vsel %vm3830, %v3652, %v3848
      %v3850 = vsel %vm3832, %v3664, %v3849
      %v3851 = vsel %vm3834, %v3676, %v3850
      %v3852 = vsel %vm3836, %v3688, %v3851
      %v3853 = vsel %vm3838, %v3700, %v3852
      %v3854 = vsel %vm3826, %v3634, %v3622
      %v3855 = vsel %vm3828, %v3646, %v3854
      %v3856 = vsel %vm3830, %v3658, %v3855
      %v3857 = vsel %vm3832, %v3670, %v3856
      %v3858 = vsel %vm3834, %v3682, %v3857
      %v3859 = vsel %vm3836, %v3694, %v3858
      %v3860 = vsel %vm3838, %v3706, %v3859
      %v3865 = vmax.f32 %v3790, %v3839
      %v3866 = vmax.f32 %v3791, %v3846
      %v3867 = vmax.f32 %v3792, %v3853
      %v3868 = vmax.f32 %v3793, %v3860
      %3869 = vst [vmem:[#allocation2] sm:$0xff] %v3865
      %3870 = vst [vmem:[#allocation2 + $0x8] sm:$0xff] %v3866
      %3871 = vst [vmem:[#allocation2 + $0x10] sm:$0xff] %v3867
      %3872 = vst [vmem:[#allocation2 + $0x18] sm:$0xff] %v3868
    $region53: #{tpu_custom_call.1} parent=1 // pred_fallthru
      _
    // Predicated region
    $region54: #{tpu_custom_call.1} parent=1 // pred_check
      %p3873 = pneg %p3707
    $region55: #{tpu_custom_call.1} parent=1 // pred_check_branch
      %3875 = sbr.rel (%p3873) target = $region57
    $region56: #{tpu_custom_call.1} parent=1 // pred_region
      %v3876 = vld [vmem:[#allocation2] sm:$0xff]
      %v3877 = vld [vmem:[#allocation2 + $0x8] sm:$0xff]
      %v3878 = vld [vmem:[#allocation2 + $0x10] sm:$0xff]
      %v3879 = vld [vmem:[#allocation2 + $0x18] sm:$0xff]
      %3880 = vst [vmem:[#allocation8] sm:$0xff] %v3876
      %3881 = vst [vmem:[#allocation8 + $0x8] sm:$0xff] %v3877
      %3882 = vst [vmem:[#allocation8 + $0x10] sm:$0xff] %v3878
      %3883 = vst [vmem:[#allocation8 + $0x18] sm:$0xff] %v3879
    $region57: #{tpu_custom_call.1} parent=1 // pred_fallthru
      _
    // Predicated region
    $region58: #{tpu_custom_call.1} parent=1 // pred_check
      _
    $region59: #{tpu_custom_call.1} parent=1 // pred_check_branch
      %3885 = sbr.rel (0) target = $region61
    $region60: #{tpu_custom_call.1} parent=1 // pred_region
      %3887 = vsyncadd [#allocation5], 0
      %s3888 = sshll.u32 [#allocation8], 4
      %s3889 = int_to_ptr.vmem [resolvable:$true] %s3888
      %s3890 = sshll.u32 %s9, 4
      %s3891 = int_to_ptr.hbm [resolvable:$true] %s3890
      %3896 = dma.vmem_to_hbm [thread:$0]  %s3889, 512, %s3891, [#allocation5], 256, 256, 16
    $region61: #{tpu_custom_call.1} parent=1 // pred_fallthru
      _
    // Predicated region
    $region62: #{tpu_custom_call.1} parent=1 // pred_check
      _
    $region63: #{tpu_custom_call.1} parent=1 // pred_check_branch
      %3898 = sbr.rel (0) target = $region65
    $region64: #{tpu_custom_call.1} parent=1 // pred_region
      %3900 = dma.done [#allocation5], 512
    $region65: #{tpu_custom_call.1} parent=1 // pred_fallthru
      _
    %3901 = vsyncpa [#allocation4], 1
    %3902 = vsyncpa [#allocation7], 1
    %3903 = vsyncpa [#allocation5], 1

</llo_original>
